<compile_context>
chip_gen: v7x
topology: tpu7x:2x2x1
jax: 0.10.0
libtpu: 0.0.40
codegen_flags: <defaults>
</compile_context>

<pallas_src>
import functools

import jax
import jax.numpy as jnp
from jax import lax
from jax.experimental import pallas as pl
from jax.experimental.pallas import tpu as pltpu


# ------------------------------ Pallas kernel --------------------------------

def _logsumexp(x, axis):
    m = jnp.max(x, axis=axis, keepdims=True)
    m_safe = jnp.where(m == -jnp.inf, jnp.zeros_like(m), m)
    return jnp.log(jnp.sum(jnp.exp(x - m_safe), axis=axis, keepdims=True)) + m


def _fused_kernel(mq_ref, mk_ref, gum_ref, bq_ref, bkt_ref, bvt_ref, out_ref, *,
                  inv_sqrt_h, inv_temperature, n_iters):
    """Per-batch fused forward (grid=(B,)).

    mq_ref  : (c, P) f32  -- mean over H of b_q  (mq[e, i] = sq[i, e])
    mk_ref  : (P, c) f32  -- mean over H of b_k  (mk[j, e] = sk[j, e])
    gum_ref : (P, P) f32  -- Gumbel noise
    bq_ref  : (H, c, P) f32 -- b_q[g, i, m]
    bkt_ref : (P, H, c) f32 -- bkt[n, h, j] = b_k[h, j, n]
    bvt_ref : (P, H, c) f32 -- same layout for b_v
    out_ref : (P, c, H) f32 -- org_perm_val[p, i, h]
    """
    f32 = jnp.float32

    # --- AttentionPermMatrix: R[i, j] = sum_e sq[i, e] * sk[j, e] * H**-0.5 ---
    R = lax.dot_general(mq_ref[...], mk_ref[...], (((0,), (1,)), ((), ())),
                        preferred_element_type=f32) * inv_sqrt_h        # (P, P)

    # --- gumbel_sinkhorn(relu(R)), all in f32 ---
    # NOTE: log(relu(R)) is -inf for non-positive R, exactly like the torch
    # reference (an all-zero row/col would then NaN in both implementations).
    r = jnp.log(jnp.maximum(R, 0.0))
    r = (r + gum_ref[...]) * inv_temperature
    for _ in range(n_iters):                       # sinkhorn_sorting_operator
        r = r - _logsumexp(r, axis=1)              # torch dim=2
        r = r - _logsumexp(r, axis=0)              # torch dim=1
    perm = jnp.exp(r)                              # (P, P): perm[n, g]

    # --- sorted K / V directly in the attention-ready layout (no transposes) --
    # kt[g, h, j] = sum_n perm[n, g] * b_k[h, j, n]  ( = k_sort[h, j, g] )
    kt = lax.dot_general(perm, bkt_ref[...], (((0,), (0,)), ((), ())),
                         preferred_element_type=f32)                    # (P, H, c)
    wt = lax.dot_general(perm, bvt_ref[...], (((0,), (0,)), ((), ())),
                         preferred_element_type=f32)                    # (P, H, c)

    # --- softmax attention batched over all P "heads" g at once ---
    # logits[g, i, j] = sum_m b_q[g, i, m] * k_sort[m, j, g]   (legal since H==P)
    logits = lax.dot_general(bq_ref[...], kt, (((2,), (1,)), ((0,), (0,))),
                             preferred_element_type=f32) * inv_temperature  # (P, c, c)
    m = jnp.max(logits, axis=-1, keepdims=True)
    e = jnp.exp(logits - m)
    attn = e / jnp.sum(e, axis=-1, keepdims=True)                       # exact divide
    # value[g, i, h] = sum_j attn[g, i, j] * v_sort[h, j, g]
    value = lax.dot_general(attn, wt, (((2,), (2,)), ((0,), (0,))),
                            preferred_element_type=f32)                 # (P, c, H)

    # --- fused un-permute: out[p, i, h] = sum_g perm[p, g] * value[g, i, h] ---
    out_ref[...] = lax.dot_general(perm, value, (((1,), (0,)), ((), ())),
                                   preferred_element_type=f32
                                   ).astype(out_ref.dtype)


# --------------------------------- wrapper -----------------------------------

def _compiler_params(per_batch_io_bytes, per_batch_live_bytes):
    # BlockSpec double-buffers every blocked operand (x2 on the IO slab); the
    # f32 intermediates (perm/kt/wt/logits/value) live on top; ~30% headroom
    # for Mosaic internal scratch.
    need = int(1.3 * (2 * per_batch_io_bytes + per_batch_live_bytes))
    # Cap at 48 MiB so v7x's 64 MiB *physical* VMEM is never exceeded; on
    # v5e/v6e (128 MiB physical) the cap could safely be raised to ~100 MiB.
    # TODO(synk): for (H, c, P) whose per-batch slab exceeds the cap, add a
    # grid axis over the H rows (sort) / P "heads" (attention) instead of
    # raising the limit further.
    limit = min(max(need, 16 * 1024 * 1024), 48 * 1024 * 1024)
    # TODO(synk): when B == 1 (or odd) on v7x megacore, add a second "parallel"
    # grid axis (e.g. split the P heads) so both TensorCores are used.
    return pltpu.CompilerParams(dimension_semantics=("parallel",),
                                vmem_limit_bytes=limit)


def sparse_cut_attention(q, k, v, cut_length, *, blocks, temperature,
                         sinkhorn_iter, gumbel_key):
    del cut_length                      # unused in the reference PyTorch forward
    B, H, L, E = q.shape
    assert L % blocks == 0
    c = L // blocks
    P = E * (blocks - 1)
    assert H == P, "module's broadcasting rules require q.shape[1] == E*(blocks-1)"
    assert E < blocks, "final torch.chunk/cat requires E < blocks"
    f32 = jnp.float32
    q = q.astype(f32)
    k = k.astype(f32)
    v = v.astype(f32)
    Lc = (blocks - 1) * c

    # glue: blockify (torch.cat of chunks) as reshape+transpose, one XLA
    # transpose per tensor.  b_q stays in its natural (B, H, c, P) layout;
    # b_k/b_v are delivered pre-transposed as (B, P, H, c) so the kernel never
    # needs an in-kernel (XLU) transpose.
    # TODO(synk): these relayouts could be folded into the kernel with an extra
    # 'arbitrary' grid axis over (blocks-1); kept in XLA for simplicity.
    bq = jnp.transpose(q[:, :, :Lc, :].reshape(B, H, blocks - 1, c, E),
                       (0, 1, 3, 2, 4)).reshape(B, H, c, P)         # (B, H, c, P)

    def blockify_t(x):                  # (B, H, L, E) -> (B, P, H, c)
        return jnp.transpose(x[:, :, :Lc, :].reshape(B, H, blocks - 1, c, E),
                             (0, 2, 4, 1, 3)).reshape(B, P, H, c)

    bkt = blockify_t(k)
    bvt = blockify_t(v)

    # Sinkhorn inputs: mean over H (cheap XLA reduces in the wrapper).
    mq = jnp.mean(bq, axis=1)           # (B, c, P)
    mk = jnp.mean(bkt, axis=2)          # (B, P, c)

    # glue: Gumbel noise (sample_gumbel), guarded against log(0).
    # TODO(synk): could be generated in-kernel via pltpu.prng_* to drop the
    # (B, P, P) HBM stream; kept host-side for deterministic jax.random keys.
    u = jax.random.uniform(gumbel_key, (B, P, P), dtype=f32,
                           minval=1e-6, maxval=1.0 - 1e-6)
    gumbel = -jnp.log(-jnp.log(u + 1e-6) + 1e-6)

    # VMEM / cost accounting (f32 everywhere).
    io_bytes = 4 * (c * P + P * c + P * P + H * c * P + 2 * P * H * c + P * c * H)
    live_bytes = 4 * (P * P + 2 * P * H * c + P * c * c + P * c * H)
    flops = 2 * B * (c * P * P + 2 * P * P * H * c + P * c * c * P
                     + P * c * c * H + P * P * c * H)
    transcend = B * ((2 * sinkhorn_iter + 1) * 2 * P * P + P * c * c)
    cost = pl.CostEstimate(flops=flops, transcendentals=transcend,
                           bytes_accessed=B * io_bytes)

    org_perm_val = pl.pallas_call(
        functools.partial(_fused_kernel, inv_sqrt_h=H ** -0.5,
                          inv_temperature=1.0 / temperature,
                          n_iters=sinkhorn_iter),
        out_shape=jax.ShapeDtypeStruct((B, P, c, H), f32),
        grid=(B,),
        in_specs=[
            pl.BlockSpec((None, c, P), lambda b: (b, 0, 0)),
            pl.BlockSpec((None, P, c), lambda b: (b, 0, 0)),
            pl.BlockSpec((None, P, P), lambda b: (b, 0, 0)),
            pl.BlockSpec((None, H, c, P), lambda b: (b, 0, 0, 0)),
            pl.BlockSpec((None, P, H, c), lambda b: (b, 0, 0, 0)),
            pl.BlockSpec((None, P, H, c), lambda b: (b, 0, 0, 0)),
        ],
        out_specs=pl.BlockSpec((None, P, c, H), lambda b: (b, 0, 0, 0)),
        compiler_params=_compiler_params(io_bytes, live_bytes),
        cost_estimate=cost,
    )(mq, mk, gumbel, bq, bkt, bvt)                     # (B, P, c, H)

    # glue: final re-assembly.  torch.chunk over the size-P dim with `blocks`
    # requested chunks yields blocks-1 chunks of size E (E < blocks), so the
    # cat is a reshape+transpose.
    out_first = jnp.transpose(org_perm_val.reshape(B, blocks - 1, E, c, H),
                              (0, 2, 1, 3, 4)).reshape(B, E, Lc, H)
    b_v_last = jnp.transpose(v[:, :, Lc:, :], (0, 3, 2, 1))      # (B, E, c, H)
    return jnp.concatenate([out_first, b_v_last], axis=2)        # (B, E, L, H)


# ----------------------------------- main -------------------------------------

if __name__ == "__main__":
    blocks, temperature, sinkhorn_iter = 5, 0.5, 4
    B, E = 2, 4
    H = E * (blocks - 1)        # 16 -- required by the module's broadcasting rules
    L = blocks * 4              # 20 -- sequence length, chunk size c = 4

    key = jax.random.PRNGKey(0)
    kq, kk, kv, kg = jax.random.split(key, 4)
    # positive inputs keep log(relu(R)) finite (as with post-ReLU feature maps)
    q = jax.random.uniform(kq, (B, H, L, E), dtype=jnp.float32)
    k = jax.random.uniform(kk, (B, H, L, E), dtype=jnp.float32)
    v = jax.random.uniform(kv, (B, H, L, E), dtype=jnp.float32)
    cut_length = L              # unused by the reference forward

    fn = jax.jit(functools.partial(sparse_cut_attention, blocks=blocks,
                                   temperature=temperature,
                                   sinkhorn_iter=sinkhorn_iter, gumbel_key=kg))
    out = jax.block_until_ready(fn(q, k, v, cut_length))
    assert out.shape == (B, E, L, H), out.shape
    assert bool(jnp.isfinite(out).all())
    print("KERNEL_OK")
</pallas_src>

<mosaic_0001>
module attributes {stable_mosaic.version = 11 : i64} {
  func.func @_fused_kernel(%arg0: i32, %arg1: memref<1x4x16xf32, #tpu.memory_space<vmem>>, %arg2: memref<1x16x4xf32, #tpu.memory_space<vmem>>, %arg3: memref<1x16x16xf32, #tpu.memory_space<vmem>>, %arg4: memref<1x16x4x16xf32, #tpu.memory_space<vmem>>, %arg5: memref<1x16x16x4xf32, #tpu.memory_space<vmem>>, %arg6: memref<1x16x16x4xf32, #tpu.memory_space<vmem>>, %arg7: memref<1x16x4x16xf32, #tpu.memory_space<vmem>>) attributes {dimension_semantics = [#tpu.dimension_semantics<parallel>], iteration_bounds = array<i64: 2>, scalar_prefetch = 0 : i64, scratch_operands = 0 : i64, tpu.core_type = #tpu.core_type<tc>, window_params = [{transform_indices = @transform_0, window_bounds = array<i64: 1, 4, 16>}, {transform_indices = @transform_1, window_bounds = array<i64: 1, 16, 4>}, {transform_indices = @transform_2, window_bounds = array<i64: 1, 16, 16>}, {transform_indices = @transform_3, window_bounds = array<i64: 1, 16, 4, 16>}, {transform_indices = @transform_4, window_bounds = array<i64: 1, 16, 16, 4>}, {transform_indices = @transform_5, window_bounds = array<i64: 1, 16, 16, 4>}, {transform_indices = @transform_6, window_bounds = array<i64: 1, 16, 4, 16>}]} {
    %c0 = arith.constant 0 : index
    %c0_0 = arith.constant 0 : index
    %c0_1 = arith.constant 0 : index
    %0 = vector.load %arg1[%c0, %c0_0, %c0_1] : memref<1x4x16xf32, #tpu.memory_space<vmem>>, vector<1x4x16xf32>
    %1 = vector.shape_cast %0 : vector<1x4x16xf32> to vector<4x16xf32>
    %c0_2 = arith.constant 0 : index
    %c0_3 = arith.constant 0 : index
    %c0_4 = arith.constant 0 : index
    %2 = vector.load %arg2[%c0_2, %c0_3, %c0_4] : memref<1x16x4xf32, #tpu.memory_space<vmem>>, vector<1x16x4xf32>
    %3 = vector.shape_cast %2 : vector<1x16x4xf32> to vector<16x4xf32>
    %cst = arith.constant dense<0.000000e+00> : vector<16x16xf32>
    %4 = tpu.matmul %1, %3, %cst {dimension_numbers = #tpu.dot_dimension_numbers<[0], [1], [1], [0], [0, 1, 1, 0], [], []>} : vector<4x16xf32>, vector<16x4xf32>, vector<16x16xf32> -> vector<16x16xf32>
    %cst_5 = arith.constant 2.500000e-01 : f32
    %5 = vector.broadcast %cst_5 : f32 to vector<16x16xf32>
    %6 = arith.mulf %4, %5 : vector<16x16xf32>
    %cst_6 = arith.constant 0.000000e+00 : f32
    %7 = vector.broadcast %cst_6 : f32 to vector<16x16xf32>
    %8 = arith.maximumf %6, %7 : vector<16x16xf32>
    %9 = math.log %8 : vector<16x16xf32>
    %c0_7 = arith.constant 0 : index
    %c0_8 = arith.constant 0 : index
    %c0_9 = arith.constant 0 : index
    %10 = vector.load %arg3[%c0_7, %c0_8, %c0_9] : memref<1x16x16xf32, #tpu.memory_space<vmem>>, vector<1x16x16xf32>
    %11 = vector.shape_cast %10 : vector<1x16x16xf32> to vector<16x16xf32>
    %12 = arith.addf %9, %11 : vector<16x16xf32>
    %cst_10 = arith.constant 2.000000e+00 : f32
    %13 = vector.broadcast %cst_10 : f32 to vector<16x16xf32>
    %14 = arith.mulf %12, %13 : vector<16x16xf32>
    %cst_11 = arith.constant dense<0xFF800000> : vector<16xf32>
    %15 = vector.multi_reduction <maximumf>, %14, %cst_11 [1] : vector<16x16xf32> to vector<16xf32>
    %16 = vector.shape_cast %15 : vector<16xf32> to vector<16x1xf32>
    %cst_12 = arith.constant 0xFF800000 : f32
    %17 = vector.broadcast %cst_12 : f32 to vector<16x1xf32>
    %18 = arith.cmpf oeq, %16, %17 : vector<16x1xf32>
    %cst_13 = arith.constant 0.000000e+00 : f32
    %19 = vector.broadcast %cst_13 : f32 to vector<16x1xf32>
    %20 = arith.select %18, %19, %16 : vector<16x1xi1>, vector<16x1xf32>
    %21 = vector.broadcast %20 : vector<16x1xf32> to vector<16x16xf32>
    %22 = arith.subf %14, %21 : vector<16x16xf32>
    %23 = math.exp %22 : vector<16x16xf32>
    %cst_14 = arith.constant dense<0.000000e+00> : vector<16xf32>
    %24 = vector.multi_reduction <add>, %23, %cst_14 [1] : vector<16x16xf32> to vector<16xf32>
    %25 = vector.shape_cast %24 : vector<16xf32> to vector<16x1xf32>
    %26 = math.log %25 : vector<16x1xf32>
    %27 = arith.addf %26, %16 : vector<16x1xf32>
    %28 = vector.broadcast %27 : vector<16x1xf32> to vector<16x16xf32>
    %29 = arith.subf %14, %28 : vector<16x16xf32>
    %cst_15 = arith.constant dense<0xFF800000> : vector<16xf32>
    %30 = vector.multi_reduction <maximumf>, %29, %cst_15 [0] : vector<16x16xf32> to vector<16xf32>
    %31 = vector.shape_cast %30 : vector<16xf32> to vector<1x16xf32>
    %cst_16 = arith.constant 0xFF800000 : f32
    %32 = vector.broadcast %cst_16 : f32 to vector<1x16xf32>
    %33 = arith.cmpf oeq, %31, %32 : vector<1x16xf32>
    %cst_17 = arith.constant 0.000000e+00 : f32
    %34 = vector.broadcast %cst_17 : f32 to vector<1x16xf32>
    %35 = arith.select %33, %34, %31 : vector<1x16xi1>, vector<1x16xf32>
    %36 = vector.broadcast %35 : vector<1x16xf32> to vector<16x16xf32>
    %37 = arith.subf %29, %36 : vector<16x16xf32>
    %38 = math.exp %37 : vector<16x16xf32>
    %cst_18 = arith.constant dense<0.000000e+00> : vector<16xf32>
    %39 = vector.multi_reduction <add>, %38, %cst_18 [0] : vector<16x16xf32> to vector<16xf32>
    %40 = vector.shape_cast %39 : vector<16xf32> to vector<1x16xf32>
    %41 = math.log %40 : vector<1x16xf32>
    %42 = arith.addf %41, %31 : vector<1x16xf32>
    %43 = vector.broadcast %42 : vector<1x16xf32> to vector<16x16xf32>
    %44 = arith.subf %29, %43 : vector<16x16xf32>
    %cst_19 = arith.constant dense<0xFF800000> : vector<16xf32>
    %45 = vector.multi_reduction <maximumf>, %44, %cst_19 [1] : vector<16x16xf32> to vector<16xf32>
    %46 = vector.shape_cast %45 : vector<16xf32> to vector<16x1xf32>
    %cst_20 = arith.constant 0xFF800000 : f32
    %47 = vector.broadcast %cst_20 : f32 to vector<16x1xf32>
    %48 = arith.cmpf oeq, %46, %47 : vector<16x1xf32>
    %cst_21 = arith.constant 0.000000e+00 : f32
    %49 = vector.broadcast %cst_21 : f32 to vector<16x1xf32>
    %50 = arith.select %48, %49, %46 : vector<16x1xi1>, vector<16x1xf32>
    %51 = vector.broadcast %50 : vector<16x1xf32> to vector<16x16xf32>
    %52 = arith.subf %44, %51 : vector<16x16xf32>
    %53 = math.exp %52 : vector<16x16xf32>
    %cst_22 = arith.constant dense<0.000000e+00> : vector<16xf32>
    %54 = vector.multi_reduction <add>, %53, %cst_22 [1] : vector<16x16xf32> to vector<16xf32>
    %55 = vector.shape_cast %54 : vector<16xf32> to vector<16x1xf32>
    %56 = math.log %55 : vector<16x1xf32>
    %57 = arith.addf %56, %46 : vector<16x1xf32>
    %58 = vector.broadcast %57 : vector<16x1xf32> to vector<16x16xf32>
    %59 = arith.subf %44, %58 : vector<16x16xf32>
    %cst_23 = arith.constant dense<0xFF800000> : vector<16xf32>
    %60 = vector.multi_reduction <maximumf>, %59, %cst_23 [0] : vector<16x16xf32> to vector<16xf32>
    %61 = vector.shape_cast %60 : vector<16xf32> to vector<1x16xf32>
    %cst_24 = arith.constant 0xFF800000 : f32
    %62 = vector.broadcast %cst_24 : f32 to vector<1x16xf32>
    %63 = arith.cmpf oeq, %61, %62 : vector<1x16xf32>
    %cst_25 = arith.constant 0.000000e+00 : f32
    %64 = vector.broadcast %cst_25 : f32 to vector<1x16xf32>
    %65 = arith.select %63, %64, %61 : vector<1x16xi1>, vector<1x16xf32>
    %66 = vector.broadcast %65 : vector<1x16xf32> to vector<16x16xf32>
    %67 = arith.subf %59, %66 : vector<16x16xf32>
    %68 = math.exp %67 : vector<16x16xf32>
    %cst_26 = arith.constant dense<0.000000e+00> : vector<16xf32>
    %69 = vector.multi_reduction <add>, %68, %cst_26 [0] : vector<16x16xf32> to vector<16xf32>
    %70 = vector.shape_cast %69 : vector<16xf32> to vector<1x16xf32>
    %71 = math.log %70 : vector<1x16xf32>
    %72 = arith.addf %71, %61 : vector<1x16xf32>
    %73 = vector.broadcast %72 : vector<1x16xf32> to vector<16x16xf32>
    %74 = arith.subf %59, %73 : vector<16x16xf32>
    %cst_27 = arith.constant dense<0xFF800000> : vector<16xf32>
    %75 = vector.multi_reduction <maximumf>, %74, %cst_27 [1] : vector<16x16xf32> to vector<16xf32>
    %76 = vector.shape_cast %75 : vector<16xf32> to vector<16x1xf32>
    %cst_28 = arith.constant 0xFF800000 : f32
    %77 = vector.broadcast %cst_28 : f32 to vector<16x1xf32>
    %78 = arith.cmpf oeq, %76, %77 : vector<16x1xf32>
    %cst_29 = arith.constant 0.000000e+00 : f32
    %79 = vector.broadcast %cst_29 : f32 to vector<16x1xf32>
    %80 = arith.select %78, %79, %76 : vector<16x1xi1>, vector<16x1xf32>
    %81 = vector.broadcast %80 : vector<16x1xf32> to vector<16x16xf32>
    %82 = arith.subf %74, %81 : vector<16x16xf32>
    %83 = math.exp %82 : vector<16x16xf32>
    %cst_30 = arith.constant dense<0.000000e+00> : vector<16xf32>
    %84 = vector.multi_reduction <add>, %83, %cst_30 [1] : vector<16x16xf32> to vector<16xf32>
    %85 = vector.shape_cast %84 : vector<16xf32> to vector<16x1xf32>
    %86 = math.log %85 : vector<16x1xf32>
    %87 = arith.addf %86, %76 : vector<16x1xf32>
    %88 = vector.broadcast %87 : vector<16x1xf32> to vector<16x16xf32>
    %89 = arith.subf %74, %88 : vector<16x16xf32>
    %cst_31 = arith.constant dense<0xFF800000> : vector<16xf32>
    %90 = vector.multi_reduction <maximumf>, %89, %cst_31 [0] : vector<16x16xf32> to vector<16xf32>
    %91 = vector.shape_cast %90 : vector<16xf32> to vector<1x16xf32>
    %cst_32 = arith.constant 0xFF800000 : f32
    %92 = vector.broadcast %cst_32 : f32 to vector<1x16xf32>
    %93 = arith.cmpf oeq, %91, %92 : vector<1x16xf32>
    %cst_33 = arith.constant 0.000000e+00 : f32
    %94 = vector.broadcast %cst_33 : f32 to vector<1x16xf32>
    %95 = arith.select %93, %94, %91 : vector<1x16xi1>, vector<1x16xf32>
    %96 = vector.broadcast %95 : vector<1x16xf32> to vector<16x16xf32>
    %97 = arith.subf %89, %96 : vector<16x16xf32>
    %98 = math.exp %97 : vector<16x16xf32>
    %cst_34 = arith.constant dense<0.000000e+00> : vector<16xf32>
    %99 = vector.multi_reduction <add>, %98, %cst_34 [0] : vector<16x16xf32> to vector<16xf32>
    %100 = vector.shape_cast %99 : vector<16xf32> to vector<1x16xf32>
    %101 = math.log %100 : vector<1x16xf32>
    %102 = arith.addf %101, %91 : vector<1x16xf32>
    %103 = vector.broadcast %102 : vector<1x16xf32> to vector<16x16xf32>
    %104 = arith.subf %89, %103 : vector<16x16xf32>
    %cst_35 = arith.constant dense<0xFF800000> : vector<16xf32>
    %105 = vector.multi_reduction <maximumf>, %104, %cst_35 [1] : vector<16x16xf32> to vector<16xf32>
    %106 = vector.shape_cast %105 : vector<16xf32> to vector<16x1xf32>
    %cst_36 = arith.constant 0xFF800000 : f32
    %107 = vector.broadcast %cst_36 : f32 to vector<16x1xf32>
    %108 = arith.cmpf oeq, %106, %107 : vector<16x1xf32>
    %cst_37 = arith.constant 0.000000e+00 : f32
    %109 = vector.broadcast %cst_37 : f32 to vector<16x1xf32>
    %110 = arith.select %108, %109, %106 : vector<16x1xi1>, vector<16x1xf32>
    %111 = vector.broadcast %110 : vector<16x1xf32> to vector<16x16xf32>
    %112 = arith.subf %104, %111 : vector<16x16xf32>
    %113 = math.exp %112 : vector<16x16xf32>
    %cst_38 = arith.constant dense<0.000000e+00> : vector<16xf32>
    %114 = vector.multi_reduction <add>, %113, %cst_38 [1] : vector<16x16xf32> to vector<16xf32>
    %115 = vector.shape_cast %114 : vector<16xf32> to vector<16x1xf32>
    %116 = math.log %115 : vector<16x1xf32>
    %117 = arith.addf %116, %106 : vector<16x1xf32>
    %118 = vector.broadcast %117 : vector<16x1xf32> to vector<16x16xf32>
    %119 = arith.subf %104, %118 : vector<16x16xf32>
    %cst_39 = arith.constant dense<0xFF800000> : vector<16xf32>
    %120 = vector.multi_reduction <maximumf>, %119, %cst_39 [0] : vector<16x16xf32> to vector<16xf32>
    %121 = vector.shape_cast %120 : vector<16xf32> to vector<1x16xf32>
    %cst_40 = arith.constant 0xFF800000 : f32
    %122 = vector.broadcast %cst_40 : f32 to vector<1x16xf32>
    %123 = arith.cmpf oeq, %121, %122 : vector<1x16xf32>
    %cst_41 = arith.constant 0.000000e+00 : f32
    %124 = vector.broadcast %cst_41 : f32 to vector<1x16xf32>
    %125 = arith.select %123, %124, %121 : vector<1x16xi1>, vector<1x16xf32>
    %126 = vector.broadcast %125 : vector<1x16xf32> to vector<16x16xf32>
    %127 = arith.subf %119, %126 : vector<16x16xf32>
    %128 = math.exp %127 : vector<16x16xf32>
    %cst_42 = arith.constant dense<0.000000e+00> : vector<16xf32>
    %129 = vector.multi_reduction <add>, %128, %cst_42 [0] : vector<16x16xf32> to vector<16xf32>
    %130 = vector.shape_cast %129 : vector<16xf32> to vector<1x16xf32>
    %131 = math.log %130 : vector<1x16xf32>
    %132 = arith.addf %131, %121 : vector<1x16xf32>
    %133 = vector.broadcast %132 : vector<1x16xf32> to vector<16x16xf32>
    %134 = arith.subf %119, %133 : vector<16x16xf32>
    %135 = math.exp %134 : vector<16x16xf32>
    %c0_43 = arith.constant 0 : index
    %c0_44 = arith.constant 0 : index
    %c0_45 = arith.constant 0 : index
    %c0_46 = arith.constant 0 : index
    %136 = vector.load %arg5[%c0_43, %c0_44, %c0_45, %c0_46] : memref<1x16x16x4xf32, #tpu.memory_space<vmem>>, vector<1x16x16x4xf32>
    %137 = vector.shape_cast %136 : vector<1x16x16x4xf32> to vector<16x16x4xf32>
    %cst_47 = arith.constant dense<0.000000e+00> : vector<16x16x4xf32>
    %138 = tpu.matmul %135, %137, %cst_47 {dimension_numbers = #tpu.dot_dimension_numbers<[0], [0], [1], [1, 2], [0, 1, 1, 1, 1, 2], [], []>} : vector<16x16xf32>, vector<16x16x4xf32>, vector<16x16x4xf32> -> vector<16x16x4xf32>
    %c0_48 = arith.constant 0 : index
    %c0_49 = arith.constant 0 : index
    %c0_50 = arith.constant 0 : index
    %c0_51 = arith.constant 0 : index
    %139 = vector.load %arg6[%c0_48, %c0_49, %c0_50, %c0_51] : memref<1x16x16x4xf32, #tpu.memory_space<vmem>>, vector<1x16x16x4xf32>
    %140 = vector.shape_cast %139 : vector<1x16x16x4xf32> to vector<16x16x4xf32>
    %cst_52 = arith.constant dense<0.000000e+00> : vector<16x16x4xf32>
    %141 = tpu.matmul %135, %140, %cst_52 {dimension_numbers = #tpu.dot_dimension_numbers<[0], [0], [1], [1, 2], [0, 1, 1, 1, 1, 2], [], []>} : vector<16x16xf32>, vector<16x16x4xf32>, vector<16x16x4xf32> -> vector<16x16x4xf32>
    %c0_53 = arith.constant 0 : index
    %c0_54 = arith.constant 0 : index
    %c0_55 = arith.constant 0 : index
    %c0_56 = arith.constant 0 : index
    %142 = vector.load %arg4[%c0_53, %c0_54, %c0_55, %c0_56] : memref<1x16x4x16xf32, #tpu.memory_space<vmem>>, vector<1x16x4x16xf32>
    %143 = vector.shape_cast %142 : vector<1x16x4x16xf32> to vector<16x4x16xf32>
    %cst_57 = arith.constant dense<0.000000e+00> : vector<16x4x4xf32>
    %144 = tpu.matmul %143, %138, %cst_57 {dimension_numbers = #tpu.dot_dimension_numbers<[2], [1], [1], [2], [0, 0, 0, 1, 1, 2], [0], [0]>} : vector<16x4x16xf32>, vector<16x16x4xf32>, vector<16x4x4xf32> -> vector<16x4x4xf32>
    %cst_58 = arith.constant 2.000000e+00 : f32
    %145 = vector.broadcast %cst_58 : f32 to vector<16x4x4xf32>
    %146 = arith.mulf %144, %145 : vector<16x4x4xf32>
    %cst_59 = arith.constant dense<0xFF800000> : vector<16x4xf32>
    %147 = vector.multi_reduction <maximumf>, %146, %cst_59 [2] : vector<16x4x4xf32> to vector<16x4xf32>
    %148 = vector.shape_cast %147 : vector<16x4xf32> to vector<16x4x1xf32>
    %149 = vector.broadcast %148 : vector<16x4x1xf32> to vector<16x4x4xf32>
    %150 = arith.subf %146, %149 : vector<16x4x4xf32>
    %151 = math.exp %150 : vector<16x4x4xf32>
    %cst_60 = arith.constant dense<0.000000e+00> : vector<16x4xf32>
    %152 = vector.multi_reduction <add>, %151, %cst_60 [2] : vector<16x4x4xf32> to vector<16x4xf32>
    %153 = vector.shape_cast %152 : vector<16x4xf32> to vector<16x4x1xf32>
    %154 = vector.broadcast %153 : vector<16x4x1xf32> to vector<16x4x4xf32>
    %155 = arith.divf %151, %154 : vector<16x4x4xf32>
    %cst_61 = arith.constant dense<0.000000e+00> : vector<16x4x16xf32>
    %156 = tpu.matmul %155, %141, %cst_61 {dimension_numbers = #tpu.dot_dimension_numbers<[2], [2], [1], [1], [0, 0, 0, 1, 1, 1], [0], [0]>} : vector<16x4x4xf32>, vector<16x16x4xf32>, vector<16x4x16xf32> -> vector<16x4x16xf32>
    %cst_62 = arith.constant dense<0.000000e+00> : vector<16x4x16xf32>
    %157 = tpu.matmul %135, %156, %cst_62 {dimension_numbers = #tpu.dot_dimension_numbers<[1], [0], [0], [1, 2], [0, 0, 1, 1, 1, 2], [], []>} : vector<16x16xf32>, vector<16x4x16xf32>, vector<16x4x16xf32> -> vector<16x4x16xf32>
    %c0_63 = arith.constant 0 : index
    %c0_64 = arith.constant 0 : index
    %c0_65 = arith.constant 0 : index
    %c0_66 = arith.constant 0 : index
    %158 = vector.load %arg7[%c0_63, %c0_64, %c0_65, %c0_66] : memref<1x16x4x16xf32, #tpu.memory_space<vmem>>, vector<1x16x4x16xf32>
    %159 = vector.shape_cast %158 : vector<1x16x4x16xf32> to vector<16x4x16xf32>
    %160 = vector.shape_cast %157 : vector<16x4x16xf32> to vector<1x16x4x16xf32>
    tpu.vector_store %arg7[%c0_63, %c0_64, %c0_65, %c0_66], %160 {strides = array<i32>} : memref<1x16x4x16xf32, #tpu.memory_space<vmem>>, vector<1x16x4x16xf32>,
    return
  }
  func.func @transform_0(%arg0: i32) -> (i32, i32, i32) {
    %c0_i32 = arith.constant 0 : i32
    %c0_i32_0 = arith.constant 0 : i32
    %c0_i32_1 = arith.constant 0 : i32
    return %arg0, %c0_i32, %c0_i32_0 : i32, i32, i32
  }
  func.func @transform_1(%arg0: i32) -> (i32, i32, i32) {
    %c0_i32 = arith.constant 0 : i32
    %c0_i32_0 = arith.constant 0 : i32
    %c0_i32_1 = arith.constant 0 : i32
    return %arg0, %c0_i32, %c0_i32_0 : i32, i32, i32
  }
  func.func @transform_2(%arg0: i32) -> (i32, i32, i32) {
    %c0_i32 = arith.constant 0 : i32
    %c0_i32_0 = arith.constant 0 : i32
    %c0_i32_1 = arith.constant 0 : i32
    return %arg0, %c0_i32, %c0_i32_0 : i32, i32, i32
  }
  func.func @transform_3(%arg0: i32) -> (i32, i32, i32, i32) {
    %c0_i32 = arith.constant 0 : i32
    %c0_i32_0 = arith.constant 0 : i32
    %c0_i32_1 = arith.constant 0 : i32
    %c0_i32_2 = arith.constant 0 : i32
    return %arg0, %c0_i32, %c0_i32_0, %c0_i32_1 : i32, i32, i32, i32
  }
  func.func @transform_4(%arg0: i32) -> (i32, i32, i32, i32) {
    %c0_i32 = arith.constant 0 : i32
    %c0_i32_0 = arith.constant 0 : i32
    %c0_i32_1 = arith.constant 0 : i32
    %c0_i32_2 = arith.constant 0 : i32
    return %arg0, %c0_i32, %c0_i32_0, %c0_i32_1 : i32, i32, i32, i32
  }
  func.func @transform_5(%arg0: i32) -> (i32, i32, i32, i32) {
    %c0_i32 = arith.constant 0 : i32
    %c0_i32_0 = arith.constant 0 : i32
    %c0_i32_1 = arith.constant 0 : i32
    %c0_i32_2 = arith.constant 0 : i32
    return %arg0, %c0_i32, %c0_i32_0, %c0_i32_1 : i32, i32, i32, i32
  }
  func.func @transform_6(%arg0: i32) -> (i32, i32, i32, i32) {
    %c0_i32 = arith.constant 0 : i32
    %c0_i32_0 = arith.constant 0 : i32
    %c0_i32_1 = arith.constant 0 : i32
    %c0_i32_2 = arith.constant 0 : i32
    return %arg0, %c0_i32, %c0_i32_0, %c0_i32_1 : i32, i32, i32, i32
  }
}

</mosaic_0001>

<llo_original>
// kernel: sparse_cut_attention.1
$region0: #{sparse_cut_attention.1}
  #allocation0 [shape = 'u32[]', space=smem, size = 0x4, offset = 0x4, fixed_abs, tag = 'smem constant byte address 0x4 - core index']
  #allocation1 [shape = 'u32[144,128]{1,0:T(1,128)}', space=vmem, size = 0x12000, scoped, tag = 'internal scratch']
  %s0 = inlined_call_operand.vmem [shape: f32[2,4,16], index: 0, kind: input, shape index: {}]
  %s1 = inlined_call_operand.vmem [shape: f32[2,16,4], index: 1, kind: input, shape index: {}]
  %s2 = inlined_call_operand.vmem [shape: f32[2,16,16], index: 2, kind: input, shape index: {}]
  %s3 = inlined_call_operand.vmem [shape: f32[2,16,4,16], index: 3, kind: input, shape index: {}]
  %s4 = inlined_call_operand.vmem [shape: f32[2,16,16,4], index: 4, kind: input, shape index: {}]
  %s5 = inlined_call_operand.vmem [shape: f32[2,16,16,4], index: 5, kind: input, shape index: {}]
  %s6 = inlined_call_operand.vmem [shape: f32[2,16,4,16], index: 6, kind: output, shape index: {}]
  %s7 = sld [smem:[#allocation0]]
  $region57: #{sparse_cut_attention.1} parent=0
    _
  %s9 = ssub.s32 1, %s7
  %s10 = scalar_select 0, %s9, %s7
  loop: start=0, step=1, limit=4
  $region2: #{sparse_cut_attention.1} parent=0 // loop_pre_header
    _
  $region3: #{sparse_cut_attention.1} parent=0 // loop_header
    %s12 = sphi 0, %s16
    %p13 = scmp.ge.s32.totalorder %s12, 4
    %s22 = sphi 0, %s24
    %s25 = sphi 0, %s22
    %s26 = sphi 0, %s25
    %s42 = sphi 0, %s26
    %s48 = sphi 0, %s50
    %s51 = sphi 0, %s48
    %s52 = sphi 0, %s51
    %s68 = sphi 0, %s52
    %s74 = sphi 0, %s76
    %s77 = sphi 0, %s74
    %s78 = sphi 0, %s77
    %s94 = sphi 0, %s78
    %s100 = sphi 0, %s102
    %s103 = sphi 0, %s100
    %s104 = sphi 0, %s103
    %s120 = sphi 0, %s104
    %s126 = sphi 0, %s128
    %s129 = sphi 0, %s126
    %s130 = sphi 0, %s129
    %s146 = sphi 0, %s130
    %s152 = sphi 0, %s154
    %s155 = sphi 0, %s152
    %s156 = sphi 0, %s155
    %s172 = sphi 0, %s156
    %s178 = sphi 0, %s180
    %s181 = sphi 0, %s178
    %s182 = sphi 0, %s181
    %s198 = sphi 0, %s182
  $region4: #{sparse_cut_attention.1} parent=0 // loop_header_branch
    %15 = sbr.rel (%p13) target = $region8
  $region5: #{sparse_cut_attention.1} parent=0 // loop_body
    %s17 = ssub.s32 %s12, 1
    %s18 = ssub.s32 %s12, 2
    %s19 = sadd.s32 %s12, 1
    %s20 = ssub.s32 %s12, %s19
    %p21 = scmp.eq.s32.totalorder %s20, 0
    %s23 = sadd.s32 %s22, 1
    %s24 = scalar_select %p21, %s22, %s23
    %p27 = pneg %p21
    %p28 = scmp.eq.s32.totalorder %s12, 1
    %p29 = por %p27, %p28
    %p30 = scmp.ne.s32.totalorder %s22, %s25
    %p31 = scmp.eq.s32.totalorder %s12, 0
    %p32 = por %p30, %p31
    %p33 = scmp.ne.s32.totalorder %s22, %s25
    %p34 = scmp.eq.s32.totalorder %s17, 1
    %p35 = por %p33, %p34
    %p36 = scmp.ne.s32.totalorder %s25, %s26
    %p37 = scmp.eq.s32.totalorder %s17, 0
    %p38 = por %p36, %p37
    %p39 = scmp.ne.s32.totalorder %s25, %s26
    %p40 = scmp.eq.s32.totalorder %s18, 1
    %p41 = por %p39, %p40
    %p43 = scmp.ne.s32.totalorder %s26, %s42
    %p44 = scmp.eq.s32.totalorder %s18, 0
    %p45 = por %p43, %p44
    %s46 = ssub.s32 %s12, %s19
    %p47 = scmp.eq.s32.totalorder %s46, 0
    %s49 = sadd.s32 %s48, 1
    %s50 = scalar_select %p47, %s48, %s49
    %p53 = pneg %p47
    %p54 = scmp.eq.s32.totalorder %s12, 1
    %p55 = por %p53, %p54
    %p56 = scmp.ne.s32.totalorder %s48, %s51
    %p57 = scmp.eq.s32.totalorder %s12, 0
    %p58 = por %p56, %p57
    %p59 = scmp.ne.s32.totalorder %s48, %s51
    %p60 = scmp.eq.s32.totalorder %s17, 1
    %p61 = por %p59, %p60
    %p62 = scmp.ne.s32.totalorder %s51, %s52
    %p63 = scmp.eq.s32.totalorder %s17, 0
    %p64 = por %p62, %p63
    %p65 = scmp.ne.s32.totalorder %s51, %s52
    %p66 = scmp.eq.s32.totalorder %s18, 1
    %p67 = por %p65, %p66
    %p69 = scmp.ne.s32.totalorder %s52, %s68
    %p70 = scmp.eq.s32.totalorder %s18, 0
    %p71 = por %p69, %p70
    %s72 = ssub.s32 %s12, %s19
    %p73 = scmp.eq.s32.totalorder %s72, 0
    %s75 = sadd.s32 %s74, 1
    %s76 = scalar_select %p73, %s74, %s75
    %p79 = pneg %p73
    %p80 = scmp.eq.s32.totalorder %s12, 1
    %p81 = por %p79, %p80
    %p82 = scmp.ne.s32.totalorder %s74, %s77
    %p83 = scmp.eq.s32.totalorder %s12, 0
    %p84 = por %p82, %p83
    %p85 = scmp.ne.s32.totalorder %s74, %s77
    %p86 = scmp.eq.s32.totalorder %s17, 1
    %p87 = por %p85, %p86
    %p88 = scmp.ne.s32.totalorder %s77, %s78
    %p89 = scmp.eq.s32.totalorder %s17, 0
    %p90 = por %p88, %p89
    %p91 = scmp.ne.s32.totalorder %s77, %s78
    %p92 = scmp.eq.s32.totalorder %s18, 1
    %p93 = por %p91, %p92
    %p95 = scmp.ne.s32.totalorder %s78, %s94
    %p96 = scmp.eq.s32.totalorder %s18, 0
    %p97 = por %p95, %p96
    %s98 = ssub.s32 %s12, %s19
    %p99 = scmp.eq.s32.totalorder %s98, 0
    %s101 = sadd.s32 %s100, 1
    %s102 = scalar_select %p99, %s100, %s101
    %p105 = pneg %p99
    %p106 = scmp.eq.s32.totalorder %s12, 1
    %p107 = por %p105, %p106
    %p108 = scmp.ne.s32.totalorder %s100, %s103
    %p109 = scmp.eq.s32.totalorder %s12, 0
    %p110 = por %p108, %p109
    %p111 = scmp.ne.s32.totalorder %s100, %s103
    %p112 = scmp.eq.s32.totalorder %s17, 1
    %p113 = por %p111, %p112
    %p114 = scmp.ne.s32.totalorder %s103, %s104
    %p115 = scmp.eq.s32.totalorder %s17, 0
    %p116 = por %p114, %p115
    %p117 = scmp.ne.s32.totalorder %s103, %s104
    %p118 = scmp.eq.s32.totalorder %s18, 1
    %p119 = por %p117, %p118
    %p121 = scmp.ne.s32.totalorder %s104, %s120
    %p122 = scmp.eq.s32.totalorder %s18, 0
    %p123 = por %p121, %p122
    %s124 = ssub.s32 %s12, %s19
    %p125 = scmp.eq.s32.totalorder %s124, 0
    %s127 = sadd.s32 %s126, 1
    %s128 = scalar_select %p125, %s126, %s127
    %p131 = pneg %p125
    %p132 = scmp.eq.s32.totalorder %s12, 1
    %p133 = por %p131, %p132
    %p134 = scmp.ne.s32.totalorder %s126, %s129
    %p135 = scmp.eq.s32.totalorder %s12, 0
    %p136 = por %p134, %p135
    %p137 = scmp.ne.s32.totalorder %s126, %s129
    %p138 = scmp.eq.s32.totalorder %s17, 1
    %p139 = por %p137, %p138
    %p140 = scmp.ne.s32.totalorder %s129, %s130
    %p141 = scmp.eq.s32.totalorder %s17, 0
    %p142 = por %p140, %p141
    %p143 = scmp.ne.s32.totalorder %s129, %s130
    %p144 = scmp.eq.s32.totalorder %s18, 1
    %p145 = por %p143, %p144
    %p147 = scmp.ne.s32.totalorder %s130, %s146
    %p148 = scmp.eq.s32.totalorder %s18, 0
    %p149 = por %p147, %p148
    %s150 = ssub.s32 %s12, %s19
    %p151 = scmp.eq.s32.totalorder %s150, 0
    %s153 = sadd.s32 %s152, 1
    %s154 = scalar_select %p151, %s152, %s153
    %p157 = pneg %p151
    %p158 = scmp.eq.s32.totalorder %s12, 1
    %p159 = por %p157, %p158
    %p160 = scmp.ne.s32.totalorder %s152, %s155
    %p161 = scmp.eq.s32.totalorder %s12, 0
    %p162 = por %p160, %p161
    %p163 = scmp.ne.s32.totalorder %s152, %s155
    %p164 = scmp.eq.s32.totalorder %s17, 1
    %p165 = por %p163, %p164
    %p166 = scmp.ne.s32.totalorder %s155, %s156
    %p167 = scmp.eq.s32.totalorder %s17, 0
    %p168 = por %p166, %p167
    %p169 = scmp.ne.s32.totalorder %s155, %s156
    %p170 = scmp.eq.s32.totalorder %s18, 1
    %p171 = por %p169, %p170
    %p173 = scmp.ne.s32.totalorder %s156, %s172
    %p174 = scmp.eq.s32.totalorder %s18, 0
    %p175 = por %p173, %p174
    %s176 = ssub.s32 %s12, %s19
    %p177 = scmp.eq.s32.totalorder %s176, 0
    %s179 = sadd.s32 %s178, 1
    %s180 = scalar_select %p177, %s178, %s179
    %p183 = pneg %p177
    %p184 = scmp.eq.s32.totalorder %s12, 1
    %p185 = por %p183, %p184
    %p186 = scmp.ne.s32.totalorder %s178, %s181
    %p187 = scmp.eq.s32.totalorder %s12, 0
    %p188 = por %p186, %p187
    %p189 = scmp.ne.s32.totalorder %s178, %s181
    %p190 = scmp.eq.s32.totalorder %s17, 1
    %p191 = por %p189, %p190
    %p192 = scmp.ne.s32.totalorder %s181, %s182
    %p193 = scmp.eq.s32.totalorder %s17, 0
    %p194 = por %p192, %p193
    %p195 = scmp.ne.s32.totalorder %s181, %s182
    %p196 = scmp.eq.s32.totalorder %s18, 1
    %p197 = por %p195, %p196
    %p199 = scmp.ne.s32.totalorder %s182, %s198
    %p200 = scmp.eq.s32.totalorder %s18, 0
    %p201 = por %p199, %p200
    %p202 = scmp.le.s32.totalorder 1, %s12
    %p203 = scmp.lt.s32.totalorder %s12, 3
    %p204 = pnand %p202, %p203
    %p205 = pneg %p204
    // Predicated region
    $region9: #{sparse_cut_attention.1} parent=5 // pred_check
      _
    $region10: #{sparse_cut_attention.1} parent=5 // pred_check_branch
      %207 = sbr.rel (%p204) target = $region12
    $region11: #{sparse_cut_attention.1} parent=5 // pred_region
      %s208 = ssub.s32 %s12, 1
    $region12: #{sparse_cut_attention.1} parent=5 // pred_fallthru
      _
    %p209 = scmp.lt.s32.totalorder %s12, 2
    // Predicated region
    $region13: #{sparse_cut_attention.1} parent=5 // pred_check
      %p210 = pneg %p209
    $region14: #{sparse_cut_attention.1} parent=5 // pred_check_branch
      %212 = sbr.rel (%p210) target = $region16
    $region15: #{sparse_cut_attention.1} parent=5 // pred_region
      // Predicated region
      $region17: #{sparse_cut_attention.1} parent=15 // pred_check
        %p213 = pneg %p32
      $region18: #{sparse_cut_attention.1} parent=15 // pred_check_branch
        %215 = sbr.rel (%p213) target = $region20
      $region19: #{sparse_cut_attention.1} parent=15 // pred_region
        %p216 = scmp.lt.s32.totalorder %s12, 1
        %s217 = scalar_select %p216, %s12, 1
        %s218 = smul.addr %s217, 4
        %s219 = scalar_lea.vmem %s0, %s218
      $region20: #{sparse_cut_attention.1} parent=15 // pred_fallthru
        _
      // Predicated region
      $region21: #{sparse_cut_attention.1} parent=15 // pred_check
        %p220 = pneg %p58
      $region22: #{sparse_cut_attention.1} parent=15 // pred_check_branch
        %222 = sbr.rel (%p220) target = $region24
      $region23: #{sparse_cut_attention.1} parent=15 // pred_region
        %p223 = scmp.lt.s32.totalorder %s12, 1
        %s224 = scalar_select %p223, %s12, 1
        %s225 = smul.addr %s224, 2
        %s226 = smul.addr %s225, 8
        %s227 = scalar_lea.vmem %s1, %s226
      $region24: #{sparse_cut_attention.1} parent=15 // pred_fallthru
        _
      // Predicated region
      $region25: #{sparse_cut_attention.1} parent=15 // pred_check
        %p228 = pneg %p84
      $region26: #{sparse_cut_attention.1} parent=15 // pred_check_branch
        %230 = sbr.rel (%p228) target = $region28
      $region27: #{sparse_cut_attention.1} parent=15 // pred_region
        %p231 = scmp.lt.s32.totalorder %s12, 1
        %s232 = scalar_select %p231, %s12, 1
        %s233 = smul.addr %s232, 2
        %s234 = smul.addr %s233, 8
        %s235 = scalar_lea.vmem %s2, %s234
      $region28: #{sparse_cut_attention.1} parent=15 // pred_fallthru
        _
      // Predicated region
      $region29: #{sparse_cut_attention.1} parent=15 // pred_check
        %p236 = pneg %p110
      $region30: #{sparse_cut_attention.1} parent=15 // pred_check_branch
        %238 = sbr.rel (%p236) target = $region32
      $region31: #{sparse_cut_attention.1} parent=15 // pred_region
        %p239 = scmp.lt.s32.totalorder %s12, 1
        %s240 = scalar_select %p239, %s12, 1
        %s241 = smul.addr %s240, 16
        %s242 = smul.addr %s241, 4
        %s243 = scalar_lea.vmem %s3, %s242
      $region32: #{sparse_cut_attention.1} parent=15 // pred_fallthru
        _
      // Predicated region
      $region33: #{sparse_cut_attention.1} parent=15 // pred_check
        %p244 = pneg %p136
      $region34: #{sparse_cut_attention.1} parent=15 // pred_check_branch
        %246 = sbr.rel (%p244) target = $region36
      $region35: #{sparse_cut_attention.1} parent=15 // pred_region
        %p247 = scmp.lt.s32.totalorder %s12, 1
        %s248 = scalar_select %p247, %s12, 1
        %s249 = smul.addr %s248, 32
        %s250 = smul.addr %s249, 8
        %s251 = scalar_lea.vmem %s4, %s250
      $region36: #{sparse_cut_attention.1} parent=15 // pred_fallthru
        _
      // Predicated region
      $region37: #{sparse_cut_attention.1} parent=15 // pred_check
        %p252 = pneg %p162
      $region38: #{sparse_cut_attention.1} parent=15 // pred_check_branch
        %254 = sbr.rel (%p252) target = $region40
      $region39: #{sparse_cut_attention.1} parent=15 // pred_region
        %p255 = scmp.lt.s32.totalorder %s12, 1
        %s256 = scalar_select %p255, %s12, 1
        %s257 = smul.addr %s256, 32
        %s258 = smul.addr %s257, 8
        %s259 = scalar_lea.vmem %s5, %s258
      $region40: #{sparse_cut_attention.1} parent=15 // pred_fallthru
        _
    $region16: #{sparse_cut_attention.1} parent=5 // pred_fallthru
      _
    %p260 = scmp.le.s32.totalorder 1, %s12
    %p261 = scmp.lt.s32.totalorder %s12, 3
    %p262 = pnand %p260, %p261
    %p263 = pneg %p262
    // Predicated region
    $region41: #{sparse_cut_attention.1} parent=5 // pred_check
      _
    $region42: #{sparse_cut_attention.1} parent=5 // pred_check_branch
      %265 = sbr.rel (%p262) target = $region44
    $region43: #{sparse_cut_attention.1} parent=5 // pred_region
      %s266 = ssub.s32 %s12, 1
      %p267 = scmp.lt.s32.totalorder %s17, 1
      %s268 = scalar_select %p267, %s17, 1
      %s269 = smul.addr %s268, 4
      %s270 = scalar_lea.vmem %s0, %s269
      %p271 = pneg %p38
      %p272 = pneg %p35
      %p273 = scmp.lt.s32.totalorder %s17, 1
      %s274 = scalar_select %p273, %s17, 1
      %s275 = smul.addr %s274, 2
      %s276 = smul.addr %s275, 8
      %s277 = scalar_lea.vmem %s1, %s276
      %p278 = pneg %p64
      %p279 = pneg %p61
      %p280 = scmp.lt.s32.totalorder %s17, 1
      %s281 = scalar_select %p280, %s17, 1
      %s282 = smul.addr %s281, 2
      %s283 = smul.addr %s282, 8
      %s284 = scalar_lea.vmem %s2, %s283
      %p285 = pneg %p90
      %p286 = pneg %p87
      %p287 = scmp.lt.s32.totalorder %s17, 1
      %s288 = scalar_select %p287, %s17, 1
      %s289 = smul.addr %s288, 16
      %s290 = smul.addr %s289, 4
      %s291 = scalar_lea.vmem %s3, %s290
      %p292 = pneg %p116
      %p293 = pneg %p113
      %p294 = scmp.lt.s32.totalorder %s17, 1
      %s295 = scalar_select %p294, %s17, 1
      %s296 = smul.addr %s295, 32
      %s297 = smul.addr %s296, 8
      %s298 = scalar_lea.vmem %s4, %s297
      %p299 = pneg %p142
      %p300 = pneg %p139
      %p301 = scmp.lt.s32.totalorder %s17, 1
      %s302 = scalar_select %p301, %s17, 1
      %s303 = smul.addr %s302, 32
      %s304 = smul.addr %s303, 8
      %s305 = scalar_lea.vmem %s5, %s304
      %p306 = pneg %p168
      %p307 = pneg %p165
      %p308 = pneg %p194
      %p309 = pneg %p191
      %p310 = scmp.lt.s32.totalorder %s17, 1
      %s311 = scalar_select %p310, %s17, 1
      %s312 = smul.addr %s311, 16
      %s313 = smul.addr %s312, 4
      %s314 = scalar_lea.vmem %s6, %s313
      %p315 = scmp.lt.s32.totalorder %s17, 1
      %s316 = scalar_select %p315, %s17, 1
      %s317 = smul.addr %s316, 4
      %s318 = scalar_lea.vmem %s0, %s317
      %p319 = scmp.lt.s32.totalorder %s17, 1
      %s320 = scalar_select %p319, %s17, 1
      %s321 = smul.addr %s320, 2
      %s322 = smul.addr %s321, 8
      %s323 = scalar_lea.vmem %s1, %s322
      %p324 = scmp.lt.s32.totalorder %s17, 1
      %s325 = scalar_select %p324, %s17, 1
      %s326 = smul.addr %s325, 2
      %s327 = smul.addr %s326, 8
      %s328 = scalar_lea.vmem %s2, %s327
      %p329 = scmp.lt.s32.totalorder %s17, 1
      %s330 = scalar_select %p329, %s17, 1
      %s331 = smul.addr %s330, 16
      %s332 = smul.addr %s331, 4
      %s333 = scalar_lea.vmem %s3, %s332
      %p334 = scmp.lt.s32.totalorder %s17, 1
      %s335 = scalar_select %p334, %s17, 1
      %s336 = smul.addr %s335, 32
      %s337 = smul.addr %s336, 8
      %s338 = scalar_lea.vmem %s4, %s337
      %p339 = scmp.lt.s32.totalorder %s17, 1
      %s340 = scalar_select %p339, %s17, 1
      %s341 = smul.addr %s340, 32
      %s342 = smul.addr %s341, 8
      %s343 = scalar_lea.vmem %s5, %s342
      %p344 = scmp.lt.s32.totalorder %s17, 1
      %s345 = scalar_select %p344, %s17, 1
      %s346 = smul.addr %s345, 16
      %s347 = smul.addr %s346, 4
      %s348 = scalar_lea.vmem %s6, %s347
      %v349 = vld [vmem:[%s318] sm:$0xf]
      %v350 = vld [vmem:[%s323] sm:$0xff]
      %v351 = vld [vmem:[%s323 + $0x8] sm:$0xff]
      %352 = vxpose.xlu0.b32.start [1/16] %v349, 128
      %353 = vxpose.xlu0.b32.cont [2/16] 0.0, 128
      %354 = vxpose.xlu0.b32.cont [3/16] 0.0, 128
      %355 = vxpose.xlu0.b32.cont [4/16] 0.0, 128
      %356 = vxpose.xlu0.b32.cont [5/16] 0.0, 128
      %357 = vxpose.xlu0.b32.cont [6/16] 0.0, 128
      %358 = vxpose.xlu0.b32.cont [7/16] 0.0, 128
      %359 = vxpose.xlu0.b32.cont [8/16] 0.0, 128
      %360 = vxpose.xlu0.b32.cont [9/16] 0.0, 128
      %361 = vxpose.xlu0.b32.cont [10/16] 0.0, 128
      %362 = vxpose.xlu0.b32.cont [11/16] 0.0, 128
      %363 = vxpose.xlu0.b32.cont [12/16] 0.0, 128
      %364 = vxpose.xlu0.b32.cont [13/16] 0.0, 128
      %365 = vxpose.xlu0.b32.cont [14/16] 0.0, 128
      %366 = vxpose.xlu0.b32.cont [15/16] 0.0, 128
      %367 = vxpose.xlu0.b32.end [16/16] 0.0, 128
      %v368 = vpop.trf.xlu0
      %v369 = vpop.trf.xlu0
      %v370 = vpop.trf.xlu0
      %v371 = vpop.trf.xlu0
      %v372 = vpop.trf.xlu0
      %v373 = vpop.trf.xlu0
      %v374 = vpop.trf.xlu0
      %v375 = vpop.trf.xlu0
      %v376 = vpop.trf.xlu0
      %v377 = vpop.trf.xlu0
      %v378 = vpop.trf.xlu0
      %v379 = vpop.trf.xlu0
      %v380 = vpop.trf.xlu0
      %v381 = vpop.trf.xlu0
      %v382 = vpop.trf.xlu0
      %v383 = vpop.trf.xlu0
      %vm384 = vcmask 31744
      %v386 = vsel %vm384, %v368, 0
      %v389 = vsel %vm384, %v369, 0
      %v392 = vsel %vm384, %v350, 0
      %v395 = vsel %vm384, %v351, 0
      %397 = vmatprep.subr.mxu0 0.0
      %398 = vmatpush1.xpose.msra.mxu0 %v392
      %399 = vmatprep.subr.mxu0 0.0
      %400 = vmatpush1.xpose.msra.mxu0 %v395
      %401 = vmatprep.subr.mxu0 0.0
      %402 = vmatpush1.xpose.msra.mxu0 0.0
      %403 = vmatprep.subr.mxu0 0.0
      %404 = vmatpush1.xpose.msra.mxu0 0.0
      %405 = vmatprep.subr.mxu0 0.0
      %406 = vmatpush1.xpose.msra.mxu0 0.0
      %407 = vmatprep.subr.mxu0 0.0
      %408 = vmatpush1.xpose.msra.mxu0 0.0
      %409 = vmatprep.subr.mxu0 0.0
      %410 = vmatpush1.xpose.msra.mxu0 0.0
      %411 = vmatprep.subr.mxu0 0.0
      %412 = vmatpush1.xpose.msra.mxu0 0.0
      %413 = vmatprep.subr.mxu0 0.0
      %414 = vmatpush1.xpose.msra.mxu0 0.0
      %415 = vmatprep.subr.mxu0 0.0
      %416 = vmatpush1.xpose.msra.mxu0 0.0
      %417 = vmatprep.subr.mxu0 0.0
      %418 = vmatpush1.xpose.msra.mxu0 0.0
      %419 = vmatprep.subr.mxu0 0.0
      %420 = vmatpush1.xpose.msra.mxu0 0.0
      %421 = vmatprep.subr.mxu0 0.0
      %422 = vmatpush1.xpose.msra.mxu0 0.0
      %423 = vmatprep.subr.mxu0 0.0
      %424 = vmatpush1.xpose.msra.mxu0 0.0
      %425 = vmatprep.subr.mxu0 0.0
      %426 = vmatpush1.xpose.msra.mxu0 0.0
      %427 = vmatprep.subr.mxu0 0.0
      %428 = vmatpush1.xpose.msra.mxu0 0.0
      %429 = vmatprep.subr.mxu0 0.0
      %430 = vmatpush1.xpose.msra.mxu0 0.0
      %431 = vmatprep.subr.mxu0 0.0
      %432 = vmatpush1.xpose.msra.mxu0 0.0
      %433 = vmatprep.subr.mxu0 0.0
      %434 = vmatpush1.xpose.msra.mxu0 0.0
      %435 = vmatprep.subr.mxu0 0.0
      %436 = vmatpush1.xpose.msra.mxu0 0.0
      %437 = vmatprep.subr.mxu0 0.0
      %438 = vmatpush1.xpose.msra.mxu0 0.0
      %439 = vmatprep.subr.mxu0 0.0
      %440 = vmatpush1.xpose.msra.mxu0 0.0
      %441 = vmatprep.subr.mxu0 0.0
      %442 = vmatpush1.xpose.msra.mxu0 0.0
      %443 = vmatprep.subr.mxu0 0.0
      %444 = vmatpush1.xpose.msra.mxu0 0.0
      %445 = vmatprep.subr.mxu0 0.0
      %446 = vmatpush1.xpose.msra.mxu0 0.0
      %447 = vmatprep.subr.mxu0 0.0
      %448 = vmatpush1.xpose.msra.mxu0 0.0
      %449 = vmatprep.subr.mxu0 0.0
      %450 = vmatpush1.xpose.msra.mxu0 0.0
      %451 = vmatprep.subr.mxu0 0.0
      %452 = vmatpush1.xpose.msra.mxu0 0.0
      %453 = vmatprep.subr.mxu0 0.0
      %454 = vmatpush1.xpose.msra.mxu0 0.0
      %455 = vmatprep.subr.mxu0 0.0
      %456 = vmatpush1.xpose.msra.mxu0 0.0
      %457 = vmatprep.subr.mxu0 0.0
      %458 = vmatpush1.xpose.msra.mxu0 0.0
      %459 = vmatprep.subr.mxu0 0.0
      %460 = vmatpush1.xpose.msra.mxu0 0.0
      %461 = vmatprep.mubr.f32.mxu0 0.0
      %462 = vmatmul.mubr.f32.gmra.mrb[0].mxu0 %v386
      %v463 = vpop.f32.mrb[0].mxu0
      %v464 = vadd.f32 0.0, %v463
      %v465 = vpop.f32.mrb[0].mxu0
      %466 = vmatprep.mubr.f32.mxu0 0.0
      %467 = vmatmul.mubr.f32.gmra.mrb[0].mxu0 %v389
      %v468 = vpop.f32.mrb[0].mxu0
      %v469 = vadd.f32 0.0, %v468
      %v470 = vpop.f32.mrb[0].mxu0
      %471 = vdwg.mxu0
      %v472 = vmul.f32 %v464, 0.25
      %v473 = vmul.f32 %v469, 0.25
      %v474 = vmax.f32 %v472, 0.0
      %v475 = vmax.f32 %v473, 0.0
      %v476 = vlog2.pop %v474
      %v477 = vmul.f32 %v476, 0.6931472
      %v478 = vlog2.pop %v475
      %v479 = vmul.f32 %v478, 0.6931472
      %v480 = vld [vmem:[%s328] sm:$0xff]
      %v481 = vld [vmem:[%s328 + $0x8] sm:$0xff]
      %v482 = vadd.f32 %v477, %v480
      %v483 = vadd.f32 %v479, %v481
      %v484 = vmul.f32 %v482, 2.0
      %v485 = vmul.f32 %v483, 2.0
      %vm486 = vcmask 130048
      %v487 = vsel %vm486, %v484, -inf
      %488 = vmax.xlane.f32.xlu0 %v487
      %v489 = vpop.xlane.xlu0 %488
      %v490 = vsel %vm486, %v485, -inf
      %491 = vmax.xlane.f32.xlu0 %v490
      %v492 = vpop.xlane.xlu0 %491
      %vm493 = vcmp.eq.f32.partialorder %v489, -inf
      %vm494 = vcmp.eq.f32.partialorder %v492, -inf
      %v495 = vsel %vm493, 0.0, %v489
      %v496 = vsel %vm494, 0.0, %v492
      %v497 = vsub.f32 %v484, %v495
      %v498 = vsub.f32 %v485, %v496
      %v499 = vmul.f32 %v497, 1.442695
      %v500 = vpow.pop %v499
      %v501 = vmul.f32 %v498, 1.442695
      %v502 = vpow.pop %v501
      %v503 = vsel %vm486, %v500, 0.0
      %504 = vadd.xlane.f32.xlu0 %v503
      %v505 = vpop.xlane.xlu0 %504
      %v506 = vsel %vm486, %v502, 0.0
      %507 = vadd.xlane.f32.xlu0 %v506
      %v508 = vpop.xlane.xlu0 %507
      %v509 = vlog2.pop %v505
      %v510 = vmul.f32 %v509, 0.6931472
      %v511 = vlog2.pop %v508
      %v512 = vmul.f32 %v511, 0.6931472
      %v513 = vadd.f32 %v510, %v489
      %v514 = vadd.f32 %v512, %v492
      %v515 = vsub.f32 %v484, %v513
      %v516 = vsub.f32 %v485, %v514
      %v517 = vsel %vm486, %v515, -inf
      %v518 = vsel %vm486, %v516, -inf
      %v519 = vmax.f32 %v517, %v518
      %v520 = vrot.slane %v519, 4
      %v521 = vmax.f32 %v519, %v520
      %v522 = vrot.slane %v521, 2
      %v523 = vmax.f32 %v521, %v522
      %v524 = vrot.slane %v523, 1
      %v525 = vmax.f32 %v523, %v524
      %vm526 = vcmp.eq.f32.partialorder %v525, -inf
      %v527 = vsel %vm526, 0.0, %v525
      %v528 = vsub.f32 %v515, %v527
      %v529 = vsub.f32 %v516, %v527
      %v530 = vmul.f32 %v528, 1.442695
      %v531 = vpow.pop %v530
      %v532 = vmul.f32 %v529, 1.442695
      %v533 = vpow.pop %v532
      %v534 = vsel %vm486, %v531, 0.0
      %v535 = vsel %vm486, %v533, 0.0
      %v536 = vadd.f32 %v534, %v535
      %v537 = vrot.slane %v536, 4
      %v538 = vadd.f32 %v536, %v537
      %v539 = vrot.slane %v538, 2
      %v540 = vadd.f32 %v538, %v539
      %v541 = vrot.slane %v540, 1
      %v542 = vadd.f32 %v540, %v541
      %v543 = vlog2.pop %v542
      %v544 = vmul.f32 %v543, 0.6931472
      %v545 = vadd.f32 %v544, %v525
      %v546 = vsub.f32 %v515, %v545
      %v547 = vsub.f32 %v516, %v545
      %v548 = vsel %vm486, %v546, -inf
      %549 = vmax.xlane.f32.xlu0 %v548
      %v550 = vpop.xlane.xlu0 %549
      %v551 = vsel %vm486, %v547, -inf
      %552 = vmax.xlane.f32.xlu0 %v551
      %v553 = vpop.xlane.xlu0 %552
      %vm554 = vcmp.eq.f32.partialorder %v550, -inf
      %vm555 = vcmp.eq.f32.partialorder %v553, -inf
      %v556 = vsel %vm554, 0.0, %v550
      %v557 = vsel %vm555, 0.0, %v553
      %v558 = vsub.f32 %v546, %v556
      %v559 = vsub.f32 %v547, %v557
      %v560 = vmul.f32 %v558, 1.442695
      %v561 = vpow.pop %v560
      %v562 = vmul.f32 %v559, 1.442695
      %v563 = vpow.pop %v562
      %v564 = vsel %vm486, %v561, 0.0
      %565 = vadd.xlane.f32.xlu0 %v564
      %v566 = vpop.xlane.xlu0 %565
      %v567 = vsel %vm486, %v563, 0.0
      %568 = vadd.xlane.f32.xlu0 %v567
      %v569 = vpop.xlane.xlu0 %568
      %v570 = vlog2.pop %v566
      %v571 = vmul.f32 %v570, 0.6931472
      %v572 = vlog2.pop %v569
      %v573 = vmul.f32 %v572, 0.6931472
      %v574 = vadd.f32 %v571, %v550
      %v575 = vadd.f32 %v573, %v553
      %v576 = vsub.f32 %v546, %v574
      %v577 = vsub.f32 %v547, %v575
      %v578 = vsel %vm486, %v576, -inf
      %v579 = vsel %vm486, %v577, -inf
      %v580 = vmax.f32 %v578, %v579
      %v581 = vrot.slane %v580, 4
      %v582 = vmax.f32 %v580, %v581
      %v583 = vrot.slane %v582, 2
      %v584 = vmax.f32 %v582, %v583
      %v585 = vrot.slane %v584, 1
      %v586 = vmax.f32 %v584, %v585
      %vm587 = vcmp.eq.f32.partialorder %v586, -inf
      %v588 = vsel %vm587, 0.0, %v586
      %v589 = vsub.f32 %v576, %v588
      %v590 = vsub.f32 %v577, %v588
      %v591 = vmul.f32 %v589, 1.442695
      %v592 = vpow.pop %v591
      %v593 = vmul.f32 %v590, 1.442695
      %v594 = vpow.pop %v593
      %v595 = vsel %vm486, %v592, 0.0
      %v596 = vsel %vm486, %v594, 0.0
      %v597 = vadd.f32 %v595, %v596
      %v598 = vrot.slane %v597, 4
      %v599 = vadd.f32 %v597, %v598
      %v600 = vrot.slane %v599, 2
      %v601 = vadd.f32 %v599, %v600
      %v602 = vrot.slane %v601, 1
      %v603 = vadd.f32 %v601, %v602
      %v604 = vlog2.pop %v603
      %v605 = vmul.f32 %v604, 0.6931472
      %v606 = vadd.f32 %v605, %v586
      %v607 = vsub.f32 %v576, %v606
      %v608 = vsub.f32 %v577, %v606
      %v609 = vsel %vm486, %v607, -inf
      %610 = vmax.xlane.f32.xlu0 %v609
      %v611 = vpop.xlane.xlu0 %610
      %v612 = vsel %vm486, %v608, -inf
      %613 = vmax.xlane.f32.xlu0 %v612
      %v614 = vpop.xlane.xlu0 %613
      %vm615 = vcmp.eq.f32.partialorder %v611, -inf
      %vm616 = vcmp.eq.f32.partialorder %v614, -inf
      %v617 = vsel %vm615, 0.0, %v611
      %v618 = vsel %vm616, 0.0, %v614
      %v619 = vsub.f32 %v607, %v617
      %v620 = vsub.f32 %v608, %v618
      %v621 = vmul.f32 %v619, 1.442695
      %v622 = vpow.pop %v621
      %v623 = vmul.f32 %v620, 1.442695
      %v624 = vpow.pop %v623
      %v625 = vsel %vm486, %v622, 0.0
      %626 = vadd.xlane.f32.xlu0 %v625
      %v627 = vpop.xlane.xlu0 %626
      %v628 = vsel %vm486, %v624, 0.0
      %629 = vadd.xlane.f32.xlu0 %v628
      %v630 = vpop.xlane.xlu0 %629
      %v631 = vlog2.pop %v627
      %v632 = vmul.f32 %v631, 0.6931472
      %v633 = vlog2.pop %v630
      %v634 = vmul.f32 %v633, 0.6931472
      %v635 = vadd.f32 %v632, %v611
      %v636 = vadd.f32 %v634, %v614
      %v637 = vsub.f32 %v607, %v635
      %v638 = vsub.f32 %v608, %v636
      %v639 = vsel %vm486, %v637, -inf
      %v640 = vsel %vm486, %v638, -inf
      %v641 = vmax.f32 %v639, %v640
      %v642 = vrot.slane %v641, 4
      %v643 = vmax.f32 %v641, %v642
      %v644 = vrot.slane %v643, 2
      %v645 = vmax.f32 %v643, %v644
      %v646 = vrot.slane %v645, 1
      %v647 = vmax.f32 %v645, %v646
      %vm648 = vcmp.eq.f32.partialorder %v647, -inf
      %v649 = vsel %vm648, 0.0, %v647
      %v650 = vsub.f32 %v637, %v649
      %v651 = vsub.f32 %v638, %v649
      %v652 = vmul.f32 %v650, 1.442695
      %v653 = vpow.pop %v652
      %v654 = vmul.f32 %v651, 1.442695
      %v655 = vpow.pop %v654
      %v656 = vsel %vm486, %v653, 0.0
      %v657 = vsel %vm486, %v655, 0.0
      %v658 = vadd.f32 %v656, %v657
      %v659 = vrot.slane %v658, 4
      %v660 = vadd.f32 %v658, %v659
      %v661 = vrot.slane %v660, 2
      %v662 = vadd.f32 %v660, %v661
      %v663 = vrot.slane %v662, 1
      %v664 = vadd.f32 %v662, %v663
      %v665 = vlog2.pop %v664
      %v666 = vmul.f32 %v665, 0.6931472
      %v667 = vadd.f32 %v666, %v647
      %v668 = vsub.f32 %v637, %v667
      %v669 = vsub.f32 %v638, %v667
      %v670 = vsel %vm486, %v668, -inf
      %671 = vmax.xlane.f32.xlu0 %v670
      %v672 = vpop.xlane.xlu0 %671
      %v673 = vsel %vm486, %v669, -inf
      %674 = vmax.xlane.f32.xlu0 %v673
      %v675 = vpop.xlane.xlu0 %674
      %vm676 = vcmp.eq.f32.partialorder %v672, -inf
      %vm677 = vcmp.eq.f32.partialorder %v675, -inf
      %v678 = vsel %vm676, 0.0, %v672
      %v679 = vsel %vm677, 0.0, %v675
      %v680 = vsub.f32 %v668, %v678
      %v681 = vsub.f32 %v669, %v679
      %v682 = vmul.f32 %v680, 1.442695
      %v683 = vpow.pop %v682
      %v684 = vmul.f32 %v681, 1.442695
      %v685 = vpow.pop %v684
      %v686 = vsel %vm486, %v683, 0.0
      %687 = vadd.xlane.f32.xlu0 %v686
      %v688 = vpop.xlane.xlu0 %687
      %v689 = vsel %vm486, %v685, 0.0
      %690 = vadd.xlane.f32.xlu0 %v689
      %v691 = vpop.xlane.xlu0 %690
      %v692 = vlog2.pop %v688
      %v693 = vmul.f32 %v692, 0.6931472
      %v694 = vlog2.pop %v691
      %v695 = vmul.f32 %v694, 0.6931472
      %v696 = vadd.f32 %v693, %v672
      %v697 = vadd.f32 %v695, %v675
      %v698 = vsub.f32 %v668, %v696
      %v699 = vsub.f32 %v669, %v697
      %v700 = vsel %vm486, %v698, -inf
      %v701 = vsel %vm486, %v699, -inf
      %v702 = vmax.f32 %v700, %v701
      %v703 = vrot.slane %v702, 4
      %v704 = vmax.f32 %v702, %v703
      %v705 = vrot.slane %v704, 2
      %v706 = vmax.f32 %v704, %v705
      %v707 = vrot.slane %v706, 1
      %v708 = vmax.f32 %v706, %v707
      %vm709 = vcmp.eq.f32.partialorder %v708, -inf
      %v710 = vsel %vm709, 0.0, %v708
      %v711 = vsub.f32 %v698, %v710
      %v712 = vsub.f32 %v699, %v710
      %v713 = vmul.f32 %v711, 1.442695
      %v714 = vpow.pop %v713
      %v715 = vmul.f32 %v712, 1.442695
      %v716 = vpow.pop %v715
      %v717 = vsel %vm486, %v714, 0.0
      %v718 = vsel %vm486, %v716, 0.0
      %v719 = vadd.f32 %v717, %v718
      %v720 = vrot.slane %v719, 4
      %v721 = vadd.f32 %v719, %v720
      %v722 = vrot.slane %v721, 2
      %v723 = vadd.f32 %v721, %v722
      %v724 = vrot.slane %v723, 1
      %v725 = vadd.f32 %v723, %v724
      %v726 = vlog2.pop %v725
      %v727 = vmul.f32 %v726, 0.6931472
      %v728 = vadd.f32 %v727, %v708
      %v729 = vsub.f32 %v698, %v728
      %v730 = vsub.f32 %v699, %v728
      %v731 = vmul.f32 %v729, 1.442695
      %v732 = vpow.pop %v731
      %v733 = vmul.f32 %v730, 1.442695
      %v734 = vpow.pop %v733
      %v735 = vld [vmem:[%s338] sm:$0xff]
      %v736 = vld [vmem:[%s338 + $0x8] sm:$0xff]
      %v737 = vld [vmem:[%s338 + $0x10] sm:$0xff]
      %v738 = vld [vmem:[%s338 + $0x18] sm:$0xff]
      %v739 = vld [vmem:[%s338 + $0x20] sm:$0xff]
      %v740 = vld [vmem:[%s338 + $0x28] sm:$0xff]
      %v741 = vld [vmem:[%s338 + $0x30] sm:$0xff]
      %v742 = vld [vmem:[%s338 + $0x38] sm:$0xff]
      %v743 = vld [vmem:[%s338 + $0x40] sm:$0xff]
      %v744 = vld [vmem:[%s338 + $0x48] sm:$0xff]
      %v745 = vld [vmem:[%s338 + $0x50] sm:$0xff]
      %v746 = vld [vmem:[%s338 + $0x58] sm:$0xff]
      %v747 = vld [vmem:[%s338 + $0x60] sm:$0xff]
      %v748 = vld [vmem:[%s338 + $0x68] sm:$0xff]
      %v749 = vld [vmem:[%s338 + $0x70] sm:$0xff]
      %v750 = vld [vmem:[%s338 + $0x78] sm:$0xff]
      %v751 = vld [vmem:[%s338 + $0x80] sm:$0xff]
      %v752 = vld [vmem:[%s338 + $0x88] sm:$0xff]
      %v753 = vld [vmem:[%s338 + $0x90] sm:$0xff]
      %v754 = vld [vmem:[%s338 + $0x98] sm:$0xff]
      %v755 = vld [vmem:[%s338 + $0xa0] sm:$0xff]
      %v756 = vld [vmem:[%s338 + $0xa8] sm:$0xff]
      %v757 = vld [vmem:[%s338 + $0xb0] sm:$0xff]
      %v758 = vld [vmem:[%s338 + $0xb8] sm:$0xff]
      %v759 = vld [vmem:[%s338 + $0xc0] sm:$0xff]
      %v760 = vld [vmem:[%s338 + $0xc8] sm:$0xff]
      %v761 = vld [vmem:[%s338 + $0xd0] sm:$0xff]
      %v762 = vld [vmem:[%s338 + $0xd8] sm:$0xff]
      %v763 = vld [vmem:[%s338 + $0xe0] sm:$0xff]
      %v764 = vld [vmem:[%s338 + $0xe8] sm:$0xff]
      %v765 = vld [vmem:[%s338 + $0xf0] sm:$0xff]
      %v766 = vld [vmem:[%s338 + $0xf8] sm:$0xff]
      %v767 = vcombine.low %v735, %v739
      %v768 = vcombine.high %v735, %v739
      %v770 = vunpack.c.l.s4 1983009808
      %v771 = vunpack.c.0.s8 %v770
      %v772 = vlaneseq
      %v773 = vshrl.u32 %v772, 7
      %v774 = vsub.s32 %v771, %v773
      %v775 = vrot.slane %v767, %v774
      %v777 = vunpack.c.l.s4 1983009808
      %v778 = vunpack.c.0.s8 %v777
      %v779 = vlaneseq
      %v780 = vshrl.u32 %v779, 7
      %v781 = vsub.s32 %v778, %v780
      %v782 = vrot.slane %v768, %v781
      %v783 = vcombine.low %v737, %v741
      %v784 = vcombine.high %v737, %v741
      %v786 = vunpack.c.l.s4 1983009808
      %v787 = vunpack.c.0.s8 %v786
      %v788 = vlaneseq
      %v789 = vshrl.u32 %v788, 7
      %v790 = vsub.s32 %v787, %v789
      %v791 = vrot.slane %v783, %v790
      %v793 = vunpack.c.l.s4 1983009808
      %v794 = vunpack.c.0.s8 %v793
      %v795 = vlaneseq
      %v796 = vshrl.u32 %v795, 7
      %v797 = vsub.s32 %v794, %v796
      %v798 = vrot.slane %v784, %v797
      %v799 = vcombine.low %v743, %v747
      %v800 = vcombine.high %v743, %v747
      %v802 = vunpack.c.l.s4 1983009808
      %v803 = vunpack.c.0.s8 %v802
      %v804 = vlaneseq
      %v805 = vshrl.u32 %v804, 7
      %v806 = vsub.s32 %v803, %v805
      %v807 = vrot.slane %v799, %v806
      %v809 = vunpack.c.l.s4 1983009808
      %v810 = vunpack.c.0.s8 %v809
      %v811 = vlaneseq
      %v812 = vshrl.u32 %v811, 7
      %v813 = vsub.s32 %v810, %v812
      %v814 = vrot.slane %v800, %v813
      %v815 = vcombine.low %v745, %v749
      %v816 = vcombine.high %v745, %v749
      %v818 = vunpack.c.l.s4 1983009808
      %v819 = vunpack.c.0.s8 %v818
      %v820 = vlaneseq
      %v821 = vshrl.u32 %v820, 7
      %v822 = vsub.s32 %v819, %v821
      %v823 = vrot.slane %v815, %v822
      %v825 = vunpack.c.l.s4 1983009808
      %v826 = vunpack.c.0.s8 %v825
      %v827 = vlaneseq
      %v828 = vshrl.u32 %v827, 7
      %v829 = vsub.s32 %v826, %v828
      %v830 = vrot.slane %v816, %v829
      %v831 = vcombine.low %v775, %v791
      %v832 = vcombine.high %v775, %v791
      %v834 = vunpack.c.l.s4 1934713408
      %v835 = vunpack.c.0.s8 %v834
      %v836 = vlaneseq
      %v837 = vshrl.u32 %v836, 7
      %v838 = vsub.s32 %v835, %v837
      %v839 = vrot.slane %v831, %v838
      %v841 = vunpack.c.l.s4 1934713408
      %v842 = vunpack.c.0.s8 %v841
      %v843 = vlaneseq
      %v844 = vshrl.u32 %v843, 7
      %v845 = vsub.s32 %v842, %v844
      %v846 = vrot.slane %v832, %v845
      %v847 = vcombine.low %v782, %v798
      %v848 = vcombine.high %v782, %v798
      %v850 = vunpack.c.l.s4 1934713408
      %v851 = vunpack.c.0.s8 %v850
      %v852 = vlaneseq
      %v853 = vshrl.u32 %v852, 7
      %v854 = vsub.s32 %v851, %v853
      %v855 = vrot.slane %v847, %v854
      %v857 = vunpack.c.l.s4 1934713408
      %v858 = vunpack.c.0.s8 %v857
      %v859 = vlaneseq
      %v860 = vshrl.u32 %v859, 7
      %v861 = vsub.s32 %v858, %v860
      %v862 = vrot.slane %v848, %v861
      %v863 = vcombine.low %v807, %v823
      %v864 = vcombine.high %v807, %v823
      %v866 = vunpack.c.l.s4 1934713408
      %v867 = vunpack.c.0.s8 %v866
      %v868 = vlaneseq
      %v869 = vshrl.u32 %v868, 7
      %v870 = vsub.s32 %v867, %v869
      %v871 = vrot.slane %v863, %v870
      %v873 = vunpack.c.l.s4 1934713408
      %v874 = vunpack.c.0.s8 %v873
      %v875 = vlaneseq
      %v876 = vshrl.u32 %v875, 7
      %v877 = vsub.s32 %v874, %v876
      %v878 = vrot.slane %v864, %v877
      %v879 = vcombine.low %v814, %v830
      %v880 = vcombine.high %v814, %v830
      %v882 = vunpack.c.l.s4 1934713408
      %v883 = vunpack.c.0.s8 %v882
      %v884 = vlaneseq
      %v885 = vshrl.u32 %v884, 7
      %v886 = vsub.s32 %v883, %v885
      %v887 = vrot.slane %v879, %v886
      %v889 = vunpack.c.l.s4 1934713408
      %v890 = vunpack.c.0.s8 %v889
      %v891 = vlaneseq
      %v892 = vshrl.u32 %v891, 7
      %v893 = vsub.s32 %v890, %v892
      %v894 = vrot.slane %v880, %v893
      %v895 = vcombine.low %v839, %v871
      %v896 = vcombine.high %v839, %v871
      %v897 = vcombine.low %v846, %v878
      %v898 = vcombine.high %v846, %v878
      %v899 = vcombine.low %v855, %v887
      %v900 = vcombine.high %v855, %v887
      %v901 = vcombine.low %v862, %v894
      %v902 = vcombine.high %v862, %v894
      %v903 = vcombine.low %v751, %v755
      %v904 = vcombine.high %v751, %v755
      %v906 = vunpack.c.l.s4 1983009808
      %v907 = vunpack.c.0.s8 %v906
      %v908 = vlaneseq
      %v909 = vshrl.u32 %v908, 7
      %v910 = vsub.s32 %v907, %v909
      %v911 = vrot.slane %v903, %v910
      %v913 = vunpack.c.l.s4 1983009808
      %v914 = vunpack.c.0.s8 %v913
      %v915 = vlaneseq
      %v916 = vshrl.u32 %v915, 7
      %v917 = vsub.s32 %v914, %v916
      %v918 = vrot.slane %v904, %v917
      %v919 = vcombine.low %v753, %v757
      %v920 = vcombine.high %v753, %v757
      %v922 = vunpack.c.l.s4 1983009808
      %v923 = vunpack.c.0.s8 %v922
      %v924 = vlaneseq
      %v925 = vshrl.u32 %v924, 7
      %v926 = vsub.s32 %v923, %v925
      %v927 = vrot.slane %v919, %v926
      %v929 = vunpack.c.l.s4 1983009808
      %v930 = vunpack.c.0.s8 %v929
      %v931 = vlaneseq
      %v932 = vshrl.u32 %v931, 7
      %v933 = vsub.s32 %v930, %v932
      %v934 = vrot.slane %v920, %v933
      %v935 = vcombine.low %v759, %v763
      %v936 = vcombine.high %v759, %v763
      %v938 = vunpack.c.l.s4 1983009808
      %v939 = vunpack.c.0.s8 %v938
      %v940 = vlaneseq
      %v941 = vshrl.u32 %v940, 7
      %v942 = vsub.s32 %v939, %v941
      %v943 = vrot.slane %v935, %v942
      %v945 = vunpack.c.l.s4 1983009808
      %v946 = vunpack.c.0.s8 %v945
      %v947 = vlaneseq
      %v948 = vshrl.u32 %v947, 7
      %v949 = vsub.s32 %v946, %v948
      %v950 = vrot.slane %v936, %v949
      %v951 = vcombine.low %v761, %v765
      %v952 = vcombine.high %v761, %v765
      %v954 = vunpack.c.l.s4 1983009808
      %v955 = vunpack.c.0.s8 %v954
      %v956 = vlaneseq
      %v957 = vshrl.u32 %v956, 7
      %v958 = vsub.s32 %v955, %v957
      %v959 = vrot.slane %v951, %v958
      %v961 = vunpack.c.l.s4 1983009808
      %v962 = vunpack.c.0.s8 %v961
      %v963 = vlaneseq
      %v964 = vshrl.u32 %v963, 7
      %v965 = vsub.s32 %v962, %v964
      %v966 = vrot.slane %v952, %v965
      %v967 = vcombine.low %v911, %v927
      %v968 = vcombine.high %v911, %v927
      %v970 = vunpack.c.l.s4 1934713408
      %v971 = vunpack.c.0.s8 %v970
      %v972 = vlaneseq
      %v973 = vshrl.u32 %v972, 7
      %v974 = vsub.s32 %v971, %v973
      %v975 = vrot.slane %v967, %v974
      %v977 = vunpack.c.l.s4 1934713408
      %v978 = vunpack.c.0.s8 %v977
      %v979 = vlaneseq
      %v980 = vshrl.u32 %v979, 7
      %v981 = vsub.s32 %v978, %v980
      %v982 = vrot.slane %v968, %v981
      %v983 = vcombine.low %v918, %v934
      %v984 = vcombine.high %v918, %v934
      %v986 = vunpack.c.l.s4 1934713408
      %v987 = vunpack.c.0.s8 %v986
      %v988 = vlaneseq
      %v989 = vshrl.u32 %v988, 7
      %v990 = vsub.s32 %v987, %v989
      %v991 = vrot.slane %v983, %v990
      %v993 = vunpack.c.l.s4 1934713408
      %v994 = vunpack.c.0.s8 %v993
      %v995 = vlaneseq
      %v996 = vshrl.u32 %v995, 7
      %v997 = vsub.s32 %v994, %v996
      %v998 = vrot.slane %v984, %v997
      %v999 = vcombine.low %v943, %v959
      %v1000 = vcombine.high %v943, %v959
      %v1002 = vunpack.c.l.s4 1934713408
      %v1003 = vunpack.c.0.s8 %v1002
      %v1004 = vlaneseq
      %v1005 = vshrl.u32 %v1004, 7
      %v1006 = vsub.s32 %v1003, %v1005
      %v1007 = vrot.slane %v999, %v1006
      %v1009 = vunpack.c.l.s4 1934713408
      %v1010 = vunpack.c.0.s8 %v1009
      %v1011 = vlaneseq
      %v1012 = vshrl.u32 %v1011, 7
      %v1013 = vsub.s32 %v1010, %v1012
      %v1014 = vrot.slane %v1000, %v1013
      %v1015 = vcombine.low %v950, %v966
      %v1016 = vcombine.high %v950, %v966
      %v1018 = vunpack.c.l.s4 1934713408
      %v1019 = vunpack.c.0.s8 %v1018
      %v1020 = vlaneseq
      %v1021 = vshrl.u32 %v1020, 7
      %v1022 = vsub.s32 %v1019, %v1021
      %v1023 = vrot.slane %v1015, %v1022
      %v1025 = vunpack.c.l.s4 1934713408
      %v1026 = vunpack.c.0.s8 %v1025
      %v1027 = vlaneseq
      %v1028 = vshrl.u32 %v1027, 7
      %v1029 = vsub.s32 %v1026, %v1028
      %v1030 = vrot.slane %v1016, %v1029
      %v1031 = vcombine.low %v975, %v1007
      %v1032 = vcombine.high %v975, %v1007
      %v1033 = vcombine.low %v982, %v1014
      %v1034 = vcombine.high %v982, %v1014
      %v1035 = vcombine.low %v991, %v1023
      %v1036 = vcombine.high %v991, %v1023
      %v1037 = vcombine.low %v998, %v1030
      %v1038 = vcombine.high %v998, %v1030
      %v1039 = vcombine.low %v736, %v740
      %v1040 = vcombine.high %v736, %v740
      %v1042 = vunpack.c.l.s4 1983009808
      %v1043 = vunpack.c.0.s8 %v1042
      %v1044 = vlaneseq
      %v1045 = vshrl.u32 %v1044, 7
      %v1046 = vsub.s32 %v1043, %v1045
      %v1047 = vrot.slane %v1039, %v1046
      %v1049 = vunpack.c.l.s4 1983009808
      %v1050 = vunpack.c.0.s8 %v1049
      %v1051 = vlaneseq
      %v1052 = vshrl.u32 %v1051, 7
      %v1053 = vsub.s32 %v1050, %v1052
      %v1054 = vrot.slane %v1040, %v1053
      %v1055 = vcombine.low %v738, %v742
      %v1056 = vcombine.high %v738, %v742
      %v1058 = vunpack.c.l.s4 1983009808
      %v1059 = vunpack.c.0.s8 %v1058
      %v1060 = vlaneseq
      %v1061 = vshrl.u32 %v1060, 7
      %v1062 = vsub.s32 %v1059, %v1061
      %v1063 = vrot.slane %v1055, %v1062
      %v1065 = vunpack.c.l.s4 1983009808
      %v1066 = vunpack.c.0.s8 %v1065
      %v1067 = vlaneseq
      %v1068 = vshrl.u32 %v1067, 7
      %v1069 = vsub.s32 %v1066, %v1068
      %v1070 = vrot.slane %v1056, %v1069
      %v1071 = vcombine.low %v744, %v748
      %v1072 = vcombine.high %v744, %v748
      %v1074 = vunpack.c.l.s4 1983009808
      %v1075 = vunpack.c.0.s8 %v1074
      %v1076 = vlaneseq
      %v1077 = vshrl.u32 %v1076, 7
      %v1078 = vsub.s32 %v1075, %v1077
      %v1079 = vrot.slane %v1071, %v1078
      %v1081 = vunpack.c.l.s4 1983009808
      %v1082 = vunpack.c.0.s8 %v1081
      %v1083 = vlaneseq
      %v1084 = vshrl.u32 %v1083, 7
      %v1085 = vsub.s32 %v1082, %v1084
      %v1086 = vrot.slane %v1072, %v1085
      %v1087 = vcombine.low %v746, %v750
      %v1088 = vcombine.high %v746, %v750
      %v1090 = vunpack.c.l.s4 1983009808
      %v1091 = vunpack.c.0.s8 %v1090
      %v1092 = vlaneseq
      %v1093 = vshrl.u32 %v1092, 7
      %v1094 = vsub.s32 %v1091, %v1093
      %v1095 = vrot.slane %v1087, %v1094
      %v1097 = vunpack.c.l.s4 1983009808
      %v1098 = vunpack.c.0.s8 %v1097
      %v1099 = vlaneseq
      %v1100 = vshrl.u32 %v1099, 7
      %v1101 = vsub.s32 %v1098, %v1100
      %v1102 = vrot.slane %v1088, %v1101
      %v1103 = vcombine.low %v1047, %v1063
      %v1104 = vcombine.high %v1047, %v1063
      %v1106 = vunpack.c.l.s4 1934713408
      %v1107 = vunpack.c.0.s8 %v1106
      %v1108 = vlaneseq
      %v1109 = vshrl.u32 %v1108, 7
      %v1110 = vsub.s32 %v1107, %v1109
      %v1111 = vrot.slane %v1103, %v1110
      %v1113 = vunpack.c.l.s4 1934713408
      %v1114 = vunpack.c.0.s8 %v1113
      %v1115 = vlaneseq
      %v1116 = vshrl.u32 %v1115, 7
      %v1117 = vsub.s32 %v1114, %v1116
      %v1118 = vrot.slane %v1104, %v1117
      %v1119 = vcombine.low %v1054, %v1070
      %v1120 = vcombine.high %v1054, %v1070
      %v1122 = vunpack.c.l.s4 1934713408
      %v1123 = vunpack.c.0.s8 %v1122
      %v1124 = vlaneseq
      %v1125 = vshrl.u32 %v1124, 7
      %v1126 = vsub.s32 %v1123, %v1125
      %v1127 = vrot.slane %v1119, %v1126
      %v1129 = vunpack.c.l.s4 1934713408
      %v1130 = vunpack.c.0.s8 %v1129
      %v1131 = vlaneseq
      %v1132 = vshrl.u32 %v1131, 7
      %v1133 = vsub.s32 %v1130, %v1132
      %v1134 = vrot.slane %v1120, %v1133
      %v1135 = vcombine.low %v1079, %v1095
      %v1136 = vcombine.high %v1079, %v1095
      %v1138 = vunpack.c.l.s4 1934713408
      %v1139 = vunpack.c.0.s8 %v1138
      %v1140 = vlaneseq
      %v1141 = vshrl.u32 %v1140, 7
      %v1142 = vsub.s32 %v1139, %v1141
      %v1143 = vrot.slane %v1135, %v1142
      %v1145 = vunpack.c.l.s4 1934713408
      %v1146 = vunpack.c.0.s8 %v1145
      %v1147 = vlaneseq
      %v1148 = vshrl.u32 %v1147, 7
      %v1149 = vsub.s32 %v1146, %v1148
      %v1150 = vrot.slane %v1136, %v1149
      %v1151 = vcombine.low %v1086, %v1102
      %v1152 = vcombine.high %v1086, %v1102
      %v1154 = vunpack.c.l.s4 1934713408
      %v1155 = vunpack.c.0.s8 %v1154
      %v1156 = vlaneseq
      %v1157 = vshrl.u32 %v1156, 7
      %v1158 = vsub.s32 %v1155, %v1157
      %v1159 = vrot.slane %v1151, %v1158
      %v1161 = vunpack.c.l.s4 1934713408
      %v1162 = vunpack.c.0.s8 %v1161
      %v1163 = vlaneseq
      %v1164 = vshrl.u32 %v1163, 7
      %v1165 = vsub.s32 %v1162, %v1164
      %v1166 = vrot.slane %v1152, %v1165
      %v1167 = vcombine.low %v1111, %v1143
      %v1168 = vcombine.high %v1111, %v1143
      %v1169 = vcombine.low %v1118, %v1150
      %v1170 = vcombine.high %v1118, %v1150
      %v1171 = vcombine.low %v1127, %v1159
      %v1172 = vcombine.high %v1127, %v1159
      %v1173 = vcombine.low %v1134, %v1166
      %v1174 = vcombine.high %v1134, %v1166
      %v1175 = vcombine.low %v752, %v756
      %v1176 = vcombine.high %v752, %v756
      %v1178 = vunpack.c.l.s4 1983009808
      %v1179 = vunpack.c.0.s8 %v1178
      %v1180 = vlaneseq
      %v1181 = vshrl.u32 %v1180, 7
      %v1182 = vsub.s32 %v1179, %v1181
      %v1183 = vrot.slane %v1175, %v1182
      %v1185 = vunpack.c.l.s4 1983009808
      %v1186 = vunpack.c.0.s8 %v1185
      %v1187 = vlaneseq
      %v1188 = vshrl.u32 %v1187, 7
      %v1189 = vsub.s32 %v1186, %v1188
      %v1190 = vrot.slane %v1176, %v1189
      %v1191 = vcombine.low %v754, %v758
      %v1192 = vcombine.high %v754, %v758
      %v1194 = vunpack.c.l.s4 1983009808
      %v1195 = vunpack.c.0.s8 %v1194
      %v1196 = vlaneseq
      %v1197 = vshrl.u32 %v1196, 7
      %v1198 = vsub.s32 %v1195, %v1197
      %v1199 = vrot.slane %v1191, %v1198
      %v1201 = vunpack.c.l.s4 1983009808
      %v1202 = vunpack.c.0.s8 %v1201
      %v1203 = vlaneseq
      %v1204 = vshrl.u32 %v1203, 7
      %v1205 = vsub.s32 %v1202, %v1204
      %v1206 = vrot.slane %v1192, %v1205
      %v1207 = vcombine.low %v760, %v764
      %v1208 = vcombine.high %v760, %v764
      %v1210 = vunpack.c.l.s4 1983009808
      %v1211 = vunpack.c.0.s8 %v1210
      %v1212 = vlaneseq
      %v1213 = vshrl.u32 %v1212, 7
      %v1214 = vsub.s32 %v1211, %v1213
      %v1215 = vrot.slane %v1207, %v1214
      %v1217 = vunpack.c.l.s4 1983009808
      %v1218 = vunpack.c.0.s8 %v1217
      %v1219 = vlaneseq
      %v1220 = vshrl.u32 %v1219, 7
      %v1221 = vsub.s32 %v1218, %v1220
      %v1222 = vrot.slane %v1208, %v1221
      %v1223 = vcombine.low %v762, %v766
      %v1224 = vcombine.high %v762, %v766
      %v1226 = vunpack.c.l.s4 1983009808
      %v1227 = vunpack.c.0.s8 %v1226
      %v1228 = vlaneseq
      %v1229 = vshrl.u32 %v1228, 7
      %v1230 = vsub.s32 %v1227, %v1229
      %v1231 = vrot.slane %v1223, %v1230
      %v1233 = vunpack.c.l.s4 1983009808
      %v1234 = vunpack.c.0.s8 %v1233
      %v1235 = vlaneseq
      %v1236 = vshrl.u32 %v1235, 7
      %v1237 = vsub.s32 %v1234, %v1236
      %v1238 = vrot.slane %v1224, %v1237
      %v1239 = vcombine.low %v1183, %v1199
      %v1240 = vcombine.high %v1183, %v1199
      %v1242 = vunpack.c.l.s4 1934713408
      %v1243 = vunpack.c.0.s8 %v1242
      %v1244 = vlaneseq
      %v1245 = vshrl.u32 %v1244, 7
      %v1246 = vsub.s32 %v1243, %v1245
      %v1247 = vrot.slane %v1239, %v1246
      %v1249 = vunpack.c.l.s4 1934713408
      %v1250 = vunpack.c.0.s8 %v1249
      %v1251 = vlaneseq
      %v1252 = vshrl.u32 %v1251, 7
      %v1253 = vsub.s32 %v1250, %v1252
      %v1254 = vrot.slane %v1240, %v1253
      %v1255 = vcombine.low %v1190, %v1206
      %v1256 = vcombine.high %v1190, %v1206
      %v1258 = vunpack.c.l.s4 1934713408
      %v1259 = vunpack.c.0.s8 %v1258
      %v1260 = vlaneseq
      %v1261 = vshrl.u32 %v1260, 7
      %v1262 = vsub.s32 %v1259, %v1261
      %v1263 = vrot.slane %v1255, %v1262
      %v1265 = vunpack.c.l.s4 1934713408
      %v1266 = vunpack.c.0.s8 %v1265
      %v1267 = vlaneseq
      %v1268 = vshrl.u32 %v1267, 7
      %v1269 = vsub.s32 %v1266, %v1268
      %v1270 = vrot.slane %v1256, %v1269
      %v1271 = vcombine.low %v1215, %v1231
      %v1272 = vcombine.high %v1215, %v1231
      %v1274 = vunpack.c.l.s4 1934713408
      %v1275 = vunpack.c.0.s8 %v1274
      %v1276 = vlaneseq
      %v1277 = vshrl.u32 %v1276, 7
      %v1278 = vsub.s32 %v1275, %v1277
      %v1279 = vrot.slane %v1271, %v1278
      %v1281 = vunpack.c.l.s4 1934713408
      %v1282 = vunpack.c.0.s8 %v1281
      %v1283 = vlaneseq
      %v1284 = vshrl.u32 %v1283, 7
      %v1285 = vsub.s32 %v1282, %v1284
      %v1286 = vrot.slane %v1272, %v1285
      %v1287 = vcombine.low %v1222, %v1238
      %v1288 = vcombine.high %v1222, %v1238
      %v1290 = vunpack.c.l.s4 1934713408
      %v1291 = vunpack.c.0.s8 %v1290
      %v1292 = vlaneseq
      %v1293 = vshrl.u32 %v1292, 7
      %v1294 = vsub.s32 %v1291, %v1293
      %v1295 = vrot.slane %v1287, %v1294
      %v1297 = vunpack.c.l.s4 1934713408
      %v1298 = vunpack.c.0.s8 %v1297
      %v1299 = vlaneseq
      %v1300 = vshrl.u32 %v1299, 7
      %v1301 = vsub.s32 %v1298, %v1300
      %v1302 = vrot.slane %v1288, %v1301
      %v1303 = vcombine.low %v1247, %v1279
      %v1304 = vcombine.high %v1247, %v1279
      %v1305 = vcombine.low %v1254, %v1286
      %v1306 = vcombine.high %v1254, %v1286
      %v1307 = vcombine.low %v1263, %v1295
      %v1308 = vcombine.high %v1263, %v1295
      %v1309 = vcombine.low %v1270, %v1302
      %v1310 = vcombine.high %v1270, %v1302
      %1313 = vrot.lane.b32.xlu0 %v896, 4
      %v1314 = vpop.permute.xlu0 %1313
      %1315 = vrot.lane.b32.xlu0 %v1032, 4
      %v1316 = vpop.permute.xlu0 %1315
      %1321 = vrot.lane.b32.xlu0 %v897, 8
      %v1322 = vpop.permute.xlu0 %1321
      %1323 = vrot.lane.b32.xlu0 %v1033, 8
      %v1324 = vpop.permute.xlu0 %1323
      %1329 = vrot.lane.b32.xlu0 %v898, 12
      %v1330 = vpop.permute.xlu0 %1329
      %1331 = vrot.lane.b32.xlu0 %v1034, 12
      %v1332 = vpop.permute.xlu0 %1331
      %1337 = vrot.lane.b32.xlu0 %v899, 16
      %v1338 = vpop.permute.xlu0 %1337
      %1339 = vrot.lane.b32.xlu0 %v1035, 16
      %v1340 = vpop.permute.xlu0 %1339
      %1345 = vrot.lane.b32.xlu0 %v900, 20
      %v1346 = vpop.permute.xlu0 %1345
      %1347 = vrot.lane.b32.xlu0 %v1036, 20
      %v1348 = vpop.permute.xlu0 %1347
      %1353 = vrot.lane.b32.xlu0 %v901, 24
      %v1354 = vpop.permute.xlu0 %1353
      %1355 = vrot.lane.b32.xlu0 %v1037, 24
      %v1356 = vpop.permute.xlu0 %1355
      %1361 = vrot.lane.b32.xlu0 %v902, 28
      %v1362 = vpop.permute.xlu0 %1361
      %1363 = vrot.lane.b32.xlu0 %v1038, 28
      %v1364 = vpop.permute.xlu0 %1363
      %1369 = vrot.lane.b32.xlu0 %v1167, 32
      %v1370 = vpop.permute.xlu0 %1369
      %1371 = vrot.lane.b32.xlu0 %v1303, 32
      %v1372 = vpop.permute.xlu0 %1371
      %1377 = vrot.lane.b32.xlu0 %v1168, 36
      %v1378 = vpop.permute.xlu0 %1377
      %1379 = vrot.lane.b32.xlu0 %v1304, 36
      %v1380 = vpop.permute.xlu0 %1379
      %1385 = vrot.lane.b32.xlu0 %v1169, 40
      %v1386 = vpop.permute.xlu0 %1385
      %1387 = vrot.lane.b32.xlu0 %v1305, 40
      %v1388 = vpop.permute.xlu0 %1387
      %1393 = vrot.lane.b32.xlu0 %v1170, 44
      %v1394 = vpop.permute.xlu0 %1393
      %1395 = vrot.lane.b32.xlu0 %v1306, 44
      %v1396 = vpop.permute.xlu0 %1395
      %1401 = vrot.lane.b32.xlu0 %v1171, 48
      %v1402 = vpop.permute.xlu0 %1401
      %1403 = vrot.lane.b32.xlu0 %v1307, 48
      %v1404 = vpop.permute.xlu0 %1403
      %1409 = vrot.lane.b32.xlu0 %v1172, 52
      %v1410 = vpop.permute.xlu0 %1409
      %1411 = vrot.lane.b32.xlu0 %v1308, 52
      %v1412 = vpop.permute.xlu0 %1411
      %1417 = vrot.lane.b32.xlu0 %v1173, 56
      %v1418 = vpop.permute.xlu0 %1417
      %1419 = vrot.lane.b32.xlu0 %v1309, 56
      %v1420 = vpop.permute.xlu0 %1419
      %1425 = vrot.lane.b32.xlu0 %v1174, 60
      %v1426 = vpop.permute.xlu0 %1425
      %1427 = vrot.lane.b32.xlu0 %v1310, 60
      %v1428 = vpop.permute.xlu0 %1427
      %v1431 = vsel %vm384, %v895, %v1314
      %v1432 = vsel %vm384, %v1031, %v1316
      %vm1433 = vcmask 64512
      %v1434 = vsel %vm1433, %v1431, %v1322
      %v1435 = vsel %vm1433, %v1432, %v1324
      %vm1436 = vcmask 97280
      %v1437 = vsel %vm1436, %v1434, %v1330
      %v1438 = vsel %vm1436, %v1435, %v1332
      %v1439 = vsel %vm486, %v1437, %v1338
      %v1440 = vsel %vm486, %v1438, %v1340
      %vm1441 = vcmask 162816
      %v1442 = vsel %vm1441, %v1439, %v1346
      %v1443 = vsel %vm1441, %v1440, %v1348
      %vm1444 = vcmask 195584
      %v1445 = vsel %vm1444, %v1442, %v1354
      %v1446 = vsel %vm1444, %v1443, %v1356
      %vm1447 = vcmask 228352
      %v1448 = vsel %vm1447, %v1445, %v1362
      %v1449 = vsel %vm1447, %v1446, %v1364
      %vm1450 = vcmask 261120
      %v1451 = vsel %vm1450, %v1448, %v1370
      %v1452 = vsel %vm1450, %v1449, %v1372
      %vm1453 = vcmask 293888
      %v1454 = vsel %vm1453, %v1451, %v1378
      %v1455 = vsel %vm1453, %v1452, %v1380
      %vm1456 = vcmask 326656
      %v1457 = vsel %vm1456, %v1454, %v1386
      %v1458 = vsel %vm1456, %v1455, %v1388
      %vm1459 = vcmask 359424
      %v1460 = vsel %vm1459, %v1457, %v1394
      %v1461 = vsel %vm1459, %v1458, %v1396
      %vm1462 = vcmask 392192
      %v1463 = vsel %vm1462, %v1460, %v1402
      %v1464 = vsel %vm1462, %v1461, %v1404
      %vm1465 = vcmask 424960
      %v1466 = vsel %vm1465, %v1463, %v1410
      %v1467 = vsel %vm1465, %v1464, %v1412
      %vm1468 = vcmask 457728
      %v1469 = vsel %vm1468, %v1466, %v1418
      %v1470 = vsel %vm1468, %v1467, %v1420
      %vm1471 = vcmask 490496
      %v1472 = vsel %vm1471, %v1469, %v1426
      %v1473 = vsel %vm1471, %v1470, %v1428
      %v1474 = vcombine.low 0.0, 0.0
      %v1475 = vcombine.high 0.0, 0.0
      %v1477 = vunpack.c.l.s4 1983009808
      %v1478 = vunpack.c.0.s8 %v1477
      %v1479 = vlaneseq
      %v1480 = vshrl.u32 %v1479, 7
      %v1481 = vsub.s32 %v1478, %v1480
      %v1482 = vrot.slane %v1474, %v1481
      %v1484 = vunpack.c.l.s4 1983009808
      %v1485 = vunpack.c.0.s8 %v1484
      %v1486 = vlaneseq
      %v1487 = vshrl.u32 %v1486, 7
      %v1488 = vsub.s32 %v1485, %v1487
      %v1489 = vrot.slane %v1475, %v1488
      %v1490 = vcombine.low %v1482, %v1482
      %v1491 = vcombine.high %v1482, %v1482
      %v1493 = vunpack.c.l.s4 1934713408
      %v1494 = vunpack.c.0.s8 %v1493
      %v1495 = vlaneseq
      %v1496 = vshrl.u32 %v1495, 7
      %v1497 = vsub.s32 %v1494, %v1496
      %v1498 = vrot.slane %v1490, %v1497
      %v1500 = vunpack.c.l.s4 1934713408
      %v1501 = vunpack.c.0.s8 %v1500
      %v1502 = vlaneseq
      %v1503 = vshrl.u32 %v1502, 7
      %v1504 = vsub.s32 %v1501, %v1503
      %v1505 = vrot.slane %v1491, %v1504
      %v1506 = vcombine.low %v1489, %v1489
      %v1507 = vcombine.high %v1489, %v1489
      %v1509 = vunpack.c.l.s4 1934713408
      %v1510 = vunpack.c.0.s8 %v1509
      %v1511 = vlaneseq
      %v1512 = vshrl.u32 %v1511, 7
      %v1513 = vsub.s32 %v1510, %v1512
      %v1514 = vrot.slane %v1506, %v1513
      %v1516 = vunpack.c.l.s4 1934713408
      %v1517 = vunpack.c.0.s8 %v1516
      %v1518 = vlaneseq
      %v1519 = vshrl.u32 %v1518, 7
      %v1520 = vsub.s32 %v1517, %v1519
      %v1521 = vrot.slane %v1507, %v1520
      %v1522 = vcombine.low %v1498, %v1498
      %v1523 = vcombine.high %v1498, %v1498
      %v1524 = vcombine.low %v1505, %v1505
      %v1525 = vcombine.high %v1505, %v1505
      %v1526 = vcombine.low %v1514, %v1514
      %v1527 = vcombine.high %v1514, %v1514
      %v1528 = vcombine.low %v1521, %v1521
      %v1529 = vcombine.high %v1521, %v1521
      %1531 = vrot.lane.b32.xlu0 %v1523, 4
      %v1532 = vpop.permute.xlu0 %1531
      %1535 = vrot.lane.b32.xlu0 %v1524, 8
      %v1536 = vpop.permute.xlu0 %1535
      %1539 = vrot.lane.b32.xlu0 %v1525, 12
      %v1540 = vpop.permute.xlu0 %1539
      %1543 = vrot.lane.b32.xlu0 %v1526, 16
      %v1544 = vpop.permute.xlu0 %1543
      %1547 = vrot.lane.b32.xlu0 %v1527, 20
      %v1548 = vpop.permute.xlu0 %1547
      %1551 = vrot.lane.b32.xlu0 %v1528, 24
      %v1552 = vpop.permute.xlu0 %1551
      %1555 = vrot.lane.b32.xlu0 %v1529, 28
      %v1556 = vpop.permute.xlu0 %1555
      %1559 = vrot.lane.b32.xlu0 %v1522, 32
      %v1560 = vpop.permute.xlu0 %1559
      %1562 = vrot.lane.b32.xlu0 %v1523, 36
      %v1563 = vpop.permute.xlu0 %1562
      %1565 = vrot.lane.b32.xlu0 %v1524, 40
      %v1566 = vpop.permute.xlu0 %1565
      %1568 = vrot.lane.b32.xlu0 %v1525, 44
      %v1569 = vpop.permute.xlu0 %1568
      %1571 = vrot.lane.b32.xlu0 %v1526, 48
      %v1572 = vpop.permute.xlu0 %1571
      %1574 = vrot.lane.b32.xlu0 %v1527, 52
      %v1575 = vpop.permute.xlu0 %1574
      %1577 = vrot.lane.b32.xlu0 %v1528, 56
      %v1578 = vpop.permute.xlu0 %1577
      %1580 = vrot.lane.b32.xlu0 %v1529, 60
      %v1581 = vpop.permute.xlu0 %1580
      %v1583 = vsel %vm384, %v1522, %v1532
      %v1584 = vsel %vm1433, %v1583, %v1536
      %v1585 = vsel %vm1436, %v1584, %v1540
      %v1586 = vsel %vm486, %v1585, %v1544
      %v1587 = vsel %vm1441, %v1586, %v1548
      %v1588 = vsel %vm1444, %v1587, %v1552
      %v1589 = vsel %vm1447, %v1588, %v1556
      %v1590 = vsel %vm1450, %v1589, %v1560
      %v1591 = vsel %vm1453, %v1590, %v1563
      %v1592 = vsel %vm1456, %v1591, %v1566
      %v1593 = vsel %vm1459, %v1592, %v1569
      %v1594 = vsel %vm1462, %v1593, %v1572
      %v1595 = vsel %vm1465, %v1594, %v1575
      %v1596 = vsel %vm1468, %v1595, %v1578
      %v1597 = vsel %vm1471, %v1596, %v1581
      %1598 = vxpose.xlu0.b32.start [1/16] %v732, 128
      %1599 = vxpose.xlu0.b32.cont [2/16] %v734, 128
      %1600 = vxpose.xlu0.b32.cont [3/16] 0.0, 128
      %1601 = vxpose.xlu0.b32.cont [4/16] 0.0, 128
      %1602 = vxpose.xlu0.b32.cont [5/16] 0.0, 128
      %1603 = vxpose.xlu0.b32.cont [6/16] 0.0, 128
      %1604 = vxpose.xlu0.b32.cont [7/16] 0.0, 128
      %1605 = vxpose.xlu0.b32.cont [8/16] 0.0, 128
      %1606 = vxpose.xlu0.b32.cont [9/16] 0.0, 128
      %1607 = vxpose.xlu0.b32.cont [10/16] 0.0, 128
      %1608 = vxpose.xlu0.b32.cont [11/16] 0.0, 128
      %1609 = vxpose.xlu0.b32.cont [12/16] 0.0, 128
      %1610 = vxpose.xlu0.b32.cont [13/16] 0.0, 128
      %1611 = vxpose.xlu0.b32.cont [14/16] 0.0, 128
      %1612 = vxpose.xlu0.b32.cont [15/16] 0.0, 128
      %1613 = vxpose.xlu0.b32.end [16/16] 0.0, 128
      %v1614 = vpop.trf.xlu0
      %v1615 = vpop.trf.xlu0
      %v1616 = vpop.trf.xlu0
      %v1617 = vpop.trf.xlu0
      %v1618 = vpop.trf.xlu0
      %v1619 = vpop.trf.xlu0
      %v1620 = vpop.trf.xlu0
      %v1621 = vpop.trf.xlu0
      %v1622 = vpop.trf.xlu0
      %v1623 = vpop.trf.xlu0
      %v1624 = vpop.trf.xlu0
      %v1625 = vpop.trf.xlu0
      %v1626 = vpop.trf.xlu0
      %v1627 = vpop.trf.xlu0
      %v1628 = vpop.trf.xlu0
      %v1629 = vpop.trf.xlu0
      %v1631 = vsel %vm486, %v1614, 0
      %v1634 = vsel %vm486, %v1615, 0
      %1636 = vmatprep.subr.mxu0 0.0
      %1637 = vmatpush1.msra.mxu0 %v1472
      %1638 = vmatprep.subr.mxu0 0.0
      %1639 = vmatpush1.msra.mxu0 %v1473
      %1640 = vmatprep.subr.mxu0 0.0
      %1641 = vmatpush1.msra.mxu0 0.0
      %1642 = vmatprep.subr.mxu0 0.0
      %1643 = vmatpush1.msra.mxu0 0.0
      %1644 = vmatprep.subr.mxu0 0.0
      %1645 = vmatpush1.msra.mxu0 0.0
      %1646 = vmatprep.subr.mxu0 0.0
      %1647 = vmatpush1.msra.mxu0 0.0
      %1648 = vmatprep.subr.mxu0 0.0
      %1649 = vmatpush1.msra.mxu0 0.0
      %1650 = vmatprep.subr.mxu0 0.0
      %1651 = vmatpush1.msra.mxu0 0.0
      %1652 = vmatprep.subr.mxu0 0.0
      %1653 = vmatpush1.msra.mxu0 0.0
      %1654 = vmatprep.subr.mxu0 0.0
      %1655 = vmatpush1.msra.mxu0 0.0
      %1656 = vmatprep.subr.mxu0 0.0
      %1657 = vmatpush1.msra.mxu0 0.0
      %1658 = vmatprep.subr.mxu0 0.0
      %1659 = vmatpush1.msra.mxu0 0.0
      %1660 = vmatprep.subr.mxu0 0.0
      %1661 = vmatpush1.msra.mxu0 0.0
      %1662 = vmatprep.subr.mxu0 0.0
      %1663 = vmatpush1.msra.mxu0 0.0
      %1664 = vmatprep.subr.mxu0 0.0
      %1665 = vmatpush1.msra.mxu0 0.0
      %1666 = vmatprep.subr.mxu0 0.0
      %1667 = vmatpush1.msra.mxu0 0.0
      %1668 = vmatprep.subr.mxu0 0.0
      %1669 = vmatpush1.msra.mxu0 0.0
      %1670 = vmatprep.subr.mxu0 0.0
      %1671 = vmatpush1.msra.mxu0 0.0
      %1672 = vmatprep.subr.mxu0 0.0
      %1673 = vmatpush1.msra.mxu0 0.0
      %1674 = vmatprep.subr.mxu0 0.0
      %1675 = vmatpush1.msra.mxu0 0.0
      %1676 = vmatprep.subr.mxu0 0.0
      %1677 = vmatpush1.msra.mxu0 0.0
      %1678 = vmatprep.subr.mxu0 0.0
      %1679 = vmatpush1.msra.mxu0 0.0
      %1680 = vmatprep.subr.mxu0 0.0
      %1681 = vmatpush1.msra.mxu0 0.0
      %1682 = vmatprep.subr.mxu0 0.0
      %1683 = vmatpush1.msra.mxu0 0.0
      %1684 = vmatprep.subr.mxu0 0.0
      %1685 = vmatpush1.msra.mxu0 0.0
      %1686 = vmatprep.subr.mxu0 0.0
      %1687 = vmatpush1.msra.mxu0 0.0
      %1688 = vmatprep.subr.mxu0 0.0
      %1689 = vmatpush1.msra.mxu0 0.0
      %1690 = vmatprep.subr.mxu0 0.0
      %1691 = vmatpush1.msra.mxu0 0.0
      %1692 = vmatprep.subr.mxu0 0.0
      %1693 = vmatpush1.msra.mxu0 0.0
      %1694 = vmatprep.subr.mxu0 0.0
      %1695 = vmatpush1.msra.mxu0 0.0
      %1696 = vmatprep.subr.mxu0 0.0
      %1697 = vmatpush1.msra.mxu0 0.0
      %1698 = vmatprep.subr.mxu0 0.0
      %1699 = vmatpush1.msra.mxu0 0.0
      %1700 = vmatprep.mubr.f32.mxu0 0.0
      %1701 = vmatmul.mubr.f32.gmra.mrb[0].mxu0 %v1631
      %v1702 = vpop.f32.mrb[0].mxu0
      %v1703 = vadd.f32 %v1597, %v1702
      %v1704 = vpop.f32.mrb[0].mxu0
      %1705 = vmatprep.mubr.f32.mxu0 0.0
      %1706 = vmatmul.mubr.f32.gmra.mrb[0].mxu0 %v1634
      %v1707 = vpop.f32.mrb[0].mxu0
      %v1708 = vadd.f32 %v1597, %v1707
      %v1709 = vpop.f32.mrb[0].mxu0
      %1710 = vdwg.mxu0
      %1713 = vrot.lane.b32.xlu0 %v1703, 124
      %v1714 = vpop.permute.xlu0 %1713
      %1715 = vrot.lane.b32.xlu0 %v1708, 124
      %v1716 = vpop.permute.xlu0 %1715
      %1719 = vrot.lane.b32.xlu0 %v1703, 120
      %v1720 = vpop.permute.xlu0 %1719
      %1721 = vrot.lane.b32.xlu0 %v1708, 120
      %v1722 = vpop.permute.xlu0 %1721
      %1725 = vrot.lane.b32.xlu0 %v1703, 116
      %v1726 = vpop.permute.xlu0 %1725
      %1727 = vrot.lane.b32.xlu0 %v1708, 116
      %v1728 = vpop.permute.xlu0 %1727
      %1731 = vrot.lane.b32.xlu0 %v1703, 112
      %v1732 = vpop.permute.xlu0 %1731
      %1733 = vrot.lane.b32.xlu0 %v1708, 112
      %v1734 = vpop.permute.xlu0 %1733
      %1737 = vrot.lane.b32.xlu0 %v1703, 108
      %v1738 = vpop.permute.xlu0 %1737
      %1739 = vrot.lane.b32.xlu0 %v1708, 108
      %v1740 = vpop.permute.xlu0 %1739
      %1743 = vrot.lane.b32.xlu0 %v1703, 104
      %v1744 = vpop.permute.xlu0 %1743
      %1745 = vrot.lane.b32.xlu0 %v1708, 104
      %v1746 = vpop.permute.xlu0 %1745
      %1749 = vrot.lane.b32.xlu0 %v1703, 100
      %v1750 = vpop.permute.xlu0 %1749
      %1751 = vrot.lane.b32.xlu0 %v1708, 100
      %v1752 = vpop.permute.xlu0 %1751
      %1755 = vrot.lane.b32.xlu0 %v1703, 96
      %v1756 = vpop.permute.xlu0 %1755
      %1757 = vrot.lane.b32.xlu0 %v1708, 96
      %v1758 = vpop.permute.xlu0 %1757
      %1761 = vrot.lane.b32.xlu0 %v1703, 92
      %v1762 = vpop.permute.xlu0 %1761
      %1763 = vrot.lane.b32.xlu0 %v1708, 92
      %v1764 = vpop.permute.xlu0 %1763
      %1767 = vrot.lane.b32.xlu0 %v1703, 88
      %v1768 = vpop.permute.xlu0 %1767
      %1769 = vrot.lane.b32.xlu0 %v1708, 88
      %v1770 = vpop.permute.xlu0 %1769
      %1773 = vrot.lane.b32.xlu0 %v1703, 84
      %v1774 = vpop.permute.xlu0 %1773
      %1775 = vrot.lane.b32.xlu0 %v1708, 84
      %v1776 = vpop.permute.xlu0 %1775
      %1779 = vrot.lane.b32.xlu0 %v1703, 80
      %v1780 = vpop.permute.xlu0 %1779
      %1781 = vrot.lane.b32.xlu0 %v1708, 80
      %v1782 = vpop.permute.xlu0 %1781
      %1785 = vrot.lane.b32.xlu0 %v1703, 76
      %v1786 = vpop.permute.xlu0 %1785
      %1787 = vrot.lane.b32.xlu0 %v1708, 76
      %v1788 = vpop.permute.xlu0 %1787
      %1791 = vrot.lane.b32.xlu0 %v1703, 72
      %v1792 = vpop.permute.xlu0 %1791
      %1793 = vrot.lane.b32.xlu0 %v1708, 72
      %v1794 = vpop.permute.xlu0 %1793
      %1797 = vrot.lane.b32.xlu0 %v1703, 68
      %v1798 = vpop.permute.xlu0 %1797
      %1799 = vrot.lane.b32.xlu0 %v1708, 68
      %v1800 = vpop.permute.xlu0 %1799
      %v1803 = vcombine.low %v1703, %v1720
      %v1804 = vcombine.high %v1703, %v1720
      %v1806 = vunpack.c.l.s4 1983009808
      %v1807 = vunpack.c.0.s8 %v1806
      %v1808 = vlaneseq
      %v1809 = vshrl.u32 %v1808, 7
      %v1810 = vsub.s32 %v1807, %v1809
      %v1811 = vrot.slane %v1803, %v1810
      %v1813 = vunpack.c.l.s4 1983009808
      %v1814 = vunpack.c.0.s8 %v1813
      %v1815 = vlaneseq
      %v1816 = vshrl.u32 %v1815, 7
      %v1817 = vsub.s32 %v1814, %v1816
      %v1818 = vrot.slane %v1804, %v1817
      %v1819 = vcombine.low %v1714, %v1726
      %v1820 = vcombine.high %v1714, %v1726
      %v1822 = vunpack.c.l.s4 1983009808
      %v1823 = vunpack.c.0.s8 %v1822
      %v1824 = vlaneseq
      %v1825 = vshrl.u32 %v1824, 7
      %v1826 = vsub.s32 %v1823, %v1825
      %v1827 = vrot.slane %v1819, %v1826
      %v1829 = vunpack.c.l.s4 1983009808
      %v1830 = vunpack.c.0.s8 %v1829
      %v1831 = vlaneseq
      %v1832 = vshrl.u32 %v1831, 7
      %v1833 = vsub.s32 %v1830, %v1832
      %v1834 = vrot.slane %v1820, %v1833
      %v1835 = vcombine.low %v1732, %v1744
      %v1836 = vcombine.high %v1732, %v1744
      %v1838 = vunpack.c.l.s4 1983009808
      %v1839 = vunpack.c.0.s8 %v1838
      %v1840 = vlaneseq
      %v1841 = vshrl.u32 %v1840, 7
      %v1842 = vsub.s32 %v1839, %v1841
      %v1843 = vrot.slane %v1835, %v1842
      %v1845 = vunpack.c.l.s4 1983009808
      %v1846 = vunpack.c.0.s8 %v1845
      %v1847 = vlaneseq
      %v1848 = vshrl.u32 %v1847, 7
      %v1849 = vsub.s32 %v1846, %v1848
      %v1850 = vrot.slane %v1836, %v1849
      %v1851 = vcombine.low %v1738, %v1750
      %v1852 = vcombine.high %v1738, %v1750
      %v1854 = vunpack.c.l.s4 1983009808
      %v1855 = vunpack.c.0.s8 %v1854
      %v1856 = vlaneseq
      %v1857 = vshrl.u32 %v1856, 7
      %v1858 = vsub.s32 %v1855, %v1857
      %v1859 = vrot.slane %v1851, %v1858
      %v1861 = vunpack.c.l.s4 1983009808
      %v1862 = vunpack.c.0.s8 %v1861
      %v1863 = vlaneseq
      %v1864 = vshrl.u32 %v1863, 7
      %v1865 = vsub.s32 %v1862, %v1864
      %v1866 = vrot.slane %v1852, %v1865
      %v1867 = vcombine.low %v1811, %v1827
      %v1868 = vcombine.high %v1811, %v1827
      %v1870 = vunpack.c.l.s4 1934713408
      %v1871 = vunpack.c.0.s8 %v1870
      %v1872 = vlaneseq
      %v1873 = vshrl.u32 %v1872, 7
      %v1874 = vsub.s32 %v1871, %v1873
      %v1875 = vrot.slane %v1867, %v1874
      %v1877 = vunpack.c.l.s4 1934713408
      %v1878 = vunpack.c.0.s8 %v1877
      %v1879 = vlaneseq
      %v1880 = vshrl.u32 %v1879, 7
      %v1881 = vsub.s32 %v1878, %v1880
      %v1882 = vrot.slane %v1868, %v1881
      %v1883 = vcombine.low %v1818, %v1834
      %v1884 = vcombine.high %v1818, %v1834
      %v1886 = vunpack.c.l.s4 1934713408
      %v1887 = vunpack.c.0.s8 %v1886
      %v1888 = vlaneseq
      %v1889 = vshrl.u32 %v1888, 7
      %v1890 = vsub.s32 %v1887, %v1889
      %v1891 = vrot.slane %v1883, %v1890
      %v1893 = vunpack.c.l.s4 1934713408
      %v1894 = vunpack.c.0.s8 %v1893
      %v1895 = vlaneseq
      %v1896 = vshrl.u32 %v1895, 7
      %v1897 = vsub.s32 %v1894, %v1896
      %v1898 = vrot.slane %v1884, %v1897
      %v1899 = vcombine.low %v1843, %v1859
      %v1900 = vcombine.high %v1843, %v1859
      %v1902 = vunpack.c.l.s4 1934713408
      %v1903 = vunpack.c.0.s8 %v1902
      %v1904 = vlaneseq
      %v1905 = vshrl.u32 %v1904, 7
      %v1906 = vsub.s32 %v1903, %v1905
      %v1907 = vrot.slane %v1899, %v1906
      %v1909 = vunpack.c.l.s4 1934713408
      %v1910 = vunpack.c.0.s8 %v1909
      %v1911 = vlaneseq
      %v1912 = vshrl.u32 %v1911, 7
      %v1913 = vsub.s32 %v1910, %v1912
      %v1914 = vrot.slane %v1900, %v1913
      %v1915 = vcombine.low %v1850, %v1866
      %v1916 = vcombine.high %v1850, %v1866
      %v1918 = vunpack.c.l.s4 1934713408
      %v1919 = vunpack.c.0.s8 %v1918
      %v1920 = vlaneseq
      %v1921 = vshrl.u32 %v1920, 7
      %v1922 = vsub.s32 %v1919, %v1921
      %v1923 = vrot.slane %v1915, %v1922
      %v1925 = vunpack.c.l.s4 1934713408
      %v1926 = vunpack.c.0.s8 %v1925
      %v1927 = vlaneseq
      %v1928 = vshrl.u32 %v1927, 7
      %v1929 = vsub.s32 %v1926, %v1928
      %v1930 = vrot.slane %v1916, %v1929
      %v1931 = vcombine.low %v1875, %v1907
      %v1932 = vcombine.high %v1875, %v1907
      %v1933 = vcombine.low %v1882, %v1914
      %v1934 = vcombine.high %v1882, %v1914
      %v1935 = vcombine.low %v1891, %v1923
      %v1936 = vcombine.high %v1891, %v1923
      %v1937 = vcombine.low %v1898, %v1930
      %v1938 = vcombine.high %v1898, %v1930
      %v1939 = vcombine.low %v1756, %v1768
      %v1940 = vcombine.high %v1756, %v1768
      %v1942 = vunpack.c.l.s4 1983009808
      %v1943 = vunpack.c.0.s8 %v1942
      %v1944 = vlaneseq
      %v1945 = vshrl.u32 %v1944, 7
      %v1946 = vsub.s32 %v1943, %v1945
      %v1947 = vrot.slane %v1939, %v1946
      %v1949 = vunpack.c.l.s4 1983009808
      %v1950 = vunpack.c.0.s8 %v1949
      %v1951 = vlaneseq
      %v1952 = vshrl.u32 %v1951, 7
      %v1953 = vsub.s32 %v1950, %v1952
      %v1954 = vrot.slane %v1940, %v1953
      %v1955 = vcombine.low %v1762, %v1774
      %v1956 = vcombine.high %v1762, %v1774
      %v1958 = vunpack.c.l.s4 1983009808
      %v1959 = vunpack.c.0.s8 %v1958
      %v1960 = vlaneseq
      %v1961 = vshrl.u32 %v1960, 7
      %v1962 = vsub.s32 %v1959, %v1961
      %v1963 = vrot.slane %v1955, %v1962
      %v1965 = vunpack.c.l.s4 1983009808
      %v1966 = vunpack.c.0.s8 %v1965
      %v1967 = vlaneseq
      %v1968 = vshrl.u32 %v1967, 7
      %v1969 = vsub.s32 %v1966, %v1968
      %v1970 = vrot.slane %v1956, %v1969
      %v1971 = vcombine.low %v1780, %v1792
      %v1972 = vcombine.high %v1780, %v1792
      %v1974 = vunpack.c.l.s4 1983009808
      %v1975 = vunpack.c.0.s8 %v1974
      %v1976 = vlaneseq
      %v1977 = vshrl.u32 %v1976, 7
      %v1978 = vsub.s32 %v1975, %v1977
      %v1979 = vrot.slane %v1971, %v1978
      %v1981 = vunpack.c.l.s4 1983009808
      %v1982 = vunpack.c.0.s8 %v1981
      %v1983 = vlaneseq
      %v1984 = vshrl.u32 %v1983, 7
      %v1985 = vsub.s32 %v1982, %v1984
      %v1986 = vrot.slane %v1972, %v1985
      %v1987 = vcombine.low %v1786, %v1798
      %v1988 = vcombine.high %v1786, %v1798
      %v1990 = vunpack.c.l.s4 1983009808
      %v1991 = vunpack.c.0.s8 %v1990
      %v1992 = vlaneseq
      %v1993 = vshrl.u32 %v1992, 7
      %v1994 = vsub.s32 %v1991, %v1993
      %v1995 = vrot.slane %v1987, %v1994
      %v1997 = vunpack.c.l.s4 1983009808
      %v1998 = vunpack.c.0.s8 %v1997
      %v1999 = vlaneseq
      %v2000 = vshrl.u32 %v1999, 7
      %v2001 = vsub.s32 %v1998, %v2000
      %v2002 = vrot.slane %v1988, %v2001
      %v2003 = vcombine.low %v1947, %v1963
      %v2004 = vcombine.high %v1947, %v1963
      %v2006 = vunpack.c.l.s4 1934713408
      %v2007 = vunpack.c.0.s8 %v2006
      %v2008 = vlaneseq
      %v2009 = vshrl.u32 %v2008, 7
      %v2010 = vsub.s32 %v2007, %v2009
      %v2011 = vrot.slane %v2003, %v2010
      %v2013 = vunpack.c.l.s4 1934713408
      %v2014 = vunpack.c.0.s8 %v2013
      %v2015 = vlaneseq
      %v2016 = vshrl.u32 %v2015, 7
      %v2017 = vsub.s32 %v2014, %v2016
      %v2018 = vrot.slane %v2004, %v2017
      %v2019 = vcombine.low %v1954, %v1970
      %v2020 = vcombine.high %v1954, %v1970
      %v2022 = vunpack.c.l.s4 1934713408
      %v2023 = vunpack.c.0.s8 %v2022
      %v2024 = vlaneseq
      %v2025 = vshrl.u32 %v2024, 7
      %v2026 = vsub.s32 %v2023, %v2025
      %v2027 = vrot.slane %v2019, %v2026
      %v2029 = vunpack.c.l.s4 1934713408
      %v2030 = vunpack.c.0.s8 %v2029
      %v2031 = vlaneseq
      %v2032 = vshrl.u32 %v2031, 7
      %v2033 = vsub.s32 %v2030, %v2032
      %v2034 = vrot.slane %v2020, %v2033
      %v2035 = vcombine.low %v1979, %v1995
      %v2036 = vcombine.high %v1979, %v1995
      %v2038 = vunpack.c.l.s4 1934713408
      %v2039 = vunpack.c.0.s8 %v2038
      %v2040 = vlaneseq
      %v2041 = vshrl.u32 %v2040, 7
      %v2042 = vsub.s32 %v2039, %v2041
      %v2043 = vrot.slane %v2035, %v2042
      %v2045 = vunpack.c.l.s4 1934713408
      %v2046 = vunpack.c.0.s8 %v2045
      %v2047 = vlaneseq
      %v2048 = vshrl.u32 %v2047, 7
      %v2049 = vsub.s32 %v2046, %v2048
      %v2050 = vrot.slane %v2036, %v2049
      %v2051 = vcombine.low %v1986, %v2002
      %v2052 = vcombine.high %v1986, %v2002
      %v2054 = vunpack.c.l.s4 1934713408
      %v2055 = vunpack.c.0.s8 %v2054
      %v2056 = vlaneseq
      %v2057 = vshrl.u32 %v2056, 7
      %v2058 = vsub.s32 %v2055, %v2057
      %v2059 = vrot.slane %v2051, %v2058
      %v2061 = vunpack.c.l.s4 1934713408
      %v2062 = vunpack.c.0.s8 %v2061
      %v2063 = vlaneseq
      %v2064 = vshrl.u32 %v2063, 7
      %v2065 = vsub.s32 %v2062, %v2064
      %v2066 = vrot.slane %v2052, %v2065
      %v2067 = vcombine.low %v2011, %v2043
      %v2068 = vcombine.high %v2011, %v2043
      %v2069 = vcombine.low %v2018, %v2050
      %v2070 = vcombine.high %v2018, %v2050
      %v2071 = vcombine.low %v2027, %v2059
      %v2072 = vcombine.high %v2027, %v2059
      %v2073 = vcombine.low %v2034, %v2066
      %v2074 = vcombine.high %v2034, %v2066
      %v2075 = vcombine.low %v1708, %v1722
      %v2076 = vcombine.high %v1708, %v1722
      %v2078 = vunpack.c.l.s4 1983009808
      %v2079 = vunpack.c.0.s8 %v2078
      %v2080 = vlaneseq
      %v2081 = vshrl.u32 %v2080, 7
      %v2082 = vsub.s32 %v2079, %v2081
      %v2083 = vrot.slane %v2075, %v2082
      %v2085 = vunpack.c.l.s4 1983009808
      %v2086 = vunpack.c.0.s8 %v2085
      %v2087 = vlaneseq
      %v2088 = vshrl.u32 %v2087, 7
      %v2089 = vsub.s32 %v2086, %v2088
      %v2090 = vrot.slane %v2076, %v2089
      %v2091 = vcombine.low %v1716, %v1728
      %v2092 = vcombine.high %v1716, %v1728
      %v2094 = vunpack.c.l.s4 1983009808
      %v2095 = vunpack.c.0.s8 %v2094
      %v2096 = vlaneseq
      %v2097 = vshrl.u32 %v2096, 7
      %v2098 = vsub.s32 %v2095, %v2097
      %v2099 = vrot.slane %v2091, %v2098
      %v2101 = vunpack.c.l.s4 1983009808
      %v2102 = vunpack.c.0.s8 %v2101
      %v2103 = vlaneseq
      %v2104 = vshrl.u32 %v2103, 7
      %v2105 = vsub.s32 %v2102, %v2104
      %v2106 = vrot.slane %v2092, %v2105
      %v2107 = vcombine.low %v1734, %v1746
      %v2108 = vcombine.high %v1734, %v1746
      %v2110 = vunpack.c.l.s4 1983009808
      %v2111 = vunpack.c.0.s8 %v2110
      %v2112 = vlaneseq
      %v2113 = vshrl.u32 %v2112, 7
      %v2114 = vsub.s32 %v2111, %v2113
      %v2115 = vrot.slane %v2107, %v2114
      %v2117 = vunpack.c.l.s4 1983009808
      %v2118 = vunpack.c.0.s8 %v2117
      %v2119 = vlaneseq
      %v2120 = vshrl.u32 %v2119, 7
      %v2121 = vsub.s32 %v2118, %v2120
      %v2122 = vrot.slane %v2108, %v2121
      %v2123 = vcombine.low %v1740, %v1752
      %v2124 = vcombine.high %v1740, %v1752
      %v2126 = vunpack.c.l.s4 1983009808
      %v2127 = vunpack.c.0.s8 %v2126
      %v2128 = vlaneseq
      %v2129 = vshrl.u32 %v2128, 7
      %v2130 = vsub.s32 %v2127, %v2129
      %v2131 = vrot.slane %v2123, %v2130
      %v2133 = vunpack.c.l.s4 1983009808
      %v2134 = vunpack.c.0.s8 %v2133
      %v2135 = vlaneseq
      %v2136 = vshrl.u32 %v2135, 7
      %v2137 = vsub.s32 %v2134, %v2136
      %v2138 = vrot.slane %v2124, %v2137
      %v2139 = vcombine.low %v2083, %v2099
      %v2140 = vcombine.high %v2083, %v2099
      %v2142 = vunpack.c.l.s4 1934713408
      %v2143 = vunpack.c.0.s8 %v2142
      %v2144 = vlaneseq
      %v2145 = vshrl.u32 %v2144, 7
      %v2146 = vsub.s32 %v2143, %v2145
      %v2147 = vrot.slane %v2139, %v2146
      %v2149 = vunpack.c.l.s4 1934713408
      %v2150 = vunpack.c.0.s8 %v2149
      %v2151 = vlaneseq
      %v2152 = vshrl.u32 %v2151, 7
      %v2153 = vsub.s32 %v2150, %v2152
      %v2154 = vrot.slane %v2140, %v2153
      %v2155 = vcombine.low %v2090, %v2106
      %v2156 = vcombine.high %v2090, %v2106
      %v2158 = vunpack.c.l.s4 1934713408
      %v2159 = vunpack.c.0.s8 %v2158
      %v2160 = vlaneseq
      %v2161 = vshrl.u32 %v2160, 7
      %v2162 = vsub.s32 %v2159, %v2161
      %v2163 = vrot.slane %v2155, %v2162
      %v2165 = vunpack.c.l.s4 1934713408
      %v2166 = vunpack.c.0.s8 %v2165
      %v2167 = vlaneseq
      %v2168 = vshrl.u32 %v2167, 7
      %v2169 = vsub.s32 %v2166, %v2168
      %v2170 = vrot.slane %v2156, %v2169
      %v2171 = vcombine.low %v2115, %v2131
      %v2172 = vcombine.high %v2115, %v2131
      %v2174 = vunpack.c.l.s4 1934713408
      %v2175 = vunpack.c.0.s8 %v2174
      %v2176 = vlaneseq
      %v2177 = vshrl.u32 %v2176, 7
      %v2178 = vsub.s32 %v2175, %v2177
      %v2179 = vrot.slane %v2171, %v2178
      %v2181 = vunpack.c.l.s4 1934713408
      %v2182 = vunpack.c.0.s8 %v2181
      %v2183 = vlaneseq
      %v2184 = vshrl.u32 %v2183, 7
      %v2185 = vsub.s32 %v2182, %v2184
      %v2186 = vrot.slane %v2172, %v2185
      %v2187 = vcombine.low %v2122, %v2138
      %v2188 = vcombine.high %v2122, %v2138
      %v2190 = vunpack.c.l.s4 1934713408
      %v2191 = vunpack.c.0.s8 %v2190
      %v2192 = vlaneseq
      %v2193 = vshrl.u32 %v2192, 7
      %v2194 = vsub.s32 %v2191, %v2193
      %v2195 = vrot.slane %v2187, %v2194
      %v2197 = vunpack.c.l.s4 1934713408
      %v2198 = vunpack.c.0.s8 %v2197
      %v2199 = vlaneseq
      %v2200 = vshrl.u32 %v2199, 7
      %v2201 = vsub.s32 %v2198, %v2200
      %v2202 = vrot.slane %v2188, %v2201
      %v2203 = vcombine.low %v2147, %v2179
      %v2204 = vcombine.high %v2147, %v2179
      %v2205 = vcombine.low %v2154, %v2186
      %v2206 = vcombine.high %v2154, %v2186
      %v2207 = vcombine.low %v2163, %v2195
      %v2208 = vcombine.high %v2163, %v2195
      %v2209 = vcombine.low %v2170, %v2202
      %v2210 = vcombine.high %v2170, %v2202
      %v2211 = vcombine.low %v1758, %v1770
      %v2212 = vcombine.high %v1758, %v1770
      %v2214 = vunpack.c.l.s4 1983009808
      %v2215 = vunpack.c.0.s8 %v2214
      %v2216 = vlaneseq
      %v2217 = vshrl.u32 %v2216, 7
      %v2218 = vsub.s32 %v2215, %v2217
      %v2219 = vrot.slane %v2211, %v2218
      %v2221 = vunpack.c.l.s4 1983009808
      %v2222 = vunpack.c.0.s8 %v2221
      %v2223 = vlaneseq
      %v2224 = vshrl.u32 %v2223, 7
      %v2225 = vsub.s32 %v2222, %v2224
      %v2226 = vrot.slane %v2212, %v2225
      %v2227 = vcombine.low %v1764, %v1776
      %v2228 = vcombine.high %v1764, %v1776
      %v2230 = vunpack.c.l.s4 1983009808
      %v2231 = vunpack.c.0.s8 %v2230
      %v2232 = vlaneseq
      %v2233 = vshrl.u32 %v2232, 7
      %v2234 = vsub.s32 %v2231, %v2233
      %v2235 = vrot.slane %v2227, %v2234
      %v2237 = vunpack.c.l.s4 1983009808
      %v2238 = vunpack.c.0.s8 %v2237
      %v2239 = vlaneseq
      %v2240 = vshrl.u32 %v2239, 7
      %v2241 = vsub.s32 %v2238, %v2240
      %v2242 = vrot.slane %v2228, %v2241
      %v2243 = vcombine.low %v1782, %v1794
      %v2244 = vcombine.high %v1782, %v1794
      %v2246 = vunpack.c.l.s4 1983009808
      %v2247 = vunpack.c.0.s8 %v2246
      %v2248 = vlaneseq
      %v2249 = vshrl.u32 %v2248, 7
      %v2250 = vsub.s32 %v2247, %v2249
      %v2251 = vrot.slane %v2243, %v2250
      %v2253 = vunpack.c.l.s4 1983009808
      %v2254 = vunpack.c.0.s8 %v2253
      %v2255 = vlaneseq
      %v2256 = vshrl.u32 %v2255, 7
      %v2257 = vsub.s32 %v2254, %v2256
      %v2258 = vrot.slane %v2244, %v2257
      %v2259 = vcombine.low %v1788, %v1800
      %v2260 = vcombine.high %v1788, %v1800
      %v2262 = vunpack.c.l.s4 1983009808
      %v2263 = vunpack.c.0.s8 %v2262
      %v2264 = vlaneseq
      %v2265 = vshrl.u32 %v2264, 7
      %v2266 = vsub.s32 %v2263, %v2265
      %v2267 = vrot.slane %v2259, %v2266
      %v2269 = vunpack.c.l.s4 1983009808
      %v2270 = vunpack.c.0.s8 %v2269
      %v2271 = vlaneseq
      %v2272 = vshrl.u32 %v2271, 7
      %v2273 = vsub.s32 %v2270, %v2272
      %v2274 = vrot.slane %v2260, %v2273
      %v2275 = vcombine.low %v2219, %v2235
      %v2276 = vcombine.high %v2219, %v2235
      %v2278 = vunpack.c.l.s4 1934713408
      %v2279 = vunpack.c.0.s8 %v2278
      %v2280 = vlaneseq
      %v2281 = vshrl.u32 %v2280, 7
      %v2282 = vsub.s32 %v2279, %v2281
      %v2283 = vrot.slane %v2275, %v2282
      %v2285 = vunpack.c.l.s4 1934713408
      %v2286 = vunpack.c.0.s8 %v2285
      %v2287 = vlaneseq
      %v2288 = vshrl.u32 %v2287, 7
      %v2289 = vsub.s32 %v2286, %v2288
      %v2290 = vrot.slane %v2276, %v2289
      %v2291 = vcombine.low %v2226, %v2242
      %v2292 = vcombine.high %v2226, %v2242
      %v2294 = vunpack.c.l.s4 1934713408
      %v2295 = vunpack.c.0.s8 %v2294
      %v2296 = vlaneseq
      %v2297 = vshrl.u32 %v2296, 7
      %v2298 = vsub.s32 %v2295, %v2297
      %v2299 = vrot.slane %v2291, %v2298
      %v2301 = vunpack.c.l.s4 1934713408
      %v2302 = vunpack.c.0.s8 %v2301
      %v2303 = vlaneseq
      %v2304 = vshrl.u32 %v2303, 7
      %v2305 = vsub.s32 %v2302, %v2304
      %v2306 = vrot.slane %v2292, %v2305
      %v2307 = vcombine.low %v2251, %v2267
      %v2308 = vcombine.high %v2251, %v2267
      %v2310 = vunpack.c.l.s4 1934713408
      %v2311 = vunpack.c.0.s8 %v2310
      %v2312 = vlaneseq
      %v2313 = vshrl.u32 %v2312, 7
      %v2314 = vsub.s32 %v2311, %v2313
      %v2315 = vrot.slane %v2307, %v2314
      %v2317 = vunpack.c.l.s4 1934713408
      %v2318 = vunpack.c.0.s8 %v2317
      %v2319 = vlaneseq
      %v2320 = vshrl.u32 %v2319, 7
      %v2321 = vsub.s32 %v2318, %v2320
      %v2322 = vrot.slane %v2308, %v2321
      %v2323 = vcombine.low %v2258, %v2274
      %v2324 = vcombine.high %v2258, %v2274
      %v2326 = vunpack.c.l.s4 1934713408
      %v2327 = vunpack.c.0.s8 %v2326
      %v2328 = vlaneseq
      %v2329 = vshrl.u32 %v2328, 7
      %v2330 = vsub.s32 %v2327, %v2329
      %v2331 = vrot.slane %v2323, %v2330
      %v2333 = vunpack.c.l.s4 1934713408
      %v2334 = vunpack.c.0.s8 %v2333
      %v2335 = vlaneseq
      %v2336 = vshrl.u32 %v2335, 7
      %v2337 = vsub.s32 %v2334, %v2336
      %v2338 = vrot.slane %v2324, %v2337
      %v2339 = vcombine.low %v2283, %v2315
      %v2340 = vcombine.high %v2283, %v2315
      %v2341 = vcombine.low %v2290, %v2322
      %v2342 = vcombine.high %v2290, %v2322
      %v2343 = vcombine.low %v2299, %v2331
      %v2344 = vcombine.high %v2299, %v2331
      %v2345 = vcombine.low %v2306, %v2338
      %v2346 = vcombine.high %v2306, %v2338
      %v2347 = vld [vmem:[%s343] sm:$0xff]
      %v2348 = vld [vmem:[%s343 + $0x8] sm:$0xff]
      %v2349 = vld [vmem:[%s343 + $0x10] sm:$0xff]
      %v2350 = vld [vmem:[%s343 + $0x18] sm:$0xff]
      %v2351 = vld [vmem:[%s343 + $0x20] sm:$0xff]
      %v2352 = vld [vmem:[%s343 + $0x28] sm:$0xff]
      %v2353 = vld [vmem:[%s343 + $0x30] sm:$0xff]
      %v2354 = vld [vmem:[%s343 + $0x38] sm:$0xff]
      %v2355 = vld [vmem:[%s343 + $0x40] sm:$0xff]
      %v2356 = vld [vmem:[%s343 + $0x48] sm:$0xff]
      %v2357 = vld [vmem:[%s343 + $0x50] sm:$0xff]
      %v2358 = vld [vmem:[%s343 + $0x58] sm:$0xff]
      %v2359 = vld [vmem:[%s343 + $0x60] sm:$0xff]
      %v2360 = vld [vmem:[%s343 + $0x68] sm:$0xff]
      %v2361 = vld [vmem:[%s343 + $0x70] sm:$0xff]
      %v2362 = vld [vmem:[%s343 + $0x78] sm:$0xff]
      %v2363 = vld [vmem:[%s343 + $0x80] sm:$0xff]
      %v2364 = vld [vmem:[%s343 + $0x88] sm:$0xff]
      %v2365 = vld [vmem:[%s343 + $0x90] sm:$0xff]
      %v2366 = vld [vmem:[%s343 + $0x98] sm:$0xff]
      %v2367 = vld [vmem:[%s343 + $0xa0] sm:$0xff]
      %v2368 = vld [vmem:[%s343 + $0xa8] sm:$0xff]
      %v2369 = vld [vmem:[%s343 + $0xb0] sm:$0xff]
      %v2370 = vld [vmem:[%s343 + $0xb8] sm:$0xff]
      %v2371 = vld [vmem:[%s343 + $0xc0] sm:$0xff]
      %v2372 = vld [vmem:[%s343 + $0xc8] sm:$0xff]
      %v2373 = vld [vmem:[%s343 + $0xd0] sm:$0xff]
      %v2374 = vld [vmem:[%s343 + $0xd8] sm:$0xff]
      %v2375 = vld [vmem:[%s343 + $0xe0] sm:$0xff]
      %v2376 = vld [vmem:[%s343 + $0xe8] sm:$0xff]
      %v2377 = vld [vmem:[%s343 + $0xf0] sm:$0xff]
      %v2378 = vld [vmem:[%s343 + $0xf8] sm:$0xff]
      %v2379 = vcombine.low %v2347, %v2351
      %v2380 = vcombine.high %v2347, %v2351
      %v2382 = vunpack.c.l.s4 1983009808
      %v2383 = vunpack.c.0.s8 %v2382
      %v2384 = vlaneseq
      %v2385 = vshrl.u32 %v2384, 7
      %v2386 = vsub.s32 %v2383, %v2385
      %v2387 = vrot.slane %v2379, %v2386
      %v2389 = vunpack.c.l.s4 1983009808
      %v2390 = vunpack.c.0.s8 %v2389
      %v2391 = vlaneseq
      %v2392 = vshrl.u32 %v2391, 7
      %v2393 = vsub.s32 %v2390, %v2392
      %v2394 = vrot.slane %v2380, %v2393
      %v2395 = vcombine.low %v2349, %v2353
      %v2396 = vcombine.high %v2349, %v2353
      %v2398 = vunpack.c.l.s4 1983009808
      %v2399 = vunpack.c.0.s8 %v2398
      %v2400 = vlaneseq
      %v2401 = vshrl.u32 %v2400, 7
      %v2402 = vsub.s32 %v2399, %v2401
      %v2403 = vrot.slane %v2395, %v2402
      %v2405 = vunpack.c.l.s4 1983009808
      %v2406 = vunpack.c.0.s8 %v2405
      %v2407 = vlaneseq
      %v2408 = vshrl.u32 %v2407, 7
      %v2409 = vsub.s32 %v2406, %v2408
      %v2410 = vrot.slane %v2396, %v2409
      %v2411 = vcombine.low %v2355, %v2359
      %v2412 = vcombine.high %v2355, %v2359
      %v2414 = vunpack.c.l.s4 1983009808
      %v2415 = vunpack.c.0.s8 %v2414
      %v2416 = vlaneseq
      %v2417 = vshrl.u32 %v2416, 7
      %v2418 = vsub.s32 %v2415, %v2417
      %v2419 = vrot.slane %v2411, %v2418
      %v2421 = vunpack.c.l.s4 1983009808
      %v2422 = vunpack.c.0.s8 %v2421
      %v2423 = vlaneseq
      %v2424 = vshrl.u32 %v2423, 7
      %v2425 = vsub.s32 %v2422, %v2424
      %v2426 = vrot.slane %v2412, %v2425
      %v2427 = vcombine.low %v2357, %v2361
      %v2428 = vcombine.high %v2357, %v2361
      %v2430 = vunpack.c.l.s4 1983009808
      %v2431 = vunpack.c.0.s8 %v2430
      %v2432 = vlaneseq
      %v2433 = vshrl.u32 %v2432, 7
      %v2434 = vsub.s32 %v2431, %v2433
      %v2435 = vrot.slane %v2427, %v2434
      %v2437 = vunpack.c.l.s4 1983009808
      %v2438 = vunpack.c.0.s8 %v2437
      %v2439 = vlaneseq
      %v2440 = vshrl.u32 %v2439, 7
      %v2441 = vsub.s32 %v2438, %v2440
      %v2442 = vrot.slane %v2428, %v2441
      %v2443 = vcombine.low %v2387, %v2403
      %v2444 = vcombine.high %v2387, %v2403
      %v2446 = vunpack.c.l.s4 1934713408
      %v2447 = vunpack.c.0.s8 %v2446
      %v2448 = vlaneseq
      %v2449 = vshrl.u32 %v2448, 7
      %v2450 = vsub.s32 %v2447, %v2449
      %v2451 = vrot.slane %v2443, %v2450
      %v2453 = vunpack.c.l.s4 1934713408
      %v2454 = vunpack.c.0.s8 %v2453
      %v2455 = vlaneseq
      %v2456 = vshrl.u32 %v2455, 7
      %v2457 = vsub.s32 %v2454, %v2456
      %v2458 = vrot.slane %v2444, %v2457
      %v2459 = vcombine.low %v2394, %v2410
      %v2460 = vcombine.high %v2394, %v2410
      %v2462 = vunpack.c.l.s4 1934713408
      %v2463 = vunpack.c.0.s8 %v2462
      %v2464 = vlaneseq
      %v2465 = vshrl.u32 %v2464, 7
      %v2466 = vsub.s32 %v2463, %v2465
      %v2467 = vrot.slane %v2459, %v2466
      %v2469 = vunpack.c.l.s4 1934713408
      %v2470 = vunpack.c.0.s8 %v2469
      %v2471 = vlaneseq
      %v2472 = vshrl.u32 %v2471, 7
      %v2473 = vsub.s32 %v2470, %v2472
      %v2474 = vrot.slane %v2460, %v2473
      %v2475 = vcombine.low %v2419, %v2435
      %v2476 = vcombine.high %v2419, %v2435
      %v2478 = vunpack.c.l.s4 1934713408
      %v2479 = vunpack.c.0.s8 %v2478
      %v2480 = vlaneseq
      %v2481 = vshrl.u32 %v2480, 7
      %v2482 = vsub.s32 %v2479, %v2481
      %v2483 = vrot.slane %v2475, %v2482
      %v2485 = vunpack.c.l.s4 1934713408
      %v2486 = vunpack.c.0.s8 %v2485
      %v2487 = vlaneseq
      %v2488 = vshrl.u32 %v2487, 7
      %v2489 = vsub.s32 %v2486, %v2488
      %v2490 = vrot.slane %v2476, %v2489
      %v2491 = vcombine.low %v2426, %v2442
      %v2492 = vcombine.high %v2426, %v2442
      %v2494 = vunpack.c.l.s4 1934713408
      %v2495 = vunpack.c.0.s8 %v2494
      %v2496 = vlaneseq
      %v2497 = vshrl.u32 %v2496, 7
      %v2498 = vsub.s32 %v2495, %v2497
      %v2499 = vrot.slane %v2491, %v2498
      %v2501 = vunpack.c.l.s4 1934713408
      %v2502 = vunpack.c.0.s8 %v2501
      %v2503 = vlaneseq
      %v2504 = vshrl.u32 %v2503, 7
      %v2505 = vsub.s32 %v2502, %v2504
      %v2506 = vrot.slane %v2492, %v2505
      %v2507 = vcombine.low %v2451, %v2483
      %v2508 = vcombine.high %v2451, %v2483
      %v2509 = vcombine.low %v2458, %v2490
      %v2510 = vcombine.high %v2458, %v2490
      %v2511 = vcombine.low %v2467, %v2499
      %v2512 = vcombine.high %v2467, %v2499
      %v2513 = vcombine.low %v2474, %v2506
      %v2514 = vcombine.high %v2474, %v2506
      %v2515 = vcombine.low %v2363, %v2367
      %v2516 = vcombine.high %v2363, %v2367
      %v2518 = vunpack.c.l.s4 1983009808
      %v2519 = vunpack.c.0.s8 %v2518
      %v2520 = vlaneseq
      %v2521 = vshrl.u32 %v2520, 7
      %v2522 = vsub.s32 %v2519, %v2521
      %v2523 = vrot.slane %v2515, %v2522
      %v2525 = vunpack.c.l.s4 1983009808
      %v2526 = vunpack.c.0.s8 %v2525
      %v2527 = vlaneseq
      %v2528 = vshrl.u32 %v2527, 7
      %v2529 = vsub.s32 %v2526, %v2528
      %v2530 = vrot.slane %v2516, %v2529
      %v2531 = vcombine.low %v2365, %v2369
      %v2532 = vcombine.high %v2365, %v2369
      %v2534 = vunpack.c.l.s4 1983009808
      %v2535 = vunpack.c.0.s8 %v2534
      %v2536 = vlaneseq
      %v2537 = vshrl.u32 %v2536, 7
      %v2538 = vsub.s32 %v2535, %v2537
      %v2539 = vrot.slane %v2531, %v2538
      %v2541 = vunpack.c.l.s4 1983009808
      %v2542 = vunpack.c.0.s8 %v2541
      %v2543 = vlaneseq
      %v2544 = vshrl.u32 %v2543, 7
      %v2545 = vsub.s32 %v2542, %v2544
      %v2546 = vrot.slane %v2532, %v2545
      %v2547 = vcombine.low %v2371, %v2375
      %v2548 = vcombine.high %v2371, %v2375
      %v2550 = vunpack.c.l.s4 1983009808
      %v2551 = vunpack.c.0.s8 %v2550
      %v2552 = vlaneseq
      %v2553 = vshrl.u32 %v2552, 7
      %v2554 = vsub.s32 %v2551, %v2553
      %v2555 = vrot.slane %v2547, %v2554
      %v2557 = vunpack.c.l.s4 1983009808
      %v2558 = vunpack.c.0.s8 %v2557
      %v2559 = vlaneseq
      %v2560 = vshrl.u32 %v2559, 7
      %v2561 = vsub.s32 %v2558, %v2560
      %v2562 = vrot.slane %v2548, %v2561
      %v2563 = vcombine.low %v2373, %v2377
      %v2564 = vcombine.high %v2373, %v2377
      %v2566 = vunpack.c.l.s4 1983009808
      %v2567 = vunpack.c.0.s8 %v2566
      %v2568 = vlaneseq
      %v2569 = vshrl.u32 %v2568, 7
      %v2570 = vsub.s32 %v2567, %v2569
      %v2571 = vrot.slane %v2563, %v2570
      %v2573 = vunpack.c.l.s4 1983009808
      %v2574 = vunpack.c.0.s8 %v2573
      %v2575 = vlaneseq
      %v2576 = vshrl.u32 %v2575, 7
      %v2577 = vsub.s32 %v2574, %v2576
      %v2578 = vrot.slane %v2564, %v2577
      %v2579 = vcombine.low %v2523, %v2539
      %v2580 = vcombine.high %v2523, %v2539
      %v2582 = vunpack.c.l.s4 1934713408
      %v2583 = vunpack.c.0.s8 %v2582
      %v2584 = vlaneseq
      %v2585 = vshrl.u32 %v2584, 7
      %v2586 = vsub.s32 %v2583, %v2585
      %v2587 = vrot.slane %v2579, %v2586
      %v2589 = vunpack.c.l.s4 1934713408
      %v2590 = vunpack.c.0.s8 %v2589
      %v2591 = vlaneseq
      %v2592 = vshrl.u32 %v2591, 7
      %v2593 = vsub.s32 %v2590, %v2592
      %v2594 = vrot.slane %v2580, %v2593
      %v2595 = vcombine.low %v2530, %v2546
      %v2596 = vcombine.high %v2530, %v2546
      %v2598 = vunpack.c.l.s4 1934713408
      %v2599 = vunpack.c.0.s8 %v2598
      %v2600 = vlaneseq
      %v2601 = vshrl.u32 %v2600, 7
      %v2602 = vsub.s32 %v2599, %v2601
      %v2603 = vrot.slane %v2595, %v2602
      %v2605 = vunpack.c.l.s4 1934713408
      %v2606 = vunpack.c.0.s8 %v2605
      %v2607 = vlaneseq
      %v2608 = vshrl.u32 %v2607, 7
      %v2609 = vsub.s32 %v2606, %v2608
      %v2610 = vrot.slane %v2596, %v2609
      %v2611 = vcombine.low %v2555, %v2571
      %v2612 = vcombine.high %v2555, %v2571
      %v2614 = vunpack.c.l.s4 1934713408
      %v2615 = vunpack.c.0.s8 %v2614
      %v2616 = vlaneseq
      %v2617 = vshrl.u32 %v2616, 7
      %v2618 = vsub.s32 %v2615, %v2617
      %v2619 = vrot.slane %v2611, %v2618
      %v2621 = vunpack.c.l.s4 1934713408
      %v2622 = vunpack.c.0.s8 %v2621
      %v2623 = vlaneseq
      %v2624 = vshrl.u32 %v2623, 7
      %v2625 = vsub.s32 %v2622, %v2624
      %v2626 = vrot.slane %v2612, %v2625
      %v2627 = vcombine.low %v2562, %v2578
      %v2628 = vcombine.high %v2562, %v2578
      %v2630 = vunpack.c.l.s4 1934713408
      %v2631 = vunpack.c.0.s8 %v2630
      %v2632 = vlaneseq
      %v2633 = vshrl.u32 %v2632, 7
      %v2634 = vsub.s32 %v2631, %v2633
      %v2635 = vrot.slane %v2627, %v2634
      %v2637 = vunpack.c.l.s4 1934713408
      %v2638 = vunpack.c.0.s8 %v2637
      %v2639 = vlaneseq
      %v2640 = vshrl.u32 %v2639, 7
      %v2641 = vsub.s32 %v2638, %v2640
      %v2642 = vrot.slane %v2628, %v2641
      %v2643 = vcombine.low %v2587, %v2619
      %v2644 = vcombine.high %v2587, %v2619
      %v2645 = vcombine.low %v2594, %v2626
      %v2646 = vcombine.high %v2594, %v2626
      %v2647 = vcombine.low %v2603, %v2635
      %v2648 = vcombine.high %v2603, %v2635
      %v2649 = vcombine.low %v2610, %v2642
      %v2650 = vcombine.high %v2610, %v2642
      %v2651 = vcombine.low %v2348, %v2352
      %v2652 = vcombine.high %v2348, %v2352
      %v2654 = vunpack.c.l.s4 1983009808
      %v2655 = vunpack.c.0.s8 %v2654
      %v2656 = vlaneseq
      %v2657 = vshrl.u32 %v2656, 7
      %v2658 = vsub.s32 %v2655, %v2657
      %v2659 = vrot.slane %v2651, %v2658
      %v2661 = vunpack.c.l.s4 1983009808
      %v2662 = vunpack.c.0.s8 %v2661
      %v2663 = vlaneseq
      %v2664 = vshrl.u32 %v2663, 7
      %v2665 = vsub.s32 %v2662, %v2664
      %v2666 = vrot.slane %v2652, %v2665
      %v2667 = vcombine.low %v2350, %v2354
      %v2668 = vcombine.high %v2350, %v2354
      %v2670 = vunpack.c.l.s4 1983009808
      %v2671 = vunpack.c.0.s8 %v2670
      %v2672 = vlaneseq
      %v2673 = vshrl.u32 %v2672, 7
      %v2674 = vsub.s32 %v2671, %v2673
      %v2675 = vrot.slane %v2667, %v2674
      %v2677 = vunpack.c.l.s4 1983009808
      %v2678 = vunpack.c.0.s8 %v2677
      %v2679 = vlaneseq
      %v2680 = vshrl.u32 %v2679, 7
      %v2681 = vsub.s32 %v2678, %v2680
      %v2682 = vrot.slane %v2668, %v2681
      %v2683 = vcombine.low %v2356, %v2360
      %v2684 = vcombine.high %v2356, %v2360
      %v2686 = vunpack.c.l.s4 1983009808
      %v2687 = vunpack.c.0.s8 %v2686
      %v2688 = vlaneseq
      %v2689 = vshrl.u32 %v2688, 7
      %v2690 = vsub.s32 %v2687, %v2689
      %v2691 = vrot.slane %v2683, %v2690
      %v2693 = vunpack.c.l.s4 1983009808
      %v2694 = vunpack.c.0.s8 %v2693
      %v2695 = vlaneseq
      %v2696 = vshrl.u32 %v2695, 7
      %v2697 = vsub.s32 %v2694, %v2696
      %v2698 = vrot.slane %v2684, %v2697
      %v2699 = vcombine.low %v2358, %v2362
      %v2700 = vcombine.high %v2358, %v2362
      %v2702 = vunpack.c.l.s4 1983009808
      %v2703 = vunpack.c.0.s8 %v2702
      %v2704 = vlaneseq
      %v2705 = vshrl.u32 %v2704, 7
      %v2706 = vsub.s32 %v2703, %v2705
      %v2707 = vrot.slane %v2699, %v2706
      %v2709 = vunpack.c.l.s4 1983009808
      %v2710 = vunpack.c.0.s8 %v2709
      %v2711 = vlaneseq
      %v2712 = vshrl.u32 %v2711, 7
      %v2713 = vsub.s32 %v2710, %v2712
      %v2714 = vrot.slane %v2700, %v2713
      %v2715 = vcombine.low %v2659, %v2675
      %v2716 = vcombine.high %v2659, %v2675
      %v2718 = vunpack.c.l.s4 1934713408
      %v2719 = vunpack.c.0.s8 %v2718
      %v2720 = vlaneseq
      %v2721 = vshrl.u32 %v2720, 7
      %v2722 = vsub.s32 %v2719, %v2721
      %v2723 = vrot.slane %v2715, %v2722
      %v2725 = vunpack.c.l.s4 1934713408
      %v2726 = vunpack.c.0.s8 %v2725
      %v2727 = vlaneseq
      %v2728 = vshrl.u32 %v2727, 7
      %v2729 = vsub.s32 %v2726, %v2728
      %v2730 = vrot.slane %v2716, %v2729
      %v2731 = vcombine.low %v2666, %v2682
      %v2732 = vcombine.high %v2666, %v2682
      %v2734 = vunpack.c.l.s4 1934713408
      %v2735 = vunpack.c.0.s8 %v2734
      %v2736 = vlaneseq
      %v2737 = vshrl.u32 %v2736, 7
      %v2738 = vsub.s32 %v2735, %v2737
      %v2739 = vrot.slane %v2731, %v2738
      %v2741 = vunpack.c.l.s4 1934713408
      %v2742 = vunpack.c.0.s8 %v2741
      %v2743 = vlaneseq
      %v2744 = vshrl.u32 %v2743, 7
      %v2745 = vsub.s32 %v2742, %v2744
      %v2746 = vrot.slane %v2732, %v2745
      %v2747 = vcombine.low %v2691, %v2707
      %v2748 = vcombine.high %v2691, %v2707
      %v2750 = vunpack.c.l.s4 1934713408
      %v2751 = vunpack.c.0.s8 %v2750
      %v2752 = vlaneseq
      %v2753 = vshrl.u32 %v2752, 7
      %v2754 = vsub.s32 %v2751, %v2753
      %v2755 = vrot.slane %v2747, %v2754
      %v2757 = vunpack.c.l.s4 1934713408
      %v2758 = vunpack.c.0.s8 %v2757
      %v2759 = vlaneseq
      %v2760 = vshrl.u32 %v2759, 7
      %v2761 = vsub.s32 %v2758, %v2760
      %v2762 = vrot.slane %v2748, %v2761
      %v2763 = vcombine.low %v2698, %v2714
      %v2764 = vcombine.high %v2698, %v2714
      %v2766 = vunpack.c.l.s4 1934713408
      %v2767 = vunpack.c.0.s8 %v2766
      %v2768 = vlaneseq
      %v2769 = vshrl.u32 %v2768, 7
      %v2770 = vsub.s32 %v2767, %v2769
      %v2771 = vrot.slane %v2763, %v2770
      %v2773 = vunpack.c.l.s4 1934713408
      %v2774 = vunpack.c.0.s8 %v2773
      %v2775 = vlaneseq
      %v2776 = vshrl.u32 %v2775, 7
      %v2777 = vsub.s32 %v2774, %v2776
      %v2778 = vrot.slane %v2764, %v2777
      %v2779 = vcombine.low %v2723, %v2755
      %v2780 = vcombine.high %v2723, %v2755
      %v2781 = vcombine.low %v2730, %v2762
      %v2782 = vcombine.high %v2730, %v2762
      %v2783 = vcombine.low %v2739, %v2771
      %v2784 = vcombine.high %v2739, %v2771
      %v2785 = vcombine.low %v2746, %v2778
      %v2786 = vcombine.high %v2746, %v2778
      %v2787 = vcombine.low %v2364, %v2368
      %v2788 = vcombine.high %v2364, %v2368
      %v2790 = vunpack.c.l.s4 1983009808
      %v2791 = vunpack.c.0.s8 %v2790
      %v2792 = vlaneseq
      %v2793 = vshrl.u32 %v2792, 7
      %v2794 = vsub.s32 %v2791, %v2793
      %v2795 = vrot.slane %v2787, %v2794
      %v2797 = vunpack.c.l.s4 1983009808
      %v2798 = vunpack.c.0.s8 %v2797
      %v2799 = vlaneseq
      %v2800 = vshrl.u32 %v2799, 7
      %v2801 = vsub.s32 %v2798, %v2800
      %v2802 = vrot.slane %v2788, %v2801
      %v2803 = vcombine.low %v2366, %v2370
      %v2804 = vcombine.high %v2366, %v2370
      %v2806 = vunpack.c.l.s4 1983009808
      %v2807 = vunpack.c.0.s8 %v2806
      %v2808 = vlaneseq
      %v2809 = vshrl.u32 %v2808, 7
      %v2810 = vsub.s32 %v2807, %v2809
      %v2811 = vrot.slane %v2803, %v2810
      %v2813 = vunpack.c.l.s4 1983009808
      %v2814 = vunpack.c.0.s8 %v2813
      %v2815 = vlaneseq
      %v2816 = vshrl.u32 %v2815, 7
      %v2817 = vsub.s32 %v2814, %v2816
      %v2818 = vrot.slane %v2804, %v2817
      %v2819 = vcombine.low %v2372, %v2376
      %v2820 = vcombine.high %v2372, %v2376
      %v2822 = vunpack.c.l.s4 1983009808
      %v2823 = vunpack.c.0.s8 %v2822
      %v2824 = vlaneseq
      %v2825 = vshrl.u32 %v2824, 7
      %v2826 = vsub.s32 %v2823, %v2825
      %v2827 = vrot.slane %v2819, %v2826
      %v2829 = vunpack.c.l.s4 1983009808
      %v2830 = vunpack.c.0.s8 %v2829
      %v2831 = vlaneseq
      %v2832 = vshrl.u32 %v2831, 7
      %v2833 = vsub.s32 %v2830, %v2832
      %v2834 = vrot.slane %v2820, %v2833
      %v2835 = vcombine.low %v2374, %v2378
      %v2836 = vcombine.high %v2374, %v2378
      %v2838 = vunpack.c.l.s4 1983009808
      %v2839 = vunpack.c.0.s8 %v2838
      %v2840 = vlaneseq
      %v2841 = vshrl.u32 %v2840, 7
      %v2842 = vsub.s32 %v2839, %v2841
      %v2843 = vrot.slane %v2835, %v2842
      %v2845 = vunpack.c.l.s4 1983009808
      %v2846 = vunpack.c.0.s8 %v2845
      %v2847 = vlaneseq
      %v2848 = vshrl.u32 %v2847, 7
      %v2849 = vsub.s32 %v2846, %v2848
      %v2850 = vrot.slane %v2836, %v2849
      %v2851 = vcombine.low %v2795, %v2811
      %v2852 = vcombine.high %v2795, %v2811
      %v2854 = vunpack.c.l.s4 1934713408
      %v2855 = vunpack.c.0.s8 %v2854
      %v2856 = vlaneseq
      %v2857 = vshrl.u32 %v2856, 7
      %v2858 = vsub.s32 %v2855, %v2857
      %v2859 = vrot.slane %v2851, %v2858
      %v2861 = vunpack.c.l.s4 1934713408
      %v2862 = vunpack.c.0.s8 %v2861
      %v2863 = vlaneseq
      %v2864 = vshrl.u32 %v2863, 7
      %v2865 = vsub.s32 %v2862, %v2864
      %v2866 = vrot.slane %v2852, %v2865
      %v2867 = vcombine.low %v2802, %v2818
      %v2868 = vcombine.high %v2802, %v2818
      %v2870 = vunpack.c.l.s4 1934713408
      %v2871 = vunpack.c.0.s8 %v2870
      %v2872 = vlaneseq
      %v2873 = vshrl.u32 %v2872, 7
      %v2874 = vsub.s32 %v2871, %v2873
      %v2875 = vrot.slane %v2867, %v2874
      %v2877 = vunpack.c.l.s4 1934713408
      %v2878 = vunpack.c.0.s8 %v2877
      %v2879 = vlaneseq
      %v2880 = vshrl.u32 %v2879, 7
      %v2881 = vsub.s32 %v2878, %v2880
      %v2882 = vrot.slane %v2868, %v2881
      %v2883 = vcombine.low %v2827, %v2843
      %v2884 = vcombine.high %v2827, %v2843
      %v2886 = vunpack.c.l.s4 1934713408
      %v2887 = vunpack.c.0.s8 %v2886
      %v2888 = vlaneseq
      %v2889 = vshrl.u32 %v2888, 7
      %v2890 = vsub.s32 %v2887, %v2889
      %v2891 = vrot.slane %v2883, %v2890
      %v2893 = vunpack.c.l.s4 1934713408
      %v2894 = vunpack.c.0.s8 %v2893
      %v2895 = vlaneseq
      %v2896 = vshrl.u32 %v2895, 7
      %v2897 = vsub.s32 %v2894, %v2896
      %v2898 = vrot.slane %v2884, %v2897
      %v2899 = vcombine.low %v2834, %v2850
      %v2900 = vcombine.high %v2834, %v2850
      %v2902 = vunpack.c.l.s4 1934713408
      %v2903 = vunpack.c.0.s8 %v2902
      %v2904 = vlaneseq
      %v2905 = vshrl.u32 %v2904, 7
      %v2906 = vsub.s32 %v2903, %v2905
      %v2907 = vrot.slane %v2899, %v2906
      %v2909 = vunpack.c.l.s4 1934713408
      %v2910 = vunpack.c.0.s8 %v2909
      %v2911 = vlaneseq
      %v2912 = vshrl.u32 %v2911, 7
      %v2913 = vsub.s32 %v2910, %v2912
      %v2914 = vrot.slane %v2900, %v2913
      %v2915 = vcombine.low %v2859, %v2891
      %v2916 = vcombine.high %v2859, %v2891
      %v2917 = vcombine.low %v2866, %v2898
      %v2918 = vcombine.high %v2866, %v2898
      %v2919 = vcombine.low %v2875, %v2907
      %v2920 = vcombine.high %v2875, %v2907
      %v2921 = vcombine.low %v2882, %v2914
      %v2922 = vcombine.high %v2882, %v2914
      %2925 = vrot.lane.b32.xlu0 %v2508, 4
      %v2926 = vpop.permute.xlu0 %2925
      %2927 = vrot.lane.b32.xlu0 %v2644, 4
      %v2928 = vpop.permute.xlu0 %2927
      %2933 = vrot.lane.b32.xlu0 %v2509, 8
      %v2934 = vpop.permute.xlu0 %2933
      %2935 = vrot.lane.b32.xlu0 %v2645, 8
      %v2936 = vpop.permute.xlu0 %2935
      %2941 = vrot.lane.b32.xlu0 %v2510, 12
      %v2942 = vpop.permute.xlu0 %2941
      %2943 = vrot.lane.b32.xlu0 %v2646, 12
      %v2944 = vpop.permute.xlu0 %2943
      %2949 = vrot.lane.b32.xlu0 %v2511, 16
      %v2950 = vpop.permute.xlu0 %2949
      %2951 = vrot.lane.b32.xlu0 %v2647, 16
      %v2952 = vpop.permute.xlu0 %2951
      %2957 = vrot.lane.b32.xlu0 %v2512, 20
      %v2958 = vpop.permute.xlu0 %2957
      %2959 = vrot.lane.b32.xlu0 %v2648, 20
      %v2960 = vpop.permute.xlu0 %2959
      %2965 = vrot.lane.b32.xlu0 %v2513, 24
      %v2966 = vpop.permute.xlu0 %2965
      %2967 = vrot.lane.b32.xlu0 %v2649, 24
      %v2968 = vpop.permute.xlu0 %2967
      %2973 = vrot.lane.b32.xlu0 %v2514, 28
      %v2974 = vpop.permute.xlu0 %2973
      %2975 = vrot.lane.b32.xlu0 %v2650, 28
      %v2976 = vpop.permute.xlu0 %2975
      %2981 = vrot.lane.b32.xlu0 %v2779, 32
      %v2982 = vpop.permute.xlu0 %2981
      %2983 = vrot.lane.b32.xlu0 %v2915, 32
      %v2984 = vpop.permute.xlu0 %2983
      %2989 = vrot.lane.b32.xlu0 %v2780, 36
      %v2990 = vpop.permute.xlu0 %2989
      %2991 = vrot.lane.b32.xlu0 %v2916, 36
      %v2992 = vpop.permute.xlu0 %2991
      %2997 = vrot.lane.b32.xlu0 %v2781, 40
      %v2998 = vpop.permute.xlu0 %2997
      %2999 = vrot.lane.b32.xlu0 %v2917, 40
      %v3000 = vpop.permute.xlu0 %2999
      %3005 = vrot.lane.b32.xlu0 %v2782, 44
      %v3006 = vpop.permute.xlu0 %3005
      %3007 = vrot.lane.b32.xlu0 %v2918, 44
      %v3008 = vpop.permute.xlu0 %3007
      %3013 = vrot.lane.b32.xlu0 %v2783, 48
      %v3014 = vpop.permute.xlu0 %3013
      %3015 = vrot.lane.b32.xlu0 %v2919, 48
      %v3016 = vpop.permute.xlu0 %3015
      %3021 = vrot.lane.b32.xlu0 %v2784, 52
      %v3022 = vpop.permute.xlu0 %3021
      %3023 = vrot.lane.b32.xlu0 %v2920, 52
      %v3024 = vpop.permute.xlu0 %3023
      %3029 = vrot.lane.b32.xlu0 %v2785, 56
      %v3030 = vpop.permute.xlu0 %3029
      %3031 = vrot.lane.b32.xlu0 %v2921, 56
      %v3032 = vpop.permute.xlu0 %3031
      %3037 = vrot.lane.b32.xlu0 %v2786, 60
      %v3038 = vpop.permute.xlu0 %3037
      %3039 = vrot.lane.b32.xlu0 %v2922, 60
      %v3040 = vpop.permute.xlu0 %3039
      %v3043 = vsel %vm384, %v2507, %v2926
      %v3044 = vsel %vm384, %v2643, %v2928
      %v3045 = vsel %vm1433, %v3043, %v2934
      %v3046 = vsel %vm1433, %v3044, %v2936
      %v3047 = vsel %vm1436, %v3045, %v2942
      %v3048 = vsel %vm1436, %v3046, %v2944
      %v3049 = vsel %vm486, %v3047, %v2950
      %v3050 = vsel %vm486, %v3048, %v2952
      %v3051 = vsel %vm1441, %v3049, %v2958
      %v3052 = vsel %vm1441, %v3050, %v2960
      %v3053 = vsel %vm1444, %v3051, %v2966
      %v3054 = vsel %vm1444, %v3052, %v2968
      %v3055 = vsel %vm1447, %v3053, %v2974
      %v3056 = vsel %vm1447, %v3054, %v2976
      %v3057 = vsel %vm1450, %v3055, %v2982
      %v3058 = vsel %vm1450, %v3056, %v2984
      %v3059 = vsel %vm1453, %v3057, %v2990
      %v3060 = vsel %vm1453, %v3058, %v2992
      %v3061 = vsel %vm1456, %v3059, %v2998
      %v3062 = vsel %vm1456, %v3060, %v3000
      %v3063 = vsel %vm1459, %v3061, %v3006
      %v3064 = vsel %vm1459, %v3062, %v3008
      %v3065 = vsel %vm1462, %v3063, %v3014
      %v3066 = vsel %vm1462, %v3064, %v3016
      %v3067 = vsel %vm1465, %v3065, %v3022
      %v3068 = vsel %vm1465, %v3066, %v3024
      %v3069 = vsel %vm1468, %v3067, %v3030
      %v3070 = vsel %vm1468, %v3068, %v3032
      %v3071 = vsel %vm1471, %v3069, %v3038
      %v3072 = vsel %vm1471, %v3070, %v3040
      %3073 = vmatprep.subr.mxu0 0.0
      %3074 = vmatpush1.msra.mxu0 %v3071
      %3075 = vmatprep.subr.mxu0 0.0
      %3076 = vmatpush1.msra.mxu0 %v3072
      %3077 = vmatprep.subr.mxu0 0.0
      %3078 = vmatpush1.msra.mxu0 0.0
      %3079 = vmatprep.subr.mxu0 0.0
      %3080 = vmatpush1.msra.mxu0 0.0
      %3081 = vmatprep.subr.mxu0 0.0
      %3082 = vmatpush1.msra.mxu0 0.0
      %3083 = vmatprep.subr.mxu0 0.0
      %3084 = vmatpush1.msra.mxu0 0.0
      %3085 = vmatprep.subr.mxu0 0.0
      %3086 = vmatpush1.msra.mxu0 0.0
      %3087 = vmatprep.subr.mxu0 0.0
      %3088 = vmatpush1.msra.mxu0 0.0
      %3089 = vmatprep.subr.mxu0 0.0
      %3090 = vmatpush1.msra.mxu0 0.0
      %3091 = vmatprep.subr.mxu0 0.0
      %3092 = vmatpush1.msra.mxu0 0.0
      %3093 = vmatprep.subr.mxu0 0.0
      %3094 = vmatpush1.msra.mxu0 0.0
      %3095 = vmatprep.subr.mxu0 0.0
      %3096 = vmatpush1.msra.mxu0 0.0
      %3097 = vmatprep.subr.mxu0 0.0
      %3098 = vmatpush1.msra.mxu0 0.0
      %3099 = vmatprep.subr.mxu0 0.0
      %3100 = vmatpush1.msra.mxu0 0.0
      %3101 = vmatprep.subr.mxu0 0.0
      %3102 = vmatpush1.msra.mxu0 0.0
      %3103 = vmatprep.subr.mxu0 0.0
      %3104 = vmatpush1.msra.mxu0 0.0
      %3105 = vmatprep.subr.mxu0 0.0
      %3106 = vmatpush1.msra.mxu0 0.0
      %3107 = vmatprep.subr.mxu0 0.0
      %3108 = vmatpush1.msra.mxu0 0.0
      %3109 = vmatprep.subr.mxu0 0.0
      %3110 = vmatpush1.msra.mxu0 0.0
      %3111 = vmatprep.subr.mxu0 0.0
      %3112 = vmatpush1.msra.mxu0 0.0
      %3113 = vmatprep.subr.mxu0 0.0
      %3114 = vmatpush1.msra.mxu0 0.0
      %3115 = vmatprep.subr.mxu0 0.0
      %3116 = vmatpush1.msra.mxu0 0.0
      %3117 = vmatprep.subr.mxu0 0.0
      %3118 = vmatpush1.msra.mxu0 0.0
      %3119 = vmatprep.subr.mxu0 0.0
      %3120 = vmatpush1.msra.mxu0 0.0
      %3121 = vmatprep.subr.mxu0 0.0
      %3122 = vmatpush1.msra.mxu0 0.0
      %3123 = vmatprep.subr.mxu0 0.0
      %3124 = vmatpush1.msra.mxu0 0.0
      %3125 = vmatprep.subr.mxu0 0.0
      %3126 = vmatpush1.msra.mxu0 0.0
      %3127 = vmatprep.subr.mxu0 0.0
      %3128 = vmatpush1.msra.mxu0 0.0
      %3129 = vmatprep.subr.mxu0 0.0
      %3130 = vmatpush1.msra.mxu0 0.0
      %3131 = vmatprep.subr.mxu0 0.0
      %3132 = vmatpush1.msra.mxu0 0.0
      %3133 = vmatprep.subr.mxu0 0.0
      %3134 = vmatpush1.msra.mxu0 0.0
      %3135 = vmatprep.subr.mxu0 0.0
      %3136 = vmatpush1.msra.mxu0 0.0
      %3137 = vmatprep.mubr.f32.mxu0 0.0
      %3138 = vmatmul.mubr.f32.gmra.mrb[0].mxu0 %v1631
      %v3139 = vpop.f32.mrb[0].mxu0
      %v3140 = vadd.f32 %v1597, %v3139
      %v3141 = vpop.f32.mrb[0].mxu0
      %3142 = vmatprep.mubr.f32.mxu0 0.0
      %3143 = vmatmul.mubr.f32.gmra.mrb[0].mxu0 %v1634
      %v3144 = vpop.f32.mrb[0].mxu0
      %v3145 = vadd.f32 %v1597, %v3144
      %v3146 = vpop.f32.mrb[0].mxu0
      %3147 = vdwg.mxu0
      %3150 = vrot.lane.b32.xlu0 %v3140, 124
      %v3151 = vpop.permute.xlu0 %3150
      %3152 = vrot.lane.b32.xlu0 %v3145, 124
      %v3153 = vpop.permute.xlu0 %3152
      %3156 = vrot.lane.b32.xlu0 %v3140, 120
      %v3157 = vpop.permute.xlu0 %3156
      %3158 = vrot.lane.b32.xlu0 %v3145, 120
      %v3159 = vpop.permute.xlu0 %3158
      %3162 = vrot.lane.b32.xlu0 %v3140, 116
      %v3163 = vpop.permute.xlu0 %3162
      %3164 = vrot.lane.b32.xlu0 %v3145, 116
      %v3165 = vpop.permute.xlu0 %3164
      %3168 = vrot.lane.b32.xlu0 %v3140, 112
      %v3169 = vpop.permute.xlu0 %3168
      %3170 = vrot.lane.b32.xlu0 %v3145, 112
      %v3171 = vpop.permute.xlu0 %3170
      %3174 = vrot.lane.b32.xlu0 %v3140, 108
      %v3175 = vpop.permute.xlu0 %3174
      %3176 = vrot.lane.b32.xlu0 %v3145, 108
      %v3177 = vpop.permute.xlu0 %3176
      %3180 = vrot.lane.b32.xlu0 %v3140, 104
      %v3181 = vpop.permute.xlu0 %3180
      %3182 = vrot.lane.b32.xlu0 %v3145, 104
      %v3183 = vpop.permute.xlu0 %3182
      %3186 = vrot.lane.b32.xlu0 %v3140, 100
      %v3187 = vpop.permute.xlu0 %3186
      %3188 = vrot.lane.b32.xlu0 %v3145, 100
      %v3189 = vpop.permute.xlu0 %3188
      %3192 = vrot.lane.b32.xlu0 %v3140, 96
      %v3193 = vpop.permute.xlu0 %3192
      %3194 = vrot.lane.b32.xlu0 %v3145, 96
      %v3195 = vpop.permute.xlu0 %3194
      %3198 = vrot.lane.b32.xlu0 %v3140, 92
      %v3199 = vpop.permute.xlu0 %3198
      %3200 = vrot.lane.b32.xlu0 %v3145, 92
      %v3201 = vpop.permute.xlu0 %3200
      %3204 = vrot.lane.b32.xlu0 %v3140, 88
      %v3205 = vpop.permute.xlu0 %3204
      %3206 = vrot.lane.b32.xlu0 %v3145, 88
      %v3207 = vpop.permute.xlu0 %3206
      %3210 = vrot.lane.b32.xlu0 %v3140, 84
      %v3211 = vpop.permute.xlu0 %3210
      %3212 = vrot.lane.b32.xlu0 %v3145, 84
      %v3213 = vpop.permute.xlu0 %3212
      %3216 = vrot.lane.b32.xlu0 %v3140, 80
      %v3217 = vpop.permute.xlu0 %3216
      %3218 = vrot.lane.b32.xlu0 %v3145, 80
      %v3219 = vpop.permute.xlu0 %3218
      %3222 = vrot.lane.b32.xlu0 %v3140, 76
      %v3223 = vpop.permute.xlu0 %3222
      %3224 = vrot.lane.b32.xlu0 %v3145, 76
      %v3225 = vpop.permute.xlu0 %3224
      %3228 = vrot.lane.b32.xlu0 %v3140, 72
      %v3229 = vpop.permute.xlu0 %3228
      %3230 = vrot.lane.b32.xlu0 %v3145, 72
      %v3231 = vpop.permute.xlu0 %3230
      %3234 = vrot.lane.b32.xlu0 %v3140, 68
      %v3235 = vpop.permute.xlu0 %3234
      %3236 = vrot.lane.b32.xlu0 %v3145, 68
      %v3237 = vpop.permute.xlu0 %3236
      %v3240 = vcombine.low %v3140, %v3157
      %v3241 = vcombine.high %v3140, %v3157
      %v3243 = vunpack.c.l.s4 1983009808
      %v3244 = vunpack.c.0.s8 %v3243
      %v3245 = vlaneseq
      %v3246 = vshrl.u32 %v3245, 7
      %v3247 = vsub.s32 %v3244, %v3246
      %v3248 = vrot.slane %v3240, %v3247
      %v3250 = vunpack.c.l.s4 1983009808
      %v3251 = vunpack.c.0.s8 %v3250
      %v3252 = vlaneseq
      %v3253 = vshrl.u32 %v3252, 7
      %v3254 = vsub.s32 %v3251, %v3253
      %v3255 = vrot.slane %v3241, %v3254
      %v3256 = vcombine.low %v3151, %v3163
      %v3257 = vcombine.high %v3151, %v3163
      %v3259 = vunpack.c.l.s4 1983009808
      %v3260 = vunpack.c.0.s8 %v3259
      %v3261 = vlaneseq
      %v3262 = vshrl.u32 %v3261, 7
      %v3263 = vsub.s32 %v3260, %v3262
      %v3264 = vrot.slane %v3256, %v3263
      %v3266 = vunpack.c.l.s4 1983009808
      %v3267 = vunpack.c.0.s8 %v3266
      %v3268 = vlaneseq
      %v3269 = vshrl.u32 %v3268, 7
      %v3270 = vsub.s32 %v3267, %v3269
      %v3271 = vrot.slane %v3257, %v3270
      %v3272 = vcombine.low %v3169, %v3181
      %v3273 = vcombine.high %v3169, %v3181
      %v3275 = vunpack.c.l.s4 1983009808
      %v3276 = vunpack.c.0.s8 %v3275
      %v3277 = vlaneseq
      %v3278 = vshrl.u32 %v3277, 7
      %v3279 = vsub.s32 %v3276, %v3278
      %v3280 = vrot.slane %v3272, %v3279
      %v3282 = vunpack.c.l.s4 1983009808
      %v3283 = vunpack.c.0.s8 %v3282
      %v3284 = vlaneseq
      %v3285 = vshrl.u32 %v3284, 7
      %v3286 = vsub.s32 %v3283, %v3285
      %v3287 = vrot.slane %v3273, %v3286
      %v3288 = vcombine.low %v3175, %v3187
      %v3289 = vcombine.high %v3175, %v3187
      %v3291 = vunpack.c.l.s4 1983009808
      %v3292 = vunpack.c.0.s8 %v3291
      %v3293 = vlaneseq
      %v3294 = vshrl.u32 %v3293, 7
      %v3295 = vsub.s32 %v3292, %v3294
      %v3296 = vrot.slane %v3288, %v3295
      %v3298 = vunpack.c.l.s4 1983009808
      %v3299 = vunpack.c.0.s8 %v3298
      %v3300 = vlaneseq
      %v3301 = vshrl.u32 %v3300, 7
      %v3302 = vsub.s32 %v3299, %v3301
      %v3303 = vrot.slane %v3289, %v3302
      %v3304 = vcombine.low %v3248, %v3264
      %v3305 = vcombine.high %v3248, %v3264
      %v3307 = vunpack.c.l.s4 1934713408
      %v3308 = vunpack.c.0.s8 %v3307
      %v3309 = vlaneseq
      %v3310 = vshrl.u32 %v3309, 7
      %v3311 = vsub.s32 %v3308, %v3310
      %v3312 = vrot.slane %v3304, %v3311
      %v3314 = vunpack.c.l.s4 1934713408
      %v3315 = vunpack.c.0.s8 %v3314
      %v3316 = vlaneseq
      %v3317 = vshrl.u32 %v3316, 7
      %v3318 = vsub.s32 %v3315, %v3317
      %v3319 = vrot.slane %v3305, %v3318
      %v3320 = vcombine.low %v3255, %v3271
      %v3321 = vcombine.high %v3255, %v3271
      %v3323 = vunpack.c.l.s4 1934713408
      %v3324 = vunpack.c.0.s8 %v3323
      %v3325 = vlaneseq
      %v3326 = vshrl.u32 %v3325, 7
      %v3327 = vsub.s32 %v3324, %v3326
      %v3328 = vrot.slane %v3320, %v3327
      %v3330 = vunpack.c.l.s4 1934713408
      %v3331 = vunpack.c.0.s8 %v3330
      %v3332 = vlaneseq
      %v3333 = vshrl.u32 %v3332, 7
      %v3334 = vsub.s32 %v3331, %v3333
      %v3335 = vrot.slane %v3321, %v3334
      %v3336 = vcombine.low %v3280, %v3296
      %v3337 = vcombine.high %v3280, %v3296
      %v3339 = vunpack.c.l.s4 1934713408
      %v3340 = vunpack.c.0.s8 %v3339
      %v3341 = vlaneseq
      %v3342 = vshrl.u32 %v3341, 7
      %v3343 = vsub.s32 %v3340, %v3342
      %v3344 = vrot.slane %v3336, %v3343
      %v3346 = vunpack.c.l.s4 1934713408
      %v3347 = vunpack.c.0.s8 %v3346
      %v3348 = vlaneseq
      %v3349 = vshrl.u32 %v3348, 7
      %v3350 = vsub.s32 %v3347, %v3349
      %v3351 = vrot.slane %v3337, %v3350
      %v3352 = vcombine.low %v3287, %v3303
      %v3353 = vcombine.high %v3287, %v3303
      %v3355 = vunpack.c.l.s4 1934713408
      %v3356 = vunpack.c.0.s8 %v3355
      %v3357 = vlaneseq
      %v3358 = vshrl.u32 %v3357, 7
      %v3359 = vsub.s32 %v3356, %v3358
      %v3360 = vrot.slane %v3352, %v3359
      %v3362 = vunpack.c.l.s4 1934713408
      %v3363 = vunpack.c.0.s8 %v3362
      %v3364 = vlaneseq
      %v3365 = vshrl.u32 %v3364, 7
      %v3366 = vsub.s32 %v3363, %v3365
      %v3367 = vrot.slane %v3353, %v3366
      %v3368 = vcombine.low %v3312, %v3344
      %v3369 = vcombine.high %v3312, %v3344
      %v3370 = vcombine.low %v3319, %v3351
      %v3371 = vcombine.high %v3319, %v3351
      %v3372 = vcombine.low %v3328, %v3360
      %v3373 = vcombine.high %v3328, %v3360
      %v3374 = vcombine.low %v3335, %v3367
      %v3375 = vcombine.high %v3335, %v3367
      %v3376 = vcombine.low %v3193, %v3205
      %v3377 = vcombine.high %v3193, %v3205
      %v3379 = vunpack.c.l.s4 1983009808
      %v3380 = vunpack.c.0.s8 %v3379
      %v3381 = vlaneseq
      %v3382 = vshrl.u32 %v3381, 7
      %v3383 = vsub.s32 %v3380, %v3382
      %v3384 = vrot.slane %v3376, %v3383
      %v3386 = vunpack.c.l.s4 1983009808
      %v3387 = vunpack.c.0.s8 %v3386
      %v3388 = vlaneseq
      %v3389 = vshrl.u32 %v3388, 7
      %v3390 = vsub.s32 %v3387, %v3389
      %v3391 = vrot.slane %v3377, %v3390
      %v3392 = vcombine.low %v3199, %v3211
      %v3393 = vcombine.high %v3199, %v3211
      %v3395 = vunpack.c.l.s4 1983009808
      %v3396 = vunpack.c.0.s8 %v3395
      %v3397 = vlaneseq
      %v3398 = vshrl.u32 %v3397, 7
      %v3399 = vsub.s32 %v3396, %v3398
      %v3400 = vrot.slane %v3392, %v3399
      %v3402 = vunpack.c.l.s4 1983009808
      %v3403 = vunpack.c.0.s8 %v3402
      %v3404 = vlaneseq
      %v3405 = vshrl.u32 %v3404, 7
      %v3406 = vsub.s32 %v3403, %v3405
      %v3407 = vrot.slane %v3393, %v3406
      %v3408 = vcombine.low %v3217, %v3229
      %v3409 = vcombine.high %v3217, %v3229
      %v3411 = vunpack.c.l.s4 1983009808
      %v3412 = vunpack.c.0.s8 %v3411
      %v3413 = vlaneseq
      %v3414 = vshrl.u32 %v3413, 7
      %v3415 = vsub.s32 %v3412, %v3414
      %v3416 = vrot.slane %v3408, %v3415
      %v3418 = vunpack.c.l.s4 1983009808
      %v3419 = vunpack.c.0.s8 %v3418
      %v3420 = vlaneseq
      %v3421 = vshrl.u32 %v3420, 7
      %v3422 = vsub.s32 %v3419, %v3421
      %v3423 = vrot.slane %v3409, %v3422
      %v3424 = vcombine.low %v3223, %v3235
      %v3425 = vcombine.high %v3223, %v3235
      %v3427 = vunpack.c.l.s4 1983009808
      %v3428 = vunpack.c.0.s8 %v3427
      %v3429 = vlaneseq
      %v3430 = vshrl.u32 %v3429, 7
      %v3431 = vsub.s32 %v3428, %v3430
      %v3432 = vrot.slane %v3424, %v3431
      %v3434 = vunpack.c.l.s4 1983009808
      %v3435 = vunpack.c.0.s8 %v3434
      %v3436 = vlaneseq
      %v3437 = vshrl.u32 %v3436, 7
      %v3438 = vsub.s32 %v3435, %v3437
      %v3439 = vrot.slane %v3425, %v3438
      %v3440 = vcombine.low %v3384, %v3400
      %v3441 = vcombine.high %v3384, %v3400
      %v3443 = vunpack.c.l.s4 1934713408
      %v3444 = vunpack.c.0.s8 %v3443
      %v3445 = vlaneseq
      %v3446 = vshrl.u32 %v3445, 7
      %v3447 = vsub.s32 %v3444, %v3446
      %v3448 = vrot.slane %v3440, %v3447
      %v3450 = vunpack.c.l.s4 1934713408
      %v3451 = vunpack.c.0.s8 %v3450
      %v3452 = vlaneseq
      %v3453 = vshrl.u32 %v3452, 7
      %v3454 = vsub.s32 %v3451, %v3453
      %v3455 = vrot.slane %v3441, %v3454
      %v3456 = vcombine.low %v3391, %v3407
      %v3457 = vcombine.high %v3391, %v3407
      %v3459 = vunpack.c.l.s4 1934713408
      %v3460 = vunpack.c.0.s8 %v3459
      %v3461 = vlaneseq
      %v3462 = vshrl.u32 %v3461, 7
      %v3463 = vsub.s32 %v3460, %v3462
      %v3464 = vrot.slane %v3456, %v3463
      %v3466 = vunpack.c.l.s4 1934713408
      %v3467 = vunpack.c.0.s8 %v3466
      %v3468 = vlaneseq
      %v3469 = vshrl.u32 %v3468, 7
      %v3470 = vsub.s32 %v3467, %v3469
      %v3471 = vrot.slane %v3457, %v3470
      %v3472 = vcombine.low %v3416, %v3432
      %v3473 = vcombine.high %v3416, %v3432
      %v3475 = vunpack.c.l.s4 1934713408
      %v3476 = vunpack.c.0.s8 %v3475
      %v3477 = vlaneseq
      %v3478 = vshrl.u32 %v3477, 7
      %v3479 = vsub.s32 %v3476, %v3478
      %v3480 = vrot.slane %v3472, %v3479
      %v3482 = vunpack.c.l.s4 1934713408
      %v3483 = vunpack.c.0.s8 %v3482
      %v3484 = vlaneseq
      %v3485 = vshrl.u32 %v3484, 7
      %v3486 = vsub.s32 %v3483, %v3485
      %v3487 = vrot.slane %v3473, %v3486
      %v3488 = vcombine.low %v3423, %v3439
      %v3489 = vcombine.high %v3423, %v3439
      %v3491 = vunpack.c.l.s4 1934713408
      %v3492 = vunpack.c.0.s8 %v3491
      %v3493 = vlaneseq
      %v3494 = vshrl.u32 %v3493, 7
      %v3495 = vsub.s32 %v3492, %v3494
      %v3496 = vrot.slane %v3488, %v3495
      %v3498 = vunpack.c.l.s4 1934713408
      %v3499 = vunpack.c.0.s8 %v3498
      %v3500 = vlaneseq
      %v3501 = vshrl.u32 %v3500, 7
      %v3502 = vsub.s32 %v3499, %v3501
      %v3503 = vrot.slane %v3489, %v3502
      %v3504 = vcombine.low %v3448, %v3480
      %v3505 = vcombine.high %v3448, %v3480
      %v3506 = vcombine.low %v3455, %v3487
      %v3507 = vcombine.high %v3455, %v3487
      %v3508 = vcombine.low %v3464, %v3496
      %v3509 = vcombine.high %v3464, %v3496
      %v3510 = vcombine.low %v3471, %v3503
      %v3511 = vcombine.high %v3471, %v3503
      %v3512 = vcombine.low %v3145, %v3159
      %v3513 = vcombine.high %v3145, %v3159
      %v3515 = vunpack.c.l.s4 1983009808
      %v3516 = vunpack.c.0.s8 %v3515
      %v3517 = vlaneseq
      %v3518 = vshrl.u32 %v3517, 7
      %v3519 = vsub.s32 %v3516, %v3518
      %v3520 = vrot.slane %v3512, %v3519
      %v3522 = vunpack.c.l.s4 1983009808
      %v3523 = vunpack.c.0.s8 %v3522
      %v3524 = vlaneseq
      %v3525 = vshrl.u32 %v3524, 7
      %v3526 = vsub.s32 %v3523, %v3525
      %v3527 = vrot.slane %v3513, %v3526
      %v3528 = vcombine.low %v3153, %v3165
      %v3529 = vcombine.high %v3153, %v3165
      %v3531 = vunpack.c.l.s4 1983009808
      %v3532 = vunpack.c.0.s8 %v3531
      %v3533 = vlaneseq
      %v3534 = vshrl.u32 %v3533, 7
      %v3535 = vsub.s32 %v3532, %v3534
      %v3536 = vrot.slane %v3528, %v3535
      %v3538 = vunpack.c.l.s4 1983009808
      %v3539 = vunpack.c.0.s8 %v3538
      %v3540 = vlaneseq
      %v3541 = vshrl.u32 %v3540, 7
      %v3542 = vsub.s32 %v3539, %v3541
      %v3543 = vrot.slane %v3529, %v3542
      %v3544 = vcombine.low %v3171, %v3183
      %v3545 = vcombine.high %v3171, %v3183
      %v3547 = vunpack.c.l.s4 1983009808
      %v3548 = vunpack.c.0.s8 %v3547
      %v3549 = vlaneseq
      %v3550 = vshrl.u32 %v3549, 7
      %v3551 = vsub.s32 %v3548, %v3550
      %v3552 = vrot.slane %v3544, %v3551
      %v3554 = vunpack.c.l.s4 1983009808
      %v3555 = vunpack.c.0.s8 %v3554
      %v3556 = vlaneseq
      %v3557 = vshrl.u32 %v3556, 7
      %v3558 = vsub.s32 %v3555, %v3557
      %v3559 = vrot.slane %v3545, %v3558
      %v3560 = vcombine.low %v3177, %v3189
      %v3561 = vcombine.high %v3177, %v3189
      %v3563 = vunpack.c.l.s4 1983009808
      %v3564 = vunpack.c.0.s8 %v3563
      %v3565 = vlaneseq
      %v3566 = vshrl.u32 %v3565, 7
      %v3567 = vsub.s32 %v3564, %v3566
      %v3568 = vrot.slane %v3560, %v3567
      %v3570 = vunpack.c.l.s4 1983009808
      %v3571 = vunpack.c.0.s8 %v3570
      %v3572 = vlaneseq
      %v3573 = vshrl.u32 %v3572, 7
      %v3574 = vsub.s32 %v3571, %v3573
      %v3575 = vrot.slane %v3561, %v3574
      %v3576 = vcombine.low %v3520, %v3536
      %v3577 = vcombine.high %v3520, %v3536
      %v3579 = vunpack.c.l.s4 1934713408
      %v3580 = vunpack.c.0.s8 %v3579
      %v3581 = vlaneseq
      %v3582 = vshrl.u32 %v3581, 7
      %v3583 = vsub.s32 %v3580, %v3582
      %v3584 = vrot.slane %v3576, %v3583
      %v3586 = vunpack.c.l.s4 1934713408
      %v3587 = vunpack.c.0.s8 %v3586
      %v3588 = vlaneseq
      %v3589 = vshrl.u32 %v3588, 7
      %v3590 = vsub.s32 %v3587, %v3589
      %v3591 = vrot.slane %v3577, %v3590
      %v3592 = vcombine.low %v3527, %v3543
      %v3593 = vcombine.high %v3527, %v3543
      %v3595 = vunpack.c.l.s4 1934713408
      %v3596 = vunpack.c.0.s8 %v3595
      %v3597 = vlaneseq
      %v3598 = vshrl.u32 %v3597, 7
      %v3599 = vsub.s32 %v3596, %v3598
      %v3600 = vrot.slane %v3592, %v3599
      %v3602 = vunpack.c.l.s4 1934713408
      %v3603 = vunpack.c.0.s8 %v3602
      %v3604 = vlaneseq
      %v3605 = vshrl.u32 %v3604, 7
      %v3606 = vsub.s32 %v3603, %v3605
      %v3607 = vrot.slane %v3593, %v3606
      %v3608 = vcombine.low %v3552, %v3568
      %v3609 = vcombine.high %v3552, %v3568
      %v3611 = vunpack.c.l.s4 1934713408
      %v3612 = vunpack.c.0.s8 %v3611
      %v3613 = vlaneseq
      %v3614 = vshrl.u32 %v3613, 7
      %v3615 = vsub.s32 %v3612, %v3614
      %v3616 = vrot.slane %v3608, %v3615
      %v3618 = vunpack.c.l.s4 1934713408
      %v3619 = vunpack.c.0.s8 %v3618
      %v3620 = vlaneseq
      %v3621 = vshrl.u32 %v3620, 7
      %v3622 = vsub.s32 %v3619, %v3621
      %v3623 = vrot.slane %v3609, %v3622
      %v3624 = vcombine.low %v3559, %v3575
      %v3625 = vcombine.high %v3559, %v3575
      %v3627 = vunpack.c.l.s4 1934713408
      %v3628 = vunpack.c.0.s8 %v3627
      %v3629 = vlaneseq
      %v3630 = vshrl.u32 %v3629, 7
      %v3631 = vsub.s32 %v3628, %v3630
      %v3632 = vrot.slane %v3624, %v3631
      %v3634 = vunpack.c.l.s4 1934713408
      %v3635 = vunpack.c.0.s8 %v3634
      %v3636 = vlaneseq
      %v3637 = vshrl.u32 %v3636, 7
      %v3638 = vsub.s32 %v3635, %v3637
      %v3639 = vrot.slane %v3625, %v3638
      %v3640 = vcombine.low %v3584, %v3616
      %v3641 = vcombine.high %v3584, %v3616
      %v3642 = vcombine.low %v3591, %v3623
      %v3643 = vcombine.high %v3591, %v3623
      %v3644 = vcombine.low %v3600, %v3632
      %v3645 = vcombine.high %v3600, %v3632
      %v3646 = vcombine.low %v3607, %v3639
      %v3647 = vcombine.high %v3607, %v3639
      %v3648 = vcombine.low %v3195, %v3207
      %v3649 = vcombine.high %v3195, %v3207
      %v3651 = vunpack.c.l.s4 1983009808
      %v3652 = vunpack.c.0.s8 %v3651
      %v3653 = vlaneseq
      %v3654 = vshrl.u32 %v3653, 7
      %v3655 = vsub.s32 %v3652, %v3654
      %v3656 = vrot.slane %v3648, %v3655
      %v3658 = vunpack.c.l.s4 1983009808
      %v3659 = vunpack.c.0.s8 %v3658
      %v3660 = vlaneseq
      %v3661 = vshrl.u32 %v3660, 7
      %v3662 = vsub.s32 %v3659, %v3661
      %v3663 = vrot.slane %v3649, %v3662
      %v3664 = vcombine.low %v3201, %v3213
      %v3665 = vcombine.high %v3201, %v3213
      %v3667 = vunpack.c.l.s4 1983009808
      %v3668 = vunpack.c.0.s8 %v3667
      %v3669 = vlaneseq
      %v3670 = vshrl.u32 %v3669, 7
      %v3671 = vsub.s32 %v3668, %v3670
      %v3672 = vrot.slane %v3664, %v3671
      %v3674 = vunpack.c.l.s4 1983009808
      %v3675 = vunpack.c.0.s8 %v3674
      %v3676 = vlaneseq
      %v3677 = vshrl.u32 %v3676, 7
      %v3678 = vsub.s32 %v3675, %v3677
      %v3679 = vrot.slane %v3665, %v3678
      %v3680 = vcombine.low %v3219, %v3231
      %v3681 = vcombine.high %v3219, %v3231
      %v3683 = vunpack.c.l.s4 1983009808
      %v3684 = vunpack.c.0.s8 %v3683
      %v3685 = vlaneseq
      %v3686 = vshrl.u32 %v3685, 7
      %v3687 = vsub.s32 %v3684, %v3686
      %v3688 = vrot.slane %v3680, %v3687
      %v3690 = vunpack.c.l.s4 1983009808
      %v3691 = vunpack.c.0.s8 %v3690
      %v3692 = vlaneseq
      %v3693 = vshrl.u32 %v3692, 7
      %v3694 = vsub.s32 %v3691, %v3693
      %v3695 = vrot.slane %v3681, %v3694
      %v3696 = vcombine.low %v3225, %v3237
      %v3697 = vcombine.high %v3225, %v3237
      %v3699 = vunpack.c.l.s4 1983009808
      %v3700 = vunpack.c.0.s8 %v3699
      %v3701 = vlaneseq
      %v3702 = vshrl.u32 %v3701, 7
      %v3703 = vsub.s32 %v3700, %v3702
      %v3704 = vrot.slane %v3696, %v3703
      %v3706 = vunpack.c.l.s4 1983009808
      %v3707 = vunpack.c.0.s8 %v3706
      %v3708 = vlaneseq
      %v3709 = vshrl.u32 %v3708, 7
      %v3710 = vsub.s32 %v3707, %v3709
      %v3711 = vrot.slane %v3697, %v3710
      %v3712 = vcombine.low %v3656, %v3672
      %v3713 = vcombine.high %v3656, %v3672
      %v3715 = vunpack.c.l.s4 1934713408
      %v3716 = vunpack.c.0.s8 %v3715
      %v3717 = vlaneseq
      %v3718 = vshrl.u32 %v3717, 7
      %v3719 = vsub.s32 %v3716, %v3718
      %v3720 = vrot.slane %v3712, %v3719
      %v3722 = vunpack.c.l.s4 1934713408
      %v3723 = vunpack.c.0.s8 %v3722
      %v3724 = vlaneseq
      %v3725 = vshrl.u32 %v3724, 7
      %v3726 = vsub.s32 %v3723, %v3725
      %v3727 = vrot.slane %v3713, %v3726
      %v3728 = vcombine.low %v3663, %v3679
      %v3729 = vcombine.high %v3663, %v3679
      %v3731 = vunpack.c.l.s4 1934713408
      %v3732 = vunpack.c.0.s8 %v3731
      %v3733 = vlaneseq
      %v3734 = vshrl.u32 %v3733, 7
      %v3735 = vsub.s32 %v3732, %v3734
      %v3736 = vrot.slane %v3728, %v3735
      %v3738 = vunpack.c.l.s4 1934713408
      %v3739 = vunpack.c.0.s8 %v3738
      %v3740 = vlaneseq
      %v3741 = vshrl.u32 %v3740, 7
      %v3742 = vsub.s32 %v3739, %v3741
      %v3743 = vrot.slane %v3729, %v3742
      %v3744 = vcombine.low %v3688, %v3704
      %v3745 = vcombine.high %v3688, %v3704
      %v3747 = vunpack.c.l.s4 1934713408
      %v3748 = vunpack.c.0.s8 %v3747
      %v3749 = vlaneseq
      %v3750 = vshrl.u32 %v3749, 7
      %v3751 = vsub.s32 %v3748, %v3750
      %v3752 = vrot.slane %v3744, %v3751
      %v3754 = vunpack.c.l.s4 1934713408
      %v3755 = vunpack.c.0.s8 %v3754
      %v3756 = vlaneseq
      %v3757 = vshrl.u32 %v3756, 7
      %v3758 = vsub.s32 %v3755, %v3757
      %v3759 = vrot.slane %v3745, %v3758
      %v3760 = vcombine.low %v3695, %v3711
      %v3761 = vcombine.high %v3695, %v3711
      %v3763 = vunpack.c.l.s4 1934713408
      %v3764 = vunpack.c.0.s8 %v3763
      %v3765 = vlaneseq
      %v3766 = vshrl.u32 %v3765, 7
      %v3767 = vsub.s32 %v3764, %v3766
      %v3768 = vrot.slane %v3760, %v3767
      %v3770 = vunpack.c.l.s4 1934713408
      %v3771 = vunpack.c.0.s8 %v3770
      %v3772 = vlaneseq
      %v3773 = vshrl.u32 %v3772, 7
      %v3774 = vsub.s32 %v3771, %v3773
      %v3775 = vrot.slane %v3761, %v3774
      %v3776 = vcombine.low %v3720, %v3752
      %v3777 = vcombine.high %v3720, %v3752
      %v3778 = vcombine.low %v3727, %v3759
      %v3779 = vcombine.high %v3727, %v3759
      %v3780 = vcombine.low %v3736, %v3768
      %v3781 = vcombine.high %v3736, %v3768
      %v3782 = vcombine.low %v3743, %v3775
      %v3783 = vcombine.high %v3743, %v3775
      %v3784 = vld [vmem:[%s333] sm:$0xf]
      %v3785 = vld [vmem:[%s333 + $0x4] sm:$0xf]
      %v3786 = vld [vmem:[%s333 + $0x8] sm:$0xf]
      %v3787 = vld [vmem:[%s333 + $0xc] sm:$0xf]
      %v3788 = vld [vmem:[%s333 + $0x10] sm:$0xf]
      %v3789 = vld [vmem:[%s333 + $0x14] sm:$0xf]
      %v3790 = vld [vmem:[%s333 + $0x18] sm:$0xf]
      %v3791 = vld [vmem:[%s333 + $0x1c] sm:$0xf]
      %v3792 = vld [vmem:[%s333 + $0x20] sm:$0xf]
      %v3793 = vld [vmem:[%s333 + $0x24] sm:$0xf]
      %v3794 = vld [vmem:[%s333 + $0x28] sm:$0xf]
      %v3795 = vld [vmem:[%s333 + $0x2c] sm:$0xf]
      %v3796 = vld [vmem:[%s333 + $0x30] sm:$0xf]
      %v3797 = vld [vmem:[%s333 + $0x34] sm:$0xf]
      %v3798 = vld [vmem:[%s333 + $0x38] sm:$0xf]
      %v3799 = vld [vmem:[%s333 + $0x3c] sm:$0xf]
      %v3801 = vsel %vm486, %v3784, 0
      %3803 = vmatprep.subr.mxu0 0.0
      %3804 = vmatpush1.msra.mxu0 %v1931
      %3805 = vmatprep.subr.mxu0 0.0
      %3806 = vmatpush1.msra.mxu0 %v2067
      %3807 = vmatprep.subr.mxu0 0.0
      %3808 = vmatpush1.msra.mxu0 0.0
      %3809 = vmatprep.subr.mxu0 0.0
      %3810 = vmatpush1.msra.mxu0 0.0
      %3811 = vmatprep.subr.mxu0 0.0
      %3812 = vmatpush1.msra.mxu0 0.0
      %3813 = vmatprep.subr.mxu0 0.0
      %3814 = vmatpush1.msra.mxu0 0.0
      %3815 = vmatprep.subr.mxu0 0.0
      %3816 = vmatpush1.msra.mxu0 0.0
      %3817 = vmatprep.subr.mxu0 0.0
      %3818 = vmatpush1.msra.mxu0 0.0
      %3819 = vmatprep.subr.mxu0 0.0
      %3820 = vmatpush1.msra.mxu0 0.0
      %3821 = vmatprep.subr.mxu0 0.0
      %3822 = vmatpush1.msra.mxu0 0.0
      %3823 = vmatprep.subr.mxu0 0.0
      %3824 = vmatpush1.msra.mxu0 0.0
      %3825 = vmatprep.subr.mxu0 0.0
      %3826 = vmatpush1.msra.mxu0 0.0
      %3827 = vmatprep.subr.mxu0 0.0
      %3828 = vmatpush1.msra.mxu0 0.0
      %3829 = vmatprep.subr.mxu0 0.0
      %3830 = vmatpush1.msra.mxu0 0.0
      %3831 = vmatprep.subr.mxu0 0.0
      %3832 = vmatpush1.msra.mxu0 0.0
      %3833 = vmatprep.subr.mxu0 0.0
      %3834 = vmatpush1.msra.mxu0 0.0
      %3835 = vmatprep.subr.mxu0 0.0
      %3836 = vmatpush1.msra.mxu0 0.0
      %3837 = vmatprep.subr.mxu0 0.0
      %3838 = vmatpush1.msra.mxu0 0.0
      %3839 = vmatprep.subr.mxu0 0.0
      %3840 = vmatpush1.msra.mxu0 0.0
      %3841 = vmatprep.subr.mxu0 0.0
      %3842 = vmatpush1.msra.mxu0 0.0
      %3843 = vmatprep.subr.mxu0 0.0
      %3844 = vmatpush1.msra.mxu0 0.0
      %3845 = vmatprep.subr.mxu0 0.0
      %3846 = vmatpush1.msra.mxu0 0.0
      %3847 = vmatprep.subr.mxu0 0.0
      %3848 = vmatpush1.msra.mxu0 0.0
      %3849 = vmatprep.subr.mxu0 0.0
      %3850 = vmatpush1.msra.mxu0 0.0
      %3851 = vmatprep.subr.mxu0 0.0
      %3852 = vmatpush1.msra.mxu0 0.0
      %3853 = vmatprep.subr.mxu0 0.0
      %3854 = vmatpush1.msra.mxu0 0.0
      %3855 = vmatprep.subr.mxu0 0.0
      %3856 = vmatpush1.msra.mxu0 0.0
      %3857 = vmatprep.subr.mxu0 0.0
      %3858 = vmatpush1.msra.mxu0 0.0
      %3859 = vmatprep.subr.mxu0 0.0
      %3860 = vmatpush1.msra.mxu0 0.0
      %3861 = vmatprep.subr.mxu0 0.0
      %3862 = vmatpush1.msra.mxu0 0.0
      %3863 = vmatprep.subr.mxu0 0.0
      %3864 = vmatpush1.msra.mxu0 0.0
      %3865 = vmatprep.subr.mxu0 0.0
      %3866 = vmatpush1.msra.mxu0 0.0
      %3867 = vmatprep.mubr.f32.mxu0 0.0
      %3868 = vmatmul.mubr.f32.gmra.mrb[0].mxu0 %v3801
      %v3869 = vpop.f32.mrb[0].mxu0
      %v3870 = vadd.f32 0.0, %v3869
      %v3871 = vpop.f32.mrb[0].mxu0
      %3872 = vdwg.mxu0
      %v3874 = vsel %vm486, %v3785, 0
      %3876 = vmatprep.subr.mxu0 0.0
      %3877 = vmatpush1.msra.mxu0 %v1932
      %3878 = vmatprep.subr.mxu0 0.0
      %3879 = vmatpush1.msra.mxu0 %v2068
      %3880 = vmatprep.subr.mxu0 0.0
      %3881 = vmatpush1.msra.mxu0 0.0
      %3882 = vmatprep.subr.mxu0 0.0
      %3883 = vmatpush1.msra.mxu0 0.0
      %3884 = vmatprep.subr.mxu0 0.0
      %3885 = vmatpush1.msra.mxu0 0.0
      %3886 = vmatprep.subr.mxu0 0.0
      %3887 = vmatpush1.msra.mxu0 0.0
      %3888 = vmatprep.subr.mxu0 0.0
      %3889 = vmatpush1.msra.mxu0 0.0
      %3890 = vmatprep.subr.mxu0 0.0
      %3891 = vmatpush1.msra.mxu0 0.0
      %3892 = vmatprep.subr.mxu0 0.0
      %3893 = vmatpush1.msra.mxu0 0.0
      %3894 = vmatprep.subr.mxu0 0.0
      %3895 = vmatpush1.msra.mxu0 0.0
      %3896 = vmatprep.subr.mxu0 0.0
      %3897 = vmatpush1.msra.mxu0 0.0
      %3898 = vmatprep.subr.mxu0 0.0
      %3899 = vmatpush1.msra.mxu0 0.0
      %3900 = vmatprep.subr.mxu0 0.0
      %3901 = vmatpush1.msra.mxu0 0.0
      %3902 = vmatprep.subr.mxu0 0.0
      %3903 = vmatpush1.msra.mxu0 0.0
      %3904 = vmatprep.subr.mxu0 0.0
      %3905 = vmatpush1.msra.mxu0 0.0
      %3906 = vmatprep.subr.mxu0 0.0
      %3907 = vmatpush1.msra.mxu0 0.0
      %3908 = vmatprep.subr.mxu0 0.0
      %3909 = vmatpush1.msra.mxu0 0.0
      %3910 = vmatprep.subr.mxu0 0.0
      %3911 = vmatpush1.msra.mxu0 0.0
      %3912 = vmatprep.subr.mxu0 0.0
      %3913 = vmatpush1.msra.mxu0 0.0
      %3914 = vmatprep.subr.mxu0 0.0
      %3915 = vmatpush1.msra.mxu0 0.0
      %3916 = vmatprep.subr.mxu0 0.0
      %3917 = vmatpush1.msra.mxu0 0.0
      %3918 = vmatprep.subr.mxu0 0.0
      %3919 = vmatpush1.msra.mxu0 0.0
      %3920 = vmatprep.subr.mxu0 0.0
      %3921 = vmatpush1.msra.mxu0 0.0
      %3922 = vmatprep.subr.mxu0 0.0
      %3923 = vmatpush1.msra.mxu0 0.0
      %3924 = vmatprep.subr.mxu0 0.0
      %3925 = vmatpush1.msra.mxu0 0.0
      %3926 = vmatprep.subr.mxu0 0.0
      %3927 = vmatpush1.msra.mxu0 0.0
      %3928 = vmatprep.subr.mxu0 0.0
      %3929 = vmatpush1.msra.mxu0 0.0
      %3930 = vmatprep.subr.mxu0 0.0
      %3931 = vmatpush1.msra.mxu0 0.0
      %3932 = vmatprep.subr.mxu0 0.0
      %3933 = vmatpush1.msra.mxu0 0.0
      %3934 = vmatprep.subr.mxu0 0.0
      %3935 = vmatpush1.msra.mxu0 0.0
      %3936 = vmatprep.subr.mxu0 0.0
      %3937 = vmatpush1.msra.mxu0 0.0
      %3938 = vmatprep.subr.mxu0 0.0
      %3939 = vmatpush1.msra.mxu0 0.0
      %3940 = vmatprep.mubr.f32.mxu0 0.0
      %3941 = vmatmul.mubr.f32.gmra.mrb[0].mxu0 %v3874
      %v3942 = vpop.f32.mrb[0].mxu0
      %v3943 = vadd.f32 0.0, %v3942
      %v3944 = vpop.f32.mrb[0].mxu0
      %3945 = vdwg.mxu0
      %v3947 = vsel %vm486, %v3786, 0
      %3949 = vmatprep.subr.mxu0 0.0
      %3950 = vmatpush1.msra.mxu0 %v1933
      %3951 = vmatprep.subr.mxu0 0.0
      %3952 = vmatpush1.msra.mxu0 %v2069
      %3953 = vmatprep.subr.mxu0 0.0
      %3954 = vmatpush1.msra.mxu0 0.0
      %3955 = vmatprep.subr.mxu0 0.0
      %3956 = vmatpush1.msra.mxu0 0.0
      %3957 = vmatprep.subr.mxu0 0.0
      %3958 = vmatpush1.msra.mxu0 0.0
      %3959 = vmatprep.subr.mxu0 0.0
      %3960 = vmatpush1.msra.mxu0 0.0
      %3961 = vmatprep.subr.mxu0 0.0
      %3962 = vmatpush1.msra.mxu0 0.0
      %3963 = vmatprep.subr.mxu0 0.0
      %3964 = vmatpush1.msra.mxu0 0.0
      %3965 = vmatprep.subr.mxu0 0.0
      %3966 = vmatpush1.msra.mxu0 0.0
      %3967 = vmatprep.subr.mxu0 0.0
      %3968 = vmatpush1.msra.mxu0 0.0
      %3969 = vmatprep.subr.mxu0 0.0
      %3970 = vmatpush1.msra.mxu0 0.0
      %3971 = vmatprep.subr.mxu0 0.0
      %3972 = vmatpush1.msra.mxu0 0.0
      %3973 = vmatprep.subr.mxu0 0.0
      %3974 = vmatpush1.msra.mxu0 0.0
      %3975 = vmatprep.subr.mxu0 0.0
      %3976 = vmatpush1.msra.mxu0 0.0
      %3977 = vmatprep.subr.mxu0 0.0
      %3978 = vmatpush1.msra.mxu0 0.0
      %3979 = vmatprep.subr.mxu0 0.0
      %3980 = vmatpush1.msra.mxu0 0.0
      %3981 = vmatprep.subr.mxu0 0.0
      %3982 = vmatpush1.msra.mxu0 0.0
      %3983 = vmatprep.subr.mxu0 0.0
      %3984 = vmatpush1.msra.mxu0 0.0
      %3985 = vmatprep.subr.mxu0 0.0
      %3986 = vmatpush1.msra.mxu0 0.0
      %3987 = vmatprep.subr.mxu0 0.0
      %3988 = vmatpush1.msra.mxu0 0.0
      %3989 = vmatprep.subr.mxu0 0.0
      %3990 = vmatpush1.msra.mxu0 0.0
      %3991 = vmatprep.subr.mxu0 0.0
      %3992 = vmatpush1.msra.mxu0 0.0
      %3993 = vmatprep.subr.mxu0 0.0
      %3994 = vmatpush1.msra.mxu0 0.0
      %3995 = vmatprep.subr.mxu0 0.0
      %3996 = vmatpush1.msra.mxu0 0.0
      %3997 = vmatprep.subr.mxu0 0.0
      %3998 = vmatpush1.msra.mxu0 0.0
      %3999 = vmatprep.subr.mxu0 0.0
      %4000 = vmatpush1.msra.mxu0 0.0
      %4001 = vmatprep.subr.mxu0 0.0
      %4002 = vmatpush1.msra.mxu0 0.0
      %4003 = vmatprep.subr.mxu0 0.0
      %4004 = vmatpush1.msra.mxu0 0.0
      %4005 = vmatprep.subr.mxu0 0.0
      %4006 = vmatpush1.msra.mxu0 0.0
      %4007 = vmatprep.subr.mxu0 0.0
      %4008 = vmatpush1.msra.mxu0 0.0
      %4009 = vmatprep.subr.mxu0 0.0
      %4010 = vmatpush1.msra.mxu0 0.0
      %4011 = vmatprep.subr.mxu0 0.0
      %4012 = vmatpush1.msra.mxu0 0.0
      %4013 = vmatprep.mubr.f32.mxu0 0.0
      %4014 = vmatmul.mubr.f32.gmra.mrb[0].mxu0 %v3947
      %v4015 = vpop.f32.mrb[0].mxu0
      %v4016 = vadd.f32 0.0, %v4015
      %v4017 = vpop.f32.mrb[0].mxu0
      %4018 = vdwg.mxu0
      %v4020 = vsel %vm486, %v3787, 0
      %4022 = vmatprep.subr.mxu0 0.0
      %4023 = vmatpush1.msra.mxu0 %v1934
      %4024 = vmatprep.subr.mxu0 0.0
      %4025 = vmatpush1.msra.mxu0 %v2070
      %4026 = vmatprep.subr.mxu0 0.0
      %4027 = vmatpush1.msra.mxu0 0.0
      %4028 = vmatprep.subr.mxu0 0.0
      %4029 = vmatpush1.msra.mxu0 0.0
      %4030 = vmatprep.subr.mxu0 0.0
      %4031 = vmatpush1.msra.mxu0 0.0
      %4032 = vmatprep.subr.mxu0 0.0
      %4033 = vmatpush1.msra.mxu0 0.0
      %4034 = vmatprep.subr.mxu0 0.0
      %4035 = vmatpush1.msra.mxu0 0.0
      %4036 = vmatprep.subr.mxu0 0.0
      %4037 = vmatpush1.msra.mxu0 0.0
      %4038 = vmatprep.subr.mxu0 0.0
      %4039 = vmatpush1.msra.mxu0 0.0
      %4040 = vmatprep.subr.mxu0 0.0
      %4041 = vmatpush1.msra.mxu0 0.0
      %4042 = vmatprep.subr.mxu0 0.0
      %4043 = vmatpush1.msra.mxu0 0.0
      %4044 = vmatprep.subr.mxu0 0.0
      %4045 = vmatpush1.msra.mxu0 0.0
      %4046 = vmatprep.subr.mxu0 0.0
      %4047 = vmatpush1.msra.mxu0 0.0
      %4048 = vmatprep.subr.mxu0 0.0
      %4049 = vmatpush1.msra.mxu0 0.0
      %4050 = vmatprep.subr.mxu0 0.0
      %4051 = vmatpush1.msra.mxu0 0.0
      %4052 = vmatprep.subr.mxu0 0.0
      %4053 = vmatpush1.msra.mxu0 0.0
      %4054 = vmatprep.subr.mxu0 0.0
      %4055 = vmatpush1.msra.mxu0 0.0
      %4056 = vmatprep.subr.mxu0 0.0
      %4057 = vmatpush1.msra.mxu0 0.0
      %4058 = vmatprep.subr.mxu0 0.0
      %4059 = vmatpush1.msra.mxu0 0.0
      %4060 = vmatprep.subr.mxu0 0.0
      %4061 = vmatpush1.msra.mxu0 0.0
      %4062 = vmatprep.subr.mxu0 0.0
      %4063 = vmatpush1.msra.mxu0 0.0
      %4064 = vmatprep.subr.mxu0 0.0
      %4065 = vmatpush1.msra.mxu0 0.0
      %4066 = vmatprep.subr.mxu0 0.0
      %4067 = vmatpush1.msra.mxu0 0.0
      %4068 = vmatprep.subr.mxu0 0.0
      %4069 = vmatpush1.msra.mxu0 0.0
      %4070 = vmatprep.subr.mxu0 0.0
      %4071 = vmatpush1.msra.mxu0 0.0
      %4072 = vmatprep.subr.mxu0 0.0
      %4073 = vmatpush1.msra.mxu0 0.0
      %4074 = vmatprep.subr.mxu0 0.0
      %4075 = vmatpush1.msra.mxu0 0.0
      %4076 = vmatprep.subr.mxu0 0.0
      %4077 = vmatpush1.msra.mxu0 0.0
      %4078 = vmatprep.subr.mxu0 0.0
      %4079 = vmatpush1.msra.mxu0 0.0
      %4080 = vmatprep.subr.mxu0 0.0
      %4081 = vmatpush1.msra.mxu0 0.0
      %4082 = vmatprep.subr.mxu0 0.0
      %4083 = vmatpush1.msra.mxu0 0.0
      %4084 = vmatprep.subr.mxu0 0.0
      %4085 = vmatpush1.msra.mxu0 0.0
      %4086 = vmatprep.mubr.f32.mxu0 0.0
      %4087 = vmatmul.mubr.f32.gmra.mrb[0].mxu0 %v4020
      %v4088 = vpop.f32.mrb[0].mxu0
      %v4089 = vadd.f32 0.0, %v4088
      %v4090 = vpop.f32.mrb[0].mxu0
      %4091 = vdwg.mxu0
      %v4093 = vsel %vm486, %v3788, 0
      %4095 = vmatprep.subr.mxu0 0.0
      %4096 = vmatpush1.msra.mxu0 %v1935
      %4097 = vmatprep.subr.mxu0 0.0
      %4098 = vmatpush1.msra.mxu0 %v2071
      %4099 = vmatprep.subr.mxu0 0.0
      %4100 = vmatpush1.msra.mxu0 0.0
      %4101 = vmatprep.subr.mxu0 0.0
      %4102 = vmatpush1.msra.mxu0 0.0
      %4103 = vmatprep.subr.mxu0 0.0
      %4104 = vmatpush1.msra.mxu0 0.0
      %4105 = vmatprep.subr.mxu0 0.0
      %4106 = vmatpush1.msra.mxu0 0.0
      %4107 = vmatprep.subr.mxu0 0.0
      %4108 = vmatpush1.msra.mxu0 0.0
      %4109 = vmatprep.subr.mxu0 0.0
      %4110 = vmatpush1.msra.mxu0 0.0
      %4111 = vmatprep.subr.mxu0 0.0
      %4112 = vmatpush1.msra.mxu0 0.0
      %4113 = vmatprep.subr.mxu0 0.0
      %4114 = vmatpush1.msra.mxu0 0.0
      %4115 = vmatprep.subr.mxu0 0.0
      %4116 = vmatpush1.msra.mxu0 0.0
      %4117 = vmatprep.subr.mxu0 0.0
      %4118 = vmatpush1.msra.mxu0 0.0
      %4119 = vmatprep.subr.mxu0 0.0
      %4120 = vmatpush1.msra.mxu0 0.0
      %4121 = vmatprep.subr.mxu0 0.0
      %4122 = vmatpush1.msra.mxu0 0.0
      %4123 = vmatprep.subr.mxu0 0.0
      %4124 = vmatpush1.msra.mxu0 0.0
      %4125 = vmatprep.subr.mxu0 0.0
      %4126 = vmatpush1.msra.mxu0 0.0
      %4127 = vmatprep.subr.mxu0 0.0
      %4128 = vmatpush1.msra.mxu0 0.0
      %4129 = vmatprep.subr.mxu0 0.0
      %4130 = vmatpush1.msra.mxu0 0.0
      %4131 = vmatprep.subr.mxu0 0.0
      %4132 = vmatpush1.msra.mxu0 0.0
      %4133 = vmatprep.subr.mxu0 0.0
      %4134 = vmatpush1.msra.mxu0 0.0
      %4135 = vmatprep.subr.mxu0 0.0
      %4136 = vmatpush1.msra.mxu0 0.0
      %4137 = vmatprep.subr.mxu0 0.0
      %4138 = vmatpush1.msra.mxu0 0.0
      %4139 = vmatprep.subr.mxu0 0.0
      %4140 = vmatpush1.msra.mxu0 0.0
      %4141 = vmatprep.subr.mxu0 0.0
      %4142 = vmatpush1.msra.mxu0 0.0
      %4143 = vmatprep.subr.mxu0 0.0
      %4144 = vmatpush1.msra.mxu0 0.0
      %4145 = vmatprep.subr.mxu0 0.0
      %4146 = vmatpush1.msra.mxu0 0.0
      %4147 = vmatprep.subr.mxu0 0.0
      %4148 = vmatpush1.msra.mxu0 0.0
      %4149 = vmatprep.subr.mxu0 0.0
      %4150 = vmatpush1.msra.mxu0 0.0
      %4151 = vmatprep.subr.mxu0 0.0
      %4152 = vmatpush1.msra.mxu0 0.0
      %4153 = vmatprep.subr.mxu0 0.0
      %4154 = vmatpush1.msra.mxu0 0.0
      %4155 = vmatprep.subr.mxu0 0.0
      %4156 = vmatpush1.msra.mxu0 0.0
      %4157 = vmatprep.subr.mxu0 0.0
      %4158 = vmatpush1.msra.mxu0 0.0
      %4159 = vmatprep.mubr.f32.mxu0 0.0
      %4160 = vmatmul.mubr.f32.gmra.mrb[0].mxu0 %v4093
      %v4161 = vpop.f32.mrb[0].mxu0
      %v4162 = vadd.f32 0.0, %v4161
      %v4163 = vpop.f32.mrb[0].mxu0
      %4164 = vdwg.mxu0
      %v4166 = vsel %vm486, %v3789, 0
      %4168 = vmatprep.subr.mxu0 0.0
      %4169 = vmatpush1.msra.mxu0 %v1936
      %4170 = vmatprep.subr.mxu0 0.0
      %4171 = vmatpush1.msra.mxu0 %v2072
      %4172 = vmatprep.subr.mxu0 0.0
      %4173 = vmatpush1.msra.mxu0 0.0
      %4174 = vmatprep.subr.mxu0 0.0
      %4175 = vmatpush1.msra.mxu0 0.0
      %4176 = vmatprep.subr.mxu0 0.0
      %4177 = vmatpush1.msra.mxu0 0.0
      %4178 = vmatprep.subr.mxu0 0.0
      %4179 = vmatpush1.msra.mxu0 0.0
      %4180 = vmatprep.subr.mxu0 0.0
      %4181 = vmatpush1.msra.mxu0 0.0
      %4182 = vmatprep.subr.mxu0 0.0
      %4183 = vmatpush1.msra.mxu0 0.0
      %4184 = vmatprep.subr.mxu0 0.0
      %4185 = vmatpush1.msra.mxu0 0.0
      %4186 = vmatprep.subr.mxu0 0.0
      %4187 = vmatpush1.msra.mxu0 0.0
      %4188 = vmatprep.subr.mxu0 0.0
      %4189 = vmatpush1.msra.mxu0 0.0
      %4190 = vmatprep.subr.mxu0 0.0
      %4191 = vmatpush1.msra.mxu0 0.0
      %4192 = vmatprep.subr.mxu0 0.0
      %4193 = vmatpush1.msra.mxu0 0.0
      %4194 = vmatprep.subr.mxu0 0.0
      %4195 = vmatpush1.msra.mxu0 0.0
      %4196 = vmatprep.subr.mxu0 0.0
      %4197 = vmatpush1.msra.mxu0 0.0
      %4198 = vmatprep.subr.mxu0 0.0
      %4199 = vmatpush1.msra.mxu0 0.0
      %4200 = vmatprep.subr.mxu0 0.0
      %4201 = vmatpush1.msra.mxu0 0.0
      %4202 = vmatprep.subr.mxu0 0.0
      %4203 = vmatpush1.msra.mxu0 0.0
      %4204 = vmatprep.subr.mxu0 0.0
      %4205 = vmatpush1.msra.mxu0 0.0
      %4206 = vmatprep.subr.mxu0 0.0
      %4207 = vmatpush1.msra.mxu0 0.0
      %4208 = vmatprep.subr.mxu0 0.0
      %4209 = vmatpush1.msra.mxu0 0.0
      %4210 = vmatprep.subr.mxu0 0.0
      %4211 = vmatpush1.msra.mxu0 0.0
      %4212 = vmatprep.subr.mxu0 0.0
      %4213 = vmatpush1.msra.mxu0 0.0
      %4214 = vmatprep.subr.mxu0 0.0
      %4215 = vmatpush1.msra.mxu0 0.0
      %4216 = vmatprep.subr.mxu0 0.0
      %4217 = vmatpush1.msra.mxu0 0.0
      %4218 = vmatprep.subr.mxu0 0.0
      %4219 = vmatpush1.msra.mxu0 0.0
      %4220 = vmatprep.subr.mxu0 0.0
      %4221 = vmatpush1.msra.mxu0 0.0
      %4222 = vmatprep.subr.mxu0 0.0
      %4223 = vmatpush1.msra.mxu0 0.0
      %4224 = vmatprep.subr.mxu0 0.0
      %4225 = vmatpush1.msra.mxu0 0.0
      %4226 = vmatprep.subr.mxu0 0.0
      %4227 = vmatpush1.msra.mxu0 0.0
      %4228 = vmatprep.subr.mxu0 0.0
      %4229 = vmatpush1.msra.mxu0 0.0
      %4230 = vmatprep.subr.mxu0 0.0
      %4231 = vmatpush1.msra.mxu0 0.0
      %4232 = vmatprep.mubr.f32.mxu0 0.0
      %4233 = vmatmul.mubr.f32.gmra.mrb[0].mxu0 %v4166
      %v4234 = vpop.f32.mrb[0].mxu0
      %v4235 = vadd.f32 0.0, %v4234
      %v4236 = vpop.f32.mrb[0].mxu0
      %4237 = vdwg.mxu0
      %v4239 = vsel %vm486, %v3790, 0
      %4241 = vmatprep.subr.mxu0 0.0
      %4242 = vmatpush1.msra.mxu0 %v1937
      %4243 = vmatprep.subr.mxu0 0.0
      %4244 = vmatpush1.msra.mxu0 %v2073
      %4245 = vmatprep.subr.mxu0 0.0
      %4246 = vmatpush1.msra.mxu0 0.0
      %4247 = vmatprep.subr.mxu0 0.0
      %4248 = vmatpush1.msra.mxu0 0.0
      %4249 = vmatprep.subr.mxu0 0.0
      %4250 = vmatpush1.msra.mxu0 0.0
      %4251 = vmatprep.subr.mxu0 0.0
      %4252 = vmatpush1.msra.mxu0 0.0
      %4253 = vmatprep.subr.mxu0 0.0
      %4254 = vmatpush1.msra.mxu0 0.0
      %4255 = vmatprep.subr.mxu0 0.0
      %4256 = vmatpush1.msra.mxu0 0.0
      %4257 = vmatprep.subr.mxu0 0.0
      %4258 = vmatpush1.msra.mxu0 0.0
      %4259 = vmatprep.subr.mxu0 0.0
      %4260 = vmatpush1.msra.mxu0 0.0
      %4261 = vmatprep.subr.mxu0 0.0
      %4262 = vmatpush1.msra.mxu0 0.0
      %4263 = vmatprep.subr.mxu0 0.0
      %4264 = vmatpush1.msra.mxu0 0.0
      %4265 = vmatprep.subr.mxu0 0.0
      %4266 = vmatpush1.msra.mxu0 0.0
      %4267 = vmatprep.subr.mxu0 0.0
      %4268 = vmatpush1.msra.mxu0 0.0
      %4269 = vmatprep.subr.mxu0 0.0
      %4270 = vmatpush1.msra.mxu0 0.0
      %4271 = vmatprep.subr.mxu0 0.0
      %4272 = vmatpush1.msra.mxu0 0.0
      %4273 = vmatprep.subr.mxu0 0.0
      %4274 = vmatpush1.msra.mxu0 0.0
      %4275 = vmatprep.subr.mxu0 0.0
      %4276 = vmatpush1.msra.mxu0 0.0
      %4277 = vmatprep.subr.mxu0 0.0
      %4278 = vmatpush1.msra.mxu0 0.0
      %4279 = vmatprep.subr.mxu0 0.0
      %4280 = vmatpush1.msra.mxu0 0.0
      %4281 = vmatprep.subr.mxu0 0.0
      %4282 = vmatpush1.msra.mxu0 0.0
      %4283 = vmatprep.subr.mxu0 0.0
      %4284 = vmatpush1.msra.mxu0 0.0
      %4285 = vmatprep.subr.mxu0 0.0
      %4286 = vmatpush1.msra.mxu0 0.0
      %4287 = vmatprep.subr.mxu0 0.0
      %4288 = vmatpush1.msra.mxu0 0.0
      %4289 = vmatprep.subr.mxu0 0.0
      %4290 = vmatpush1.msra.mxu0 0.0
      %4291 = vmatprep.subr.mxu0 0.0
      %4292 = vmatpush1.msra.mxu0 0.0
      %4293 = vmatprep.subr.mxu0 0.0
      %4294 = vmatpush1.msra.mxu0 0.0
      %4295 = vmatprep.subr.mxu0 0.0
      %4296 = vmatpush1.msra.mxu0 0.0
      %4297 = vmatprep.subr.mxu0 0.0
      %4298 = vmatpush1.msra.mxu0 0.0
      %4299 = vmatprep.subr.mxu0 0.0
      %4300 = vmatpush1.msra.mxu0 0.0
      %4301 = vmatprep.subr.mxu0 0.0
      %4302 = vmatpush1.msra.mxu0 0.0
      %4303 = vmatprep.subr.mxu0 0.0
      %4304 = vmatpush1.msra.mxu0 0.0
      %4305 = vmatprep.mubr.f32.mxu0 0.0
      %4306 = vmatmul.mubr.f32.gmra.mrb[0].mxu0 %v4239
      %v4307 = vpop.f32.mrb[0].mxu0
      %v4308 = vadd.f32 0.0, %v4307
      %v4309 = vpop.f32.mrb[0].mxu0
      %4310 = vdwg.mxu0
      %v4312 = vsel %vm486, %v3791, 0
      %4314 = vmatprep.subr.mxu0 0.0
      %4315 = vmatpush1.msra.mxu0 %v1938
      %4316 = vmatprep.subr.mxu0 0.0
      %4317 = vmatpush1.msra.mxu0 %v2074
      %4318 = vmatprep.subr.mxu0 0.0
      %4319 = vmatpush1.msra.mxu0 0.0
      %4320 = vmatprep.subr.mxu0 0.0
      %4321 = vmatpush1.msra.mxu0 0.0
      %4322 = vmatprep.subr.mxu0 0.0
      %4323 = vmatpush1.msra.mxu0 0.0
      %4324 = vmatprep.subr.mxu0 0.0
      %4325 = vmatpush1.msra.mxu0 0.0
      %4326 = vmatprep.subr.mxu0 0.0
      %4327 = vmatpush1.msra.mxu0 0.0
      %4328 = vmatprep.subr.mxu0 0.0
      %4329 = vmatpush1.msra.mxu0 0.0
      %4330 = vmatprep.subr.mxu0 0.0
      %4331 = vmatpush1.msra.mxu0 0.0
      %4332 = vmatprep.subr.mxu0 0.0
      %4333 = vmatpush1.msra.mxu0 0.0
      %4334 = vmatprep.subr.mxu0 0.0
      %4335 = vmatpush1.msra.mxu0 0.0
      %4336 = vmatprep.subr.mxu0 0.0
      %4337 = vmatpush1.msra.mxu0 0.0
      %4338 = vmatprep.subr.mxu0 0.0
      %4339 = vmatpush1.msra.mxu0 0.0
      %4340 = vmatprep.subr.mxu0 0.0
      %4341 = vmatpush1.msra.mxu0 0.0
      %4342 = vmatprep.subr.mxu0 0.0
      %4343 = vmatpush1.msra.mxu0 0.0
      %4344 = vmatprep.subr.mxu0 0.0
      %4345 = vmatpush1.msra.mxu0 0.0
      %4346 = vmatprep.subr.mxu0 0.0
      %4347 = vmatpush1.msra.mxu0 0.0
      %4348 = vmatprep.subr.mxu0 0.0
      %4349 = vmatpush1.msra.mxu0 0.0
      %4350 = vmatprep.subr.mxu0 0.0
      %4351 = vmatpush1.msra.mxu0 0.0
      %4352 = vmatprep.subr.mxu0 0.0
      %4353 = vmatpush1.msra.mxu0 0.0
      %4354 = vmatprep.subr.mxu0 0.0
      %4355 = vmatpush1.msra.mxu0 0.0
      %4356 = vmatprep.subr.mxu0 0.0
      %4357 = vmatpush1.msra.mxu0 0.0
      %4358 = vmatprep.subr.mxu0 0.0
      %4359 = vmatpush1.msra.mxu0 0.0
      %4360 = vmatprep.subr.mxu0 0.0
      %4361 = vmatpush1.msra.mxu0 0.0
      %4362 = vmatprep.subr.mxu0 0.0
      %4363 = vmatpush1.msra.mxu0 0.0
      %4364 = vmatprep.subr.mxu0 0.0
      %4365 = vmatpush1.msra.mxu0 0.0
      %4366 = vmatprep.subr.mxu0 0.0
      %4367 = vmatpush1.msra.mxu0 0.0
      %4368 = vmatprep.subr.mxu0 0.0
      %4369 = vmatpush1.msra.mxu0 0.0
      %4370 = vmatprep.subr.mxu0 0.0
      %4371 = vmatpush1.msra.mxu0 0.0
      %4372 = vmatprep.subr.mxu0 0.0
      %4373 = vmatpush1.msra.mxu0 0.0
      %4374 = vmatprep.subr.mxu0 0.0
      %4375 = vmatpush1.msra.mxu0 0.0
      %4376 = vmatprep.subr.mxu0 0.0
      %4377 = vmatpush1.msra.mxu0 0.0
      %4378 = vmatprep.mubr.f32.mxu0 0.0
      %4379 = vmatmul.mubr.f32.gmra.mrb[0].mxu0 %v4312
      %v4380 = vpop.f32.mrb[0].mxu0
      %v4381 = vadd.f32 0.0, %v4380
      %v4382 = vpop.f32.mrb[0].mxu0
      %4383 = vdwg.mxu0
      %v4385 = vsel %vm486, %v3792, 0
      %4387 = vmatprep.subr.mxu0 0.0
      %4388 = vmatpush1.msra.mxu0 %v2203
      %4389 = vmatprep.subr.mxu0 0.0
      %4390 = vmatpush1.msra.mxu0 %v2339
      %4391 = vmatprep.subr.mxu0 0.0
      %4392 = vmatpush1.msra.mxu0 0.0
      %4393 = vmatprep.subr.mxu0 0.0
      %4394 = vmatpush1.msra.mxu0 0.0
      %4395 = vmatprep.subr.mxu0 0.0
      %4396 = vmatpush1.msra.mxu0 0.0
      %4397 = vmatprep.subr.mxu0 0.0
      %4398 = vmatpush1.msra.mxu0 0.0
      %4399 = vmatprep.subr.mxu0 0.0
      %4400 = vmatpush1.msra.mxu0 0.0
      %4401 = vmatprep.subr.mxu0 0.0
      %4402 = vmatpush1.msra.mxu0 0.0
      %4403 = vmatprep.subr.mxu0 0.0
      %4404 = vmatpush1.msra.mxu0 0.0
      %4405 = vmatprep.subr.mxu0 0.0
      %4406 = vmatpush1.msra.mxu0 0.0
      %4407 = vmatprep.subr.mxu0 0.0
      %4408 = vmatpush1.msra.mxu0 0.0
      %4409 = vmatprep.subr.mxu0 0.0
      %4410 = vmatpush1.msra.mxu0 0.0
      %4411 = vmatprep.subr.mxu0 0.0
      %4412 = vmatpush1.msra.mxu0 0.0
      %4413 = vmatprep.subr.mxu0 0.0
      %4414 = vmatpush1.msra.mxu0 0.0
      %4415 = vmatprep.subr.mxu0 0.0
      %4416 = vmatpush1.msra.mxu0 0.0
      %4417 = vmatprep.subr.mxu0 0.0
      %4418 = vmatpush1.msra.mxu0 0.0
      %4419 = vmatprep.subr.mxu0 0.0
      %4420 = vmatpush1.msra.mxu0 0.0
      %4421 = vmatprep.subr.mxu0 0.0
      %4422 = vmatpush1.msra.mxu0 0.0
      %4423 = vmatprep.subr.mxu0 0.0
      %4424 = vmatpush1.msra.mxu0 0.0
      %4425 = vmatprep.subr.mxu0 0.0
      %4426 = vmatpush1.msra.mxu0 0.0
      %4427 = vmatprep.subr.mxu0 0.0
      %4428 = vmatpush1.msra.mxu0 0.0
      %4429 = vmatprep.subr.mxu0 0.0
      %4430 = vmatpush1.msra.mxu0 0.0
      %4431 = vmatprep.subr.mxu0 0.0
      %4432 = vmatpush1.msra.mxu0 0.0
      %4433 = vmatprep.subr.mxu0 0.0
      %4434 = vmatpush1.msra.mxu0 0.0
      %4435 = vmatprep.subr.mxu0 0.0
      %4436 = vmatpush1.msra.mxu0 0.0
      %4437 = vmatprep.subr.mxu0 0.0
      %4438 = vmatpush1.msra.mxu0 0.0
      %4439 = vmatprep.subr.mxu0 0.0
      %4440 = vmatpush1.msra.mxu0 0.0
      %4441 = vmatprep.subr.mxu0 0.0
      %4442 = vmatpush1.msra.mxu0 0.0
      %4443 = vmatprep.subr.mxu0 0.0
      %4444 = vmatpush1.msra.mxu0 0.0
      %4445 = vmatprep.subr.mxu0 0.0
      %4446 = vmatpush1.msra.mxu0 0.0
      %4447 = vmatprep.subr.mxu0 0.0
      %4448 = vmatpush1.msra.mxu0 0.0
      %4449 = vmatprep.subr.mxu0 0.0
      %4450 = vmatpush1.msra.mxu0 0.0
      %4451 = vmatprep.mubr.f32.mxu0 0.0
      %4452 = vmatmul.mubr.f32.gmra.mrb[0].mxu0 %v4385
      %v4453 = vpop.f32.mrb[0].mxu0
      %v4454 = vadd.f32 0.0, %v4453
      %v4455 = vpop.f32.mrb[0].mxu0
      %4456 = vdwg.mxu0
      %v4458 = vsel %vm486, %v3793, 0
      %4460 = vmatprep.subr.mxu0 0.0
      %4461 = vmatpush1.msra.mxu0 %v2204
      %4462 = vmatprep.subr.mxu0 0.0
      %4463 = vmatpush1.msra.mxu0 %v2340
      %4464 = vmatprep.subr.mxu0 0.0
      %4465 = vmatpush1.msra.mxu0 0.0
      %4466 = vmatprep.subr.mxu0 0.0
      %4467 = vmatpush1.msra.mxu0 0.0
      %4468 = vmatprep.subr.mxu0 0.0
      %4469 = vmatpush1.msra.mxu0 0.0
      %4470 = vmatprep.subr.mxu0 0.0
      %4471 = vmatpush1.msra.mxu0 0.0
      %4472 = vmatprep.subr.mxu0 0.0
      %4473 = vmatpush1.msra.mxu0 0.0
      %4474 = vmatprep.subr.mxu0 0.0
      %4475 = vmatpush1.msra.mxu0 0.0
      %4476 = vmatprep.subr.mxu0 0.0
      %4477 = vmatpush1.msra.mxu0 0.0
      %4478 = vmatprep.subr.mxu0 0.0
      %4479 = vmatpush1.msra.mxu0 0.0
      %4480 = vmatprep.subr.mxu0 0.0
      %4481 = vmatpush1.msra.mxu0 0.0
      %4482 = vmatprep.subr.mxu0 0.0
      %4483 = vmatpush1.msra.mxu0 0.0
      %4484 = vmatprep.subr.mxu0 0.0
      %4485 = vmatpush1.msra.mxu0 0.0
      %4486 = vmatprep.subr.mxu0 0.0
      %4487 = vmatpush1.msra.mxu0 0.0
      %4488 = vmatprep.subr.mxu0 0.0
      %4489 = vmatpush1.msra.mxu0 0.0
      %4490 = vmatprep.subr.mxu0 0.0
      %4491 = vmatpush1.msra.mxu0 0.0
      %4492 = vmatprep.subr.mxu0 0.0
      %4493 = vmatpush1.msra.mxu0 0.0
      %4494 = vmatprep.subr.mxu0 0.0
      %4495 = vmatpush1.msra.mxu0 0.0
      %4496 = vmatprep.subr.mxu0 0.0
      %4497 = vmatpush1.msra.mxu0 0.0
      %4498 = vmatprep.subr.mxu0 0.0
      %4499 = vmatpush1.msra.mxu0 0.0
      %4500 = vmatprep.subr.mxu0 0.0
      %4501 = vmatpush1.msra.mxu0 0.0
      %4502 = vmatprep.subr.mxu0 0.0
      %4503 = vmatpush1.msra.mxu0 0.0
      %4504 = vmatprep.subr.mxu0 0.0
      %4505 = vmatpush1.msra.mxu0 0.0
      %4506 = vmatprep.subr.mxu0 0.0
      %4507 = vmatpush1.msra.mxu0 0.0
      %4508 = vmatprep.subr.mxu0 0.0
      %4509 = vmatpush1.msra.mxu0 0.0
      %4510 = vmatprep.subr.mxu0 0.0
      %4511 = vmatpush1.msra.mxu0 0.0
      %4512 = vmatprep.subr.mxu0 0.0
      %4513 = vmatpush1.msra.mxu0 0.0
      %4514 = vmatprep.subr.mxu0 0.0
      %4515 = vmatpush1.msra.mxu0 0.0
      %4516 = vmatprep.subr.mxu0 0.0
      %4517 = vmatpush1.msra.mxu0 0.0
      %4518 = vmatprep.subr.mxu0 0.0
      %4519 = vmatpush1.msra.mxu0 0.0
      %4520 = vmatprep.subr.mxu0 0.0
      %4521 = vmatpush1.msra.mxu0 0.0
      %4522 = vmatprep.subr.mxu0 0.0
      %4523 = vmatpush1.msra.mxu0 0.0
      %4524 = vmatprep.mubr.f32.mxu0 0.0
      %4525 = vmatmul.mubr.f32.gmra.mrb[0].mxu0 %v4458
      %v4526 = vpop.f32.mrb[0].mxu0
      %v4527 = vadd.f32 0.0, %v4526
      %v4528 = vpop.f32.mrb[0].mxu0
      %4529 = vdwg.mxu0
      %v4531 = vsel %vm486, %v3794, 0
      %4533 = vmatprep.subr.mxu0 0.0
      %4534 = vmatpush1.msra.mxu0 %v2205
      %4535 = vmatprep.subr.mxu0 0.0
      %4536 = vmatpush1.msra.mxu0 %v2341
      %4537 = vmatprep.subr.mxu0 0.0
      %4538 = vmatpush1.msra.mxu0 0.0
      %4539 = vmatprep.subr.mxu0 0.0
      %4540 = vmatpush1.msra.mxu0 0.0
      %4541 = vmatprep.subr.mxu0 0.0
      %4542 = vmatpush1.msra.mxu0 0.0
      %4543 = vmatprep.subr.mxu0 0.0
      %4544 = vmatpush1.msra.mxu0 0.0
      %4545 = vmatprep.subr.mxu0 0.0
      %4546 = vmatpush1.msra.mxu0 0.0
      %4547 = vmatprep.subr.mxu0 0.0
      %4548 = vmatpush1.msra.mxu0 0.0
      %4549 = vmatprep.subr.mxu0 0.0
      %4550 = vmatpush1.msra.mxu0 0.0
      %4551 = vmatprep.subr.mxu0 0.0
      %4552 = vmatpush1.msra.mxu0 0.0
      %4553 = vmatprep.subr.mxu0 0.0
      %4554 = vmatpush1.msra.mxu0 0.0
      %4555 = vmatprep.subr.mxu0 0.0
      %4556 = vmatpush1.msra.mxu0 0.0
      %4557 = vmatprep.subr.mxu0 0.0
      %4558 = vmatpush1.msra.mxu0 0.0
      %4559 = vmatprep.subr.mxu0 0.0
      %4560 = vmatpush1.msra.mxu0 0.0
      %4561 = vmatprep.subr.mxu0 0.0
      %4562 = vmatpush1.msra.mxu0 0.0
      %4563 = vmatprep.subr.mxu0 0.0
      %4564 = vmatpush1.msra.mxu0 0.0
      %4565 = vmatprep.subr.mxu0 0.0
      %4566 = vmatpush1.msra.mxu0 0.0
      %4567 = vmatprep.subr.mxu0 0.0
      %4568 = vmatpush1.msra.mxu0 0.0
      %4569 = vmatprep.subr.mxu0 0.0
      %4570 = vmatpush1.msra.mxu0 0.0
      %4571 = vmatprep.subr.mxu0 0.0
      %4572 = vmatpush1.msra.mxu0 0.0
      %4573 = vmatprep.subr.mxu0 0.0
      %4574 = vmatpush1.msra.mxu0 0.0
      %4575 = vmatprep.subr.mxu0 0.0
      %4576 = vmatpush1.msra.mxu0 0.0
      %4577 = vmatprep.subr.mxu0 0.0
      %4578 = vmatpush1.msra.mxu0 0.0
      %4579 = vmatprep.subr.mxu0 0.0
      %4580 = vmatpush1.msra.mxu0 0.0
      %4581 = vmatprep.subr.mxu0 0.0
      %4582 = vmatpush1.msra.mxu0 0.0
      %4583 = vmatprep.subr.mxu0 0.0
      %4584 = vmatpush1.msra.mxu0 0.0
      %4585 = vmatprep.subr.mxu0 0.0
      %4586 = vmatpush1.msra.mxu0 0.0
      %4587 = vmatprep.subr.mxu0 0.0
      %4588 = vmatpush1.msra.mxu0 0.0
      %4589 = vmatprep.subr.mxu0 0.0
      %4590 = vmatpush1.msra.mxu0 0.0
      %4591 = vmatprep.subr.mxu0 0.0
      %4592 = vmatpush1.msra.mxu0 0.0
      %4593 = vmatprep.subr.mxu0 0.0
      %4594 = vmatpush1.msra.mxu0 0.0
      %4595 = vmatprep.subr.mxu0 0.0
      %4596 = vmatpush1.msra.mxu0 0.0
      %4597 = vmatprep.mubr.f32.mxu0 0.0
      %4598 = vmatmul.mubr.f32.gmra.mrb[0].mxu0 %v4531
      %v4599 = vpop.f32.mrb[0].mxu0
      %v4600 = vadd.f32 0.0, %v4599
      %v4601 = vpop.f32.mrb[0].mxu0
      %4602 = vdwg.mxu0
      %v4604 = vsel %vm486, %v3795, 0
      %4606 = vmatprep.subr.mxu0 0.0
      %4607 = vmatpush1.msra.mxu0 %v2206
      %4608 = vmatprep.subr.mxu0 0.0
      %4609 = vmatpush1.msra.mxu0 %v2342
      %4610 = vmatprep.subr.mxu0 0.0
      %4611 = vmatpush1.msra.mxu0 0.0
      %4612 = vmatprep.subr.mxu0 0.0
      %4613 = vmatpush1.msra.mxu0 0.0
      %4614 = vmatprep.subr.mxu0 0.0
      %4615 = vmatpush1.msra.mxu0 0.0
      %4616 = vmatprep.subr.mxu0 0.0
      %4617 = vmatpush1.msra.mxu0 0.0
      %4618 = vmatprep.subr.mxu0 0.0
      %4619 = vmatpush1.msra.mxu0 0.0
      %4620 = vmatprep.subr.mxu0 0.0
      %4621 = vmatpush1.msra.mxu0 0.0
      %4622 = vmatprep.subr.mxu0 0.0
      %4623 = vmatpush1.msra.mxu0 0.0
      %4624 = vmatprep.subr.mxu0 0.0
      %4625 = vmatpush1.msra.mxu0 0.0
      %4626 = vmatprep.subr.mxu0 0.0
      %4627 = vmatpush1.msra.mxu0 0.0
      %4628 = vmatprep.subr.mxu0 0.0
      %4629 = vmatpush1.msra.mxu0 0.0
      %4630 = vmatprep.subr.mxu0 0.0
      %4631 = vmatpush1.msra.mxu0 0.0
      %4632 = vmatprep.subr.mxu0 0.0
      %4633 = vmatpush1.msra.mxu0 0.0
      %4634 = vmatprep.subr.mxu0 0.0
      %4635 = vmatpush1.msra.mxu0 0.0
      %4636 = vmatprep.subr.mxu0 0.0
      %4637 = vmatpush1.msra.mxu0 0.0
      %4638 = vmatprep.subr.mxu0 0.0
      %4639 = vmatpush1.msra.mxu0 0.0
      %4640 = vmatprep.subr.mxu0 0.0
      %4641 = vmatpush1.msra.mxu0 0.0
      %4642 = vmatprep.subr.mxu0 0.0
      %4643 = vmatpush1.msra.mxu0 0.0
      %4644 = vmatprep.subr.mxu0 0.0
      %4645 = vmatpush1.msra.mxu0 0.0
      %4646 = vmatprep.subr.mxu0 0.0
      %4647 = vmatpush1.msra.mxu0 0.0
      %4648 = vmatprep.subr.mxu0 0.0
      %4649 = vmatpush1.msra.mxu0 0.0
      %4650 = vmatprep.subr.mxu0 0.0
      %4651 = vmatpush1.msra.mxu0 0.0
      %4652 = vmatprep.subr.mxu0 0.0
      %4653 = vmatpush1.msra.mxu0 0.0
      %4654 = vmatprep.subr.mxu0 0.0
      %4655 = vmatpush1.msra.mxu0 0.0
      %4656 = vmatprep.subr.mxu0 0.0
      %4657 = vmatpush1.msra.mxu0 0.0
      %4658 = vmatprep.subr.mxu0 0.0
      %4659 = vmatpush1.msra.mxu0 0.0
      %4660 = vmatprep.subr.mxu0 0.0
      %4661 = vmatpush1.msra.mxu0 0.0
      %4662 = vmatprep.subr.mxu0 0.0
      %4663 = vmatpush1.msra.mxu0 0.0
      %4664 = vmatprep.subr.mxu0 0.0
      %4665 = vmatpush1.msra.mxu0 0.0
      %4666 = vmatprep.subr.mxu0 0.0
      %4667 = vmatpush1.msra.mxu0 0.0
      %4668 = vmatprep.subr.mxu0 0.0
      %4669 = vmatpush1.msra.mxu0 0.0
      %4670 = vmatprep.mubr.f32.mxu0 0.0
      %4671 = vmatmul.mubr.f32.gmra.mrb[0].mxu0 %v4604
      %v4672 = vpop.f32.mrb[0].mxu0
      %v4673 = vadd.f32 0.0, %v4672
      %v4674 = vpop.f32.mrb[0].mxu0
      %4675 = vdwg.mxu0
      %v4677 = vsel %vm486, %v3796, 0
      %4679 = vmatprep.subr.mxu0 0.0
      %4680 = vmatpush1.msra.mxu0 %v2207
      %4681 = vmatprep.subr.mxu0 0.0
      %4682 = vmatpush1.msra.mxu0 %v2343
      %4683 = vmatprep.subr.mxu0 0.0
      %4684 = vmatpush1.msra.mxu0 0.0
      %4685 = vmatprep.subr.mxu0 0.0
      %4686 = vmatpush1.msra.mxu0 0.0
      %4687 = vmatprep.subr.mxu0 0.0
      %4688 = vmatpush1.msra.mxu0 0.0
      %4689 = vmatprep.subr.mxu0 0.0
      %4690 = vmatpush1.msra.mxu0 0.0
      %4691 = vmatprep.subr.mxu0 0.0
      %4692 = vmatpush1.msra.mxu0 0.0
      %4693 = vmatprep.subr.mxu0 0.0
      %4694 = vmatpush1.msra.mxu0 0.0
      %4695 = vmatprep.subr.mxu0 0.0
      %4696 = vmatpush1.msra.mxu0 0.0
      %4697 = vmatprep.subr.mxu0 0.0
      %4698 = vmatpush1.msra.mxu0 0.0
      %4699 = vmatprep.subr.mxu0 0.0
      %4700 = vmatpush1.msra.mxu0 0.0
      %4701 = vmatprep.subr.mxu0 0.0
      %4702 = vmatpush1.msra.mxu0 0.0
      %4703 = vmatprep.subr.mxu0 0.0
      %4704 = vmatpush1.msra.mxu0 0.0
      %4705 = vmatprep.subr.mxu0 0.0
      %4706 = vmatpush1.msra.mxu0 0.0
      %4707 = vmatprep.subr.mxu0 0.0
      %4708 = vmatpush1.msra.mxu0 0.0
      %4709 = vmatprep.subr.mxu0 0.0
      %4710 = vmatpush1.msra.mxu0 0.0
      %4711 = vmatprep.subr.mxu0 0.0
      %4712 = vmatpush1.msra.mxu0 0.0
      %4713 = vmatprep.subr.mxu0 0.0
      %4714 = vmatpush1.msra.mxu0 0.0
      %4715 = vmatprep.subr.mxu0 0.0
      %4716 = vmatpush1.msra.mxu0 0.0
      %4717 = vmatprep.subr.mxu0 0.0
      %4718 = vmatpush1.msra.mxu0 0.0
      %4719 = vmatprep.subr.mxu0 0.0
      %4720 = vmatpush1.msra.mxu0 0.0
      %4721 = vmatprep.subr.mxu0 0.0
      %4722 = vmatpush1.msra.mxu0 0.0
      %4723 = vmatprep.subr.mxu0 0.0
      %4724 = vmatpush1.msra.mxu0 0.0
      %4725 = vmatprep.subr.mxu0 0.0
      %4726 = vmatpush1.msra.mxu0 0.0
      %4727 = vmatprep.subr.mxu0 0.0
      %4728 = vmatpush1.msra.mxu0 0.0
      %4729 = vmatprep.subr.mxu0 0.0
      %4730 = vmatpush1.msra.mxu0 0.0
      %4731 = vmatprep.subr.mxu0 0.0
      %4732 = vmatpush1.msra.mxu0 0.0
      %4733 = vmatprep.subr.mxu0 0.0
      %4734 = vmatpush1.msra.mxu0 0.0
      %4735 = vmatprep.subr.mxu0 0.0
      %4736 = vmatpush1.msra.mxu0 0.0
      %4737 = vmatprep.subr.mxu0 0.0
      %4738 = vmatpush1.msra.mxu0 0.0
      %4739 = vmatprep.subr.mxu0 0.0
      %4740 = vmatpush1.msra.mxu0 0.0
      %4741 = vmatprep.subr.mxu0 0.0
      %4742 = vmatpush1.msra.mxu0 0.0
      %4743 = vmatprep.mubr.f32.mxu0 0.0
      %4744 = vmatmul.mubr.f32.gmra.mrb[0].mxu0 %v4677
      %v4745 = vpop.f32.mrb[0].mxu0
      %v4746 = vadd.f32 0.0, %v4745
      %v4747 = vpop.f32.mrb[0].mxu0
      %4748 = vdwg.mxu0
      %v4750 = vsel %vm486, %v3797, 0
      %4752 = vmatprep.subr.mxu0 0.0
      %4753 = vmatpush1.msra.mxu0 %v2208
      %4754 = vmatprep.subr.mxu0 0.0
      %4755 = vmatpush1.msra.mxu0 %v2344
      %4756 = vmatprep.subr.mxu0 0.0
      %4757 = vmatpush1.msra.mxu0 0.0
      %4758 = vmatprep.subr.mxu0 0.0
      %4759 = vmatpush1.msra.mxu0 0.0
      %4760 = vmatprep.subr.mxu0 0.0
      %4761 = vmatpush1.msra.mxu0 0.0
      %4762 = vmatprep.subr.mxu0 0.0
      %4763 = vmatpush1.msra.mxu0 0.0
      %4764 = vmatprep.subr.mxu0 0.0
      %4765 = vmatpush1.msra.mxu0 0.0
      %4766 = vmatprep.subr.mxu0 0.0
      %4767 = vmatpush1.msra.mxu0 0.0
      %4768 = vmatprep.subr.mxu0 0.0
      %4769 = vmatpush1.msra.mxu0 0.0
      %4770 = vmatprep.subr.mxu0 0.0
      %4771 = vmatpush1.msra.mxu0 0.0
      %4772 = vmatprep.subr.mxu0 0.0
      %4773 = vmatpush1.msra.mxu0 0.0
      %4774 = vmatprep.subr.mxu0 0.0
      %4775 = vmatpush1.msra.mxu0 0.0
      %4776 = vmatprep.subr.mxu0 0.0
      %4777 = vmatpush1.msra.mxu0 0.0
      %4778 = vmatprep.subr.mxu0 0.0
      %4779 = vmatpush1.msra.mxu0 0.0
      %4780 = vmatprep.subr.mxu0 0.0
      %4781 = vmatpush1.msra.mxu0 0.0
      %4782 = vmatprep.subr.mxu0 0.0
      %4783 = vmatpush1.msra.mxu0 0.0
      %4784 = vmatprep.subr.mxu0 0.0
      %4785 = vmatpush1.msra.mxu0 0.0
      %4786 = vmatprep.subr.mxu0 0.0
      %4787 = vmatpush1.msra.mxu0 0.0
      %4788 = vmatprep.subr.mxu0 0.0
      %4789 = vmatpush1.msra.mxu0 0.0
      %4790 = vmatprep.subr.mxu0 0.0
      %4791 = vmatpush1.msra.mxu0 0.0
      %4792 = vmatprep.subr.mxu0 0.0
      %4793 = vmatpush1.msra.mxu0 0.0
      %4794 = vmatprep.subr.mxu0 0.0
      %4795 = vmatpush1.msra.mxu0 0.0
      %4796 = vmatprep.subr.mxu0 0.0
      %4797 = vmatpush1.msra.mxu0 0.0
      %4798 = vmatprep.subr.mxu0 0.0
      %4799 = vmatpush1.msra.mxu0 0.0
      %4800 = vmatprep.subr.mxu0 0.0
      %4801 = vmatpush1.msra.mxu0 0.0
      %4802 = vmatprep.subr.mxu0 0.0
      %4803 = vmatpush1.msra.mxu0 0.0
      %4804 = vmatprep.subr.mxu0 0.0
      %4805 = vmatpush1.msra.mxu0 0.0
      %4806 = vmatprep.subr.mxu0 0.0
      %4807 = vmatpush1.msra.mxu0 0.0
      %4808 = vmatprep.subr.mxu0 0.0
      %4809 = vmatpush1.msra.mxu0 0.0
      %4810 = vmatprep.subr.mxu0 0.0
      %4811 = vmatpush1.msra.mxu0 0.0
      %4812 = vmatprep.subr.mxu0 0.0
      %4813 = vmatpush1.msra.mxu0 0.0
      %4814 = vmatprep.subr.mxu0 0.0
      %4815 = vmatpush1.msra.mxu0 0.0
      %4816 = vmatprep.mubr.f32.mxu0 0.0
      %4817 = vmatmul.mubr.f32.gmra.mrb[0].mxu0 %v4750
      %v4818 = vpop.f32.mrb[0].mxu0
      %v4819 = vadd.f32 0.0, %v4818
      %v4820 = vpop.f32.mrb[0].mxu0
      %4821 = vdwg.mxu0
      %v4823 = vsel %vm486, %v3798, 0
      %4825 = vmatprep.subr.mxu0 0.0
      %4826 = vmatpush1.msra.mxu0 %v2209
      %4827 = vmatprep.subr.mxu0 0.0
      %4828 = vmatpush1.msra.mxu0 %v2345
      %4829 = vmatprep.subr.mxu0 0.0
      %4830 = vmatpush1.msra.mxu0 0.0
      %4831 = vmatprep.subr.mxu0 0.0
      %4832 = vmatpush1.msra.mxu0 0.0
      %4833 = vmatprep.subr.mxu0 0.0
      %4834 = vmatpush1.msra.mxu0 0.0
      %4835 = vmatprep.subr.mxu0 0.0
      %4836 = vmatpush1.msra.mxu0 0.0
      %4837 = vmatprep.subr.mxu0 0.0
      %4838 = vmatpush1.msra.mxu0 0.0
      %4839 = vmatprep.subr.mxu0 0.0
      %4840 = vmatpush1.msra.mxu0 0.0
      %4841 = vmatprep.subr.mxu0 0.0
      %4842 = vmatpush1.msra.mxu0 0.0
      %4843 = vmatprep.subr.mxu0 0.0
      %4844 = vmatpush1.msra.mxu0 0.0
      %4845 = vmatprep.subr.mxu0 0.0
      %4846 = vmatpush1.msra.mxu0 0.0
      %4847 = vmatprep.subr.mxu0 0.0
      %4848 = vmatpush1.msra.mxu0 0.0
      %4849 = vmatprep.subr.mxu0 0.0
      %4850 = vmatpush1.msra.mxu0 0.0
      %4851 = vmatprep.subr.mxu0 0.0
      %4852 = vmatpush1.msra.mxu0 0.0
      %4853 = vmatprep.subr.mxu0 0.0
      %4854 = vmatpush1.msra.mxu0 0.0
      %4855 = vmatprep.subr.mxu0 0.0
      %4856 = vmatpush1.msra.mxu0 0.0
      %4857 = vmatprep.subr.mxu0 0.0
      %4858 = vmatpush1.msra.mxu0 0.0
      %4859 = vmatprep.subr.mxu0 0.0
      %4860 = vmatpush1.msra.mxu0 0.0
      %4861 = vmatprep.subr.mxu0 0.0
      %4862 = vmatpush1.msra.mxu0 0.0
      %4863 = vmatprep.subr.mxu0 0.0
      %4864 = vmatpush1.msra.mxu0 0.0
      %4865 = vmatprep.subr.mxu0 0.0
      %4866 = vmatpush1.msra.mxu0 0.0
      %4867 = vmatprep.subr.mxu0 0.0
      %4868 = vmatpush1.msra.mxu0 0.0
      %4869 = vmatprep.subr.mxu0 0.0
      %4870 = vmatpush1.msra.mxu0 0.0
      %4871 = vmatprep.subr.mxu0 0.0
      %4872 = vmatpush1.msra.mxu0 0.0
      %4873 = vmatprep.subr.mxu0 0.0
      %4874 = vmatpush1.msra.mxu0 0.0
      %4875 = vmatprep.subr.mxu0 0.0
      %4876 = vmatpush1.msra.mxu0 0.0
      %4877 = vmatprep.subr.mxu0 0.0
      %4878 = vmatpush1.msra.mxu0 0.0
      %4879 = vmatprep.subr.mxu0 0.0
      %4880 = vmatpush1.msra.mxu0 0.0
      %4881 = vmatprep.subr.mxu0 0.0
      %4882 = vmatpush1.msra.mxu0 0.0
      %4883 = vmatprep.subr.mxu0 0.0
      %4884 = vmatpush1.msra.mxu0 0.0
      %4885 = vmatprep.subr.mxu0 0.0
      %4886 = vmatpush1.msra.mxu0 0.0
      %4887 = vmatprep.subr.mxu0 0.0
      %4888 = vmatpush1.msra.mxu0 0.0
      %4889 = vmatprep.mubr.f32.mxu0 0.0
      %4890 = vmatmul.mubr.f32.gmra.mrb[0].mxu0 %v4823
      %v4891 = vpop.f32.mrb[0].mxu0
      %v4892 = vadd.f32 0.0, %v4891
      %v4893 = vpop.f32.mrb[0].mxu0
      %4894 = vdwg.mxu0
      %v4896 = vsel %vm486, %v3799, 0
      %4898 = vmatprep.subr.mxu0 0.0
      %4899 = vmatpush1.msra.mxu0 %v2210
      %4900 = vmatprep.subr.mxu0 0.0
      %4901 = vmatpush1.msra.mxu0 %v2346
      %4902 = vmatprep.subr.mxu0 0.0
      %4903 = vmatpush1.msra.mxu0 0.0
      %4904 = vmatprep.subr.mxu0 0.0
      %4905 = vmatpush1.msra.mxu0 0.0
      %4906 = vmatprep.subr.mxu0 0.0
      %4907 = vmatpush1.msra.mxu0 0.0
      %4908 = vmatprep.subr.mxu0 0.0
      %4909 = vmatpush1.msra.mxu0 0.0
      %4910 = vmatprep.subr.mxu0 0.0
      %4911 = vmatpush1.msra.mxu0 0.0
      %4912 = vmatprep.subr.mxu0 0.0
      %4913 = vmatpush1.msra.mxu0 0.0
      %4914 = vmatprep.subr.mxu0 0.0
      %4915 = vmatpush1.msra.mxu0 0.0
      %4916 = vmatprep.subr.mxu0 0.0
      %4917 = vmatpush1.msra.mxu0 0.0
      %4918 = vmatprep.subr.mxu0 0.0
      %4919 = vmatpush1.msra.mxu0 0.0
      %4920 = vmatprep.subr.mxu0 0.0
      %4921 = vmatpush1.msra.mxu0 0.0
      %4922 = vmatprep.subr.mxu0 0.0
      %4923 = vmatpush1.msra.mxu0 0.0
      %4924 = vmatprep.subr.mxu0 0.0
      %4925 = vmatpush1.msra.mxu0 0.0
      %4926 = vmatprep.subr.mxu0 0.0
      %4927 = vmatpush1.msra.mxu0 0.0
      %4928 = vmatprep.subr.mxu0 0.0
      %4929 = vmatpush1.msra.mxu0 0.0
      %4930 = vmatprep.subr.mxu0 0.0
      %4931 = vmatpush1.msra.mxu0 0.0
      %4932 = vmatprep.subr.mxu0 0.0
      %4933 = vmatpush1.msra.mxu0 0.0
      %4934 = vmatprep.subr.mxu0 0.0
      %4935 = vmatpush1.msra.mxu0 0.0
      %4936 = vmatprep.subr.mxu0 0.0
      %4937 = vmatpush1.msra.mxu0 0.0
      %4938 = vmatprep.subr.mxu0 0.0
      %4939 = vmatpush1.msra.mxu0 0.0
      %4940 = vmatprep.subr.mxu0 0.0
      %4941 = vmatpush1.msra.mxu0 0.0
      %4942 = vmatprep.subr.mxu0 0.0
      %4943 = vmatpush1.msra.mxu0 0.0
      %4944 = vmatprep.subr.mxu0 0.0
      %4945 = vmatpush1.msra.mxu0 0.0
      %4946 = vmatprep.subr.mxu0 0.0
      %4947 = vmatpush1.msra.mxu0 0.0
      %4948 = vmatprep.subr.mxu0 0.0
      %4949 = vmatpush1.msra.mxu0 0.0
      %4950 = vmatprep.subr.mxu0 0.0
      %4951 = vmatpush1.msra.mxu0 0.0
      %4952 = vmatprep.subr.mxu0 0.0
      %4953 = vmatpush1.msra.mxu0 0.0
      %4954 = vmatprep.subr.mxu0 0.0
      %4955 = vmatpush1.msra.mxu0 0.0
      %4956 = vmatprep.subr.mxu0 0.0
      %4957 = vmatpush1.msra.mxu0 0.0
      %4958 = vmatprep.subr.mxu0 0.0
      %4959 = vmatpush1.msra.mxu0 0.0
      %4960 = vmatprep.subr.mxu0 0.0
      %4961 = vmatpush1.msra.mxu0 0.0
      %4962 = vmatprep.mubr.f32.mxu0 0.0
      %4963 = vmatmul.mubr.f32.gmra.mrb[0].mxu0 %v4896
      %v4964 = vpop.f32.mrb[0].mxu0
      %v4965 = vadd.f32 0.0, %v4964
      %v4966 = vpop.f32.mrb[0].mxu0
      %4967 = vdwg.mxu0
      %v4968 = vmul.f32 %v3870, 2.0
      %v4969 = vmul.f32 %v3943, 2.0
      %v4970 = vmul.f32 %v4016, 2.0
      %v4971 = vmul.f32 %v4089, 2.0
      %v4972 = vmul.f32 %v4162, 2.0
      %v4973 = vmul.f32 %v4235, 2.0
      %v4974 = vmul.f32 %v4308, 2.0
      %v4975 = vmul.f32 %v4381, 2.0
      %v4976 = vmul.f32 %v4454, 2.0
      %v4977 = vmul.f32 %v4527, 2.0
      %v4978 = vmul.f32 %v4600, 2.0
      %v4979 = vmul.f32 %v4673, 2.0
      %v4980 = vmul.f32 %v4746, 2.0
      %v4981 = vmul.f32 %v4819, 2.0
      %v4982 = vmul.f32 %v4892, 2.0
      %v4983 = vmul.f32 %v4965, 2.0
      %vm4984 = vcmask 27648
      %v4985 = vsel %vm4984, %v4968, -inf
      %4986 = vmax.xlane.f32.xlu0 %v4985
      %v4987 = vpop.xlane.xlu0 %4986
      %v4988 = vsel %vm4984, %v4969, -inf
      %4989 = vmax.xlane.f32.xlu0 %v4988
      %v4990 = vpop.xlane.xlu0 %4989
      %v4991 = vsel %vm4984, %v4970, -inf
      %4992 = vmax.xlane.f32.xlu0 %v4991
      %v4993 = vpop.xlane.xlu0 %4992
      %v4994 = vsel %vm4984, %v4971, -inf
      %4995 = vmax.xlane.f32.xlu0 %v4994
      %v4996 = vpop.xlane.xlu0 %4995
      %v4997 = vsel %vm4984, %v4972, -inf
      %4998 = vmax.xlane.f32.xlu0 %v4997
      %v4999 = vpop.xlane.xlu0 %4998
      %v5000 = vsel %vm4984, %v4973, -inf
      %5001 = vmax.xlane.f32.xlu0 %v5000
      %v5002 = vpop.xlane.xlu0 %5001
      %v5003 = vsel %vm4984, %v4974, -inf
      %5004 = vmax.xlane.f32.xlu0 %v5003
      %v5005 = vpop.xlane.xlu0 %5004
      %v5006 = vsel %vm4984, %v4975, -inf
      %5007 = vmax.xlane.f32.xlu0 %v5006
      %v5008 = vpop.xlane.xlu0 %5007
      %v5009 = vsel %vm4984, %v4976, -inf
      %5010 = vmax.xlane.f32.xlu0 %v5009
      %v5011 = vpop.xlane.xlu0 %5010
      %v5012 = vsel %vm4984, %v4977, -inf
      %5013 = vmax.xlane.f32.xlu0 %v5012
      %v5014 = vpop.xlane.xlu0 %5013
      %v5015 = vsel %vm4984, %v4978, -inf
      %5016 = vmax.xlane.f32.xlu0 %v5015
      %v5017 = vpop.xlane.xlu0 %5016
      %v5018 = vsel %vm4984, %v4979, -inf
      %5019 = vmax.xlane.f32.xlu0 %v5018
      %v5020 = vpop.xlane.xlu0 %5019
      %v5021 = vsel %vm4984, %v4980, -inf
      %5022 = vmax.xlane.f32.xlu0 %v5021
      %v5023 = vpop.xlane.xlu0 %5022
      %v5024 = vsel %vm4984, %v4981, -inf
      %5025 = vmax.xlane.f32.xlu0 %v5024
      %v5026 = vpop.xlane.xlu0 %5025
      %v5027 = vsel %vm4984, %v4982, -inf
      %5028 = vmax.xlane.f32.xlu0 %v5027
      %v5029 = vpop.xlane.xlu0 %5028
      %v5030 = vsel %vm4984, %v4983, -inf
      %5031 = vmax.xlane.f32.xlu0 %v5030
      %v5032 = vpop.xlane.xlu0 %5031
      %v5033 = vsub.f32 %v4968, %v4987
      %v5034 = vsub.f32 %v4969, %v4990
      %v5035 = vsub.f32 %v4970, %v4993
      %v5036 = vsub.f32 %v4971, %v4996
      %v5037 = vsub.f32 %v4972, %v4999
      %v5038 = vsub.f32 %v4973, %v5002
      %v5039 = vsub.f32 %v4974, %v5005
      %v5040 = vsub.f32 %v4975, %v5008
      %v5041 = vsub.f32 %v4976, %v5011
      %v5042 = vsub.f32 %v4977, %v5014
      %v5043 = vsub.f32 %v4978, %v5017
      %v5044 = vsub.f32 %v4979, %v5020
      %v5045 = vsub.f32 %v4980, %v5023
      %v5046 = vsub.f32 %v4981, %v5026
      %v5047 = vsub.f32 %v4982, %v5029
      %v5048 = vsub.f32 %v4983, %v5032
      %v5049 = vmul.f32 %v5033, 1.442695
      %v5050 = vpow.pop %v5049
      %v5051 = vmul.f32 %v5034, 1.442695
      %v5052 = vpow.pop %v5051
      %v5053 = vmul.f32 %v5035, 1.442695
      %v5054 = vpow.pop %v5053
      %v5055 = vmul.f32 %v5036, 1.442695
      %v5056 = vpow.pop %v5055
      %v5057 = vmul.f32 %v5037, 1.442695
      %v5058 = vpow.pop %v5057
      %v5059 = vmul.f32 %v5038, 1.442695
      %v5060 = vpow.pop %v5059
      %v5061 = vmul.f32 %v5039, 1.442695
      %v5062 = vpow.pop %v5061
      %v5063 = vmul.f32 %v5040, 1.442695
      %v5064 = vpow.pop %v5063
      %v5065 = vmul.f32 %v5041, 1.442695
      %v5066 = vpow.pop %v5065
      %v5067 = vmul.f32 %v5042, 1.442695
      %v5068 = vpow.pop %v5067
      %v5069 = vmul.f32 %v5043, 1.442695
      %v5070 = vpow.pop %v5069
      %v5071 = vmul.f32 %v5044, 1.442695
      %v5072 = vpow.pop %v5071
      %v5073 = vmul.f32 %v5045, 1.442695
      %v5074 = vpow.pop %v5073
      %v5075 = vmul.f32 %v5046, 1.442695
      %v5076 = vpow.pop %v5075
      %v5077 = vmul.f32 %v5047, 1.442695
      %v5078 = vpow.pop %v5077
      %v5079 = vmul.f32 %v5048, 1.442695
      %v5080 = vpow.pop %v5079
      %v5081 = vsel %vm4984, %v5050, 0.0
      %5082 = vadd.xlane.f32.xlu0 %v5081
      %v5083 = vpop.xlane.xlu0 %5082
      %v5084 = vsel %vm4984, %v5052, 0.0
      %5085 = vadd.xlane.f32.xlu0 %v5084
      %v5086 = vpop.xlane.xlu0 %5085
      %v5087 = vsel %vm4984, %v5054, 0.0
      %5088 = vadd.xlane.f32.xlu0 %v5087
      %v5089 = vpop.xlane.xlu0 %5088
      %v5090 = vsel %vm4984, %v5056, 0.0
      %5091 = vadd.xlane.f32.xlu0 %v5090
      %v5092 = vpop.xlane.xlu0 %5091
      %v5093 = vsel %vm4984, %v5058, 0.0
      %5094 = vadd.xlane.f32.xlu0 %v5093
      %v5095 = vpop.xlane.xlu0 %5094
      %v5096 = vsel %vm4984, %v5060, 0.0
      %5097 = vadd.xlane.f32.xlu0 %v5096
      %v5098 = vpop.xlane.xlu0 %5097
      %v5099 = vsel %vm4984, %v5062, 0.0
      %5100 = vadd.xlane.f32.xlu0 %v5099
      %v5101 = vpop.xlane.xlu0 %5100
      %v5102 = vsel %vm4984, %v5064, 0.0
      %5103 = vadd.xlane.f32.xlu0 %v5102
      %v5104 = vpop.xlane.xlu0 %5103
      %v5105 = vsel %vm4984, %v5066, 0.0
      %5106 = vadd.xlane.f32.xlu0 %v5105
      %v5107 = vpop.xlane.xlu0 %5106
      %v5108 = vsel %vm4984, %v5068, 0.0
      %5109 = vadd.xlane.f32.xlu0 %v5108
      %v5110 = vpop.xlane.xlu0 %5109
      %v5111 = vsel %vm4984, %v5070, 0.0
      %5112 = vadd.xlane.f32.xlu0 %v5111
      %v5113 = vpop.xlane.xlu0 %5112
      %v5114 = vsel %vm4984, %v5072, 0.0
      %5115 = vadd.xlane.f32.xlu0 %v5114
      %v5116 = vpop.xlane.xlu0 %5115
      %v5117 = vsel %vm4984, %v5074, 0.0
      %5118 = vadd.xlane.f32.xlu0 %v5117
      %v5119 = vpop.xlane.xlu0 %5118
      %v5120 = vsel %vm4984, %v5076, 0.0
      %5121 = vadd.xlane.f32.xlu0 %v5120
      %v5122 = vpop.xlane.xlu0 %5121
      %v5123 = vsel %vm4984, %v5078, 0.0
      %5124 = vadd.xlane.f32.xlu0 %v5123
      %v5125 = vpop.xlane.xlu0 %5124
      %v5126 = vsel %vm4984, %v5080, 0.0
      %5127 = vadd.xlane.f32.xlu0 %v5126
      %v5128 = vpop.xlane.xlu0 %5127
      %v5129 = vrcp.pop %v5083
      %v5130 = vmul.f32 %v5050, %v5129
      %v5131 = vrcp.pop %v5086
      %v5132 = vmul.f32 %v5052, %v5131
      %v5133 = vrcp.pop %v5089
      %v5134 = vmul.f32 %v5054, %v5133
      %v5135 = vrcp.pop %v5092
      %v5136 = vmul.f32 %v5056, %v5135
      %v5137 = vrcp.pop %v5095
      %v5138 = vmul.f32 %v5058, %v5137
      %v5139 = vrcp.pop %v5098
      %v5140 = vmul.f32 %v5060, %v5139
      %v5141 = vrcp.pop %v5101
      %v5142 = vmul.f32 %v5062, %v5141
      %v5143 = vrcp.pop %v5104
      %v5144 = vmul.f32 %v5064, %v5143
      %v5145 = vrcp.pop %v5107
      %v5146 = vmul.f32 %v5066, %v5145
      %v5147 = vrcp.pop %v5110
      %v5148 = vmul.f32 %v5068, %v5147
      %v5149 = vrcp.pop %v5113
      %v5150 = vmul.f32 %v5070, %v5149
      %v5151 = vrcp.pop %v5116
      %v5152 = vmul.f32 %v5072, %v5151
      %v5153 = vrcp.pop %v5119
      %v5154 = vmul.f32 %v5074, %v5153
      %v5155 = vrcp.pop %v5122
      %v5156 = vmul.f32 %v5076, %v5155
      %v5157 = vrcp.pop %v5125
      %v5158 = vmul.f32 %v5078, %v5157
      %v5159 = vrcp.pop %v5128
      %v5160 = vmul.f32 %v5080, %v5159
      %v5162 = vsel %vm384, %v5130, 0
      %v5165 = vsel %vm384, %v3368, 0
      %v5168 = vsel %vm384, %v3504, 0
      %5170 = vmatprep.subr.mxu0 0.0
      %5171 = vmatpush1.xpose.msra.mxu0 %v5165
      %5172 = vmatprep.subr.mxu0 0.0
      %5173 = vmatpush1.xpose.msra.mxu0 %v5168
      %5174 = vmatprep.subr.mxu0 0.0
      %5175 = vmatpush1.xpose.msra.mxu0 0.0
      %5176 = vmatprep.subr.mxu0 0.0
      %5177 = vmatpush1.xpose.msra.mxu0 0.0
      %5178 = vmatprep.subr.mxu0 0.0
      %5179 = vmatpush1.xpose.msra.mxu0 0.0
      %5180 = vmatprep.subr.mxu0 0.0
      %5181 = vmatpush1.xpose.msra.mxu0 0.0
      %5182 = vmatprep.subr.mxu0 0.0
      %5183 = vmatpush1.xpose.msra.mxu0 0.0
      %5184 = vmatprep.subr.mxu0 0.0
      %5185 = vmatpush1.xpose.msra.mxu0 0.0
      %5186 = vmatprep.subr.mxu0 0.0
      %5187 = vmatpush1.xpose.msra.mxu0 0.0
      %5188 = vmatprep.subr.mxu0 0.0
      %5189 = vmatpush1.xpose.msra.mxu0 0.0
      %5190 = vmatprep.subr.mxu0 0.0
      %5191 = vmatpush1.xpose.msra.mxu0 0.0
      %5192 = vmatprep.subr.mxu0 0.0
      %5193 = vmatpush1.xpose.msra.mxu0 0.0
      %5194 = vmatprep.subr.mxu0 0.0
      %5195 = vmatpush1.xpose.msra.mxu0 0.0
      %5196 = vmatprep.subr.mxu0 0.0
      %5197 = vmatpush1.xpose.msra.mxu0 0.0
      %5198 = vmatprep.subr.mxu0 0.0
      %5199 = vmatpush1.xpose.msra.mxu0 0.0
      %5200 = vmatprep.subr.mxu0 0.0
      %5201 = vmatpush1.xpose.msra.mxu0 0.0
      %5202 = vmatprep.subr.mxu0 0.0
      %5203 = vmatpush1.xpose.msra.mxu0 0.0
      %5204 = vmatprep.subr.mxu0 0.0
      %5205 = vmatpush1.xpose.msra.mxu0 0.0
      %5206 = vmatprep.subr.mxu0 0.0
      %5207 = vmatpush1.xpose.msra.mxu0 0.0
      %5208 = vmatprep.subr.mxu0 0.0
      %5209 = vmatpush1.xpose.msra.mxu0 0.0
      %5210 = vmatprep.subr.mxu0 0.0
      %5211 = vmatpush1.xpose.msra.mxu0 0.0
      %5212 = vmatprep.subr.mxu0 0.0
      %5213 = vmatpush1.xpose.msra.mxu0 0.0
      %5214 = vmatprep.subr.mxu0 0.0
      %5215 = vmatpush1.xpose.msra.mxu0 0.0
      %5216 = vmatprep.subr.mxu0 0.0
      %5217 = vmatpush1.xpose.msra.mxu0 0.0
      %5218 = vmatprep.subr.mxu0 0.0
      %5219 = vmatpush1.xpose.msra.mxu0 0.0
      %5220 = vmatprep.subr.mxu0 0.0
      %5221 = vmatpush1.xpose.msra.mxu0 0.0
      %5222 = vmatprep.subr.mxu0 0.0
      %5223 = vmatpush1.xpose.msra.mxu0 0.0
      %5224 = vmatprep.subr.mxu0 0.0
      %5225 = vmatpush1.xpose.msra.mxu0 0.0
      %5226 = vmatprep.subr.mxu0 0.0
      %5227 = vmatpush1.xpose.msra.mxu0 0.0
      %5228 = vmatprep.subr.mxu0 0.0
      %5229 = vmatpush1.xpose.msra.mxu0 0.0
      %5230 = vmatprep.subr.mxu0 0.0
      %5231 = vmatpush1.xpose.msra.mxu0 0.0
      %5232 = vmatprep.subr.mxu0 0.0
      %5233 = vmatpush1.xpose.msra.mxu0 0.0
      %5234 = vmatprep.mubr.f32.mxu0 0.0
      %5235 = vmatmul.mubr.f32.gmra.mrb[0].mxu0 %v5162
      %v5236 = vpop.f32.mrb[0].mxu0
      %v5237 = vadd.f32 0.0, %v5236
      %v5238 = vpop.f32.mrb[0].mxu0
      %5239 = vdwg.mxu0
      %v5241 = vsel %vm384, %v5132, 0
      %v5244 = vsel %vm384, %v3369, 0
      %v5247 = vsel %vm384, %v3505, 0
      %5249 = vmatprep.subr.mxu0 0.0
      %5250 = vmatpush1.xpose.msra.mxu0 %v5244
      %5251 = vmatprep.subr.mxu0 0.0
      %5252 = vmatpush1.xpose.msra.mxu0 %v5247
      %5253 = vmatprep.subr.mxu0 0.0
      %5254 = vmatpush1.xpose.msra.mxu0 0.0
      %5255 = vmatprep.subr.mxu0 0.0
      %5256 = vmatpush1.xpose.msra.mxu0 0.0
      %5257 = vmatprep.subr.mxu0 0.0
      %5258 = vmatpush1.xpose.msra.mxu0 0.0
      %5259 = vmatprep.subr.mxu0 0.0
      %5260 = vmatpush1.xpose.msra.mxu0 0.0
      %5261 = vmatprep.subr.mxu0 0.0
      %5262 = vmatpush1.xpose.msra.mxu0 0.0
      %5263 = vmatprep.subr.mxu0 0.0
      %5264 = vmatpush1.xpose.msra.mxu0 0.0
      %5265 = vmatprep.subr.mxu0 0.0
      %5266 = vmatpush1.xpose.msra.mxu0 0.0
      %5267 = vmatprep.subr.mxu0 0.0
      %5268 = vmatpush1.xpose.msra.mxu0 0.0
      %5269 = vmatprep.subr.mxu0 0.0
      %5270 = vmatpush1.xpose.msra.mxu0 0.0
      %5271 = vmatprep.subr.mxu0 0.0
      %5272 = vmatpush1.xpose.msra.mxu0 0.0
      %5273 = vmatprep.subr.mxu0 0.0
      %5274 = vmatpush1.xpose.msra.mxu0 0.0
      %5275 = vmatprep.subr.mxu0 0.0
      %5276 = vmatpush1.xpose.msra.mxu0 0.0
      %5277 = vmatprep.subr.mxu0 0.0
      %5278 = vmatpush1.xpose.msra.mxu0 0.0
      %5279 = vmatprep.subr.mxu0 0.0
      %5280 = vmatpush1.xpose.msra.mxu0 0.0
      %5281 = vmatprep.subr.mxu0 0.0
      %5282 = vmatpush1.xpose.msra.mxu0 0.0
      %5283 = vmatprep.subr.mxu0 0.0
      %5284 = vmatpush1.xpose.msra.mxu0 0.0
      %5285 = vmatprep.subr.mxu0 0.0
      %5286 = vmatpush1.xpose.msra.mxu0 0.0
      %5287 = vmatprep.subr.mxu0 0.0
      %5288 = vmatpush1.xpose.msra.mxu0 0.0
      %5289 = vmatprep.subr.mxu0 0.0
      %5290 = vmatpush1.xpose.msra.mxu0 0.0
      %5291 = vmatprep.subr.mxu0 0.0
      %5292 = vmatpush1.xpose.msra.mxu0 0.0
      %5293 = vmatprep.subr.mxu0 0.0
      %5294 = vmatpush1.xpose.msra.mxu0 0.0
      %5295 = vmatprep.subr.mxu0 0.0
      %5296 = vmatpush1.xpose.msra.mxu0 0.0
      %5297 = vmatprep.subr.mxu0 0.0
      %5298 = vmatpush1.xpose.msra.mxu0 0.0
      %5299 = vmatprep.subr.mxu0 0.0
      %5300 = vmatpush1.xpose.msra.mxu0 0.0
      %5301 = vmatprep.subr.mxu0 0.0
      %5302 = vmatpush1.xpose.msra.mxu0 0.0
      %5303 = vmatprep.subr.mxu0 0.0
      %5304 = vmatpush1.xpose.msra.mxu0 0.0
      %5305 = vmatprep.subr.mxu0 0.0
      %5306 = vmatpush1.xpose.msra.mxu0 0.0
      %5307 = vmatprep.subr.mxu0 0.0
      %5308 = vmatpush1.xpose.msra.mxu0 0.0
      %5309 = vmatprep.subr.mxu0 0.0
      %5310 = vmatpush1.xpose.msra.mxu0 0.0
      %5311 = vmatprep.subr.mxu0 0.0
      %5312 = vmatpush1.xpose.msra.mxu0 0.0
      %5313 = vmatprep.mubr.f32.mxu0 0.0
      %5314 = vmatmul.mubr.f32.gmra.mrb[0].mxu0 %v5241
      %v5315 = vpop.f32.mrb[0].mxu0
      %v5316 = vadd.f32 0.0, %v5315
      %v5317 = vpop.f32.mrb[0].mxu0
      %5318 = vdwg.mxu0
      %v5320 = vsel %vm384, %v5134, 0
      %v5323 = vsel %vm384, %v3370, 0
      %v5326 = vsel %vm384, %v3506, 0
      %5328 = vmatprep.subr.mxu0 0.0
      %5329 = vmatpush1.xpose.msra.mxu0 %v5323
      %5330 = vmatprep.subr.mxu0 0.0
      %5331 = vmatpush1.xpose.msra.mxu0 %v5326
      %5332 = vmatprep.subr.mxu0 0.0
      %5333 = vmatpush1.xpose.msra.mxu0 0.0
      %5334 = vmatprep.subr.mxu0 0.0
      %5335 = vmatpush1.xpose.msra.mxu0 0.0
      %5336 = vmatprep.subr.mxu0 0.0
      %5337 = vmatpush1.xpose.msra.mxu0 0.0
      %5338 = vmatprep.subr.mxu0 0.0
      %5339 = vmatpush1.xpose.msra.mxu0 0.0
      %5340 = vmatprep.subr.mxu0 0.0
      %5341 = vmatpush1.xpose.msra.mxu0 0.0
      %5342 = vmatprep.subr.mxu0 0.0
      %5343 = vmatpush1.xpose.msra.mxu0 0.0
      %5344 = vmatprep.subr.mxu0 0.0
      %5345 = vmatpush1.xpose.msra.mxu0 0.0
      %5346 = vmatprep.subr.mxu0 0.0
      %5347 = vmatpush1.xpose.msra.mxu0 0.0
      %5348 = vmatprep.subr.mxu0 0.0
      %5349 = vmatpush1.xpose.msra.mxu0 0.0
      %5350 = vmatprep.subr.mxu0 0.0
      %5351 = vmatpush1.xpose.msra.mxu0 0.0
      %5352 = vmatprep.subr.mxu0 0.0
      %5353 = vmatpush1.xpose.msra.mxu0 0.0
      %5354 = vmatprep.subr.mxu0 0.0
      %5355 = vmatpush1.xpose.msra.mxu0 0.0
      %5356 = vmatprep.subr.mxu0 0.0
      %5357 = vmatpush1.xpose.msra.mxu0 0.0
      %5358 = vmatprep.subr.mxu0 0.0
      %5359 = vmatpush1.xpose.msra.mxu0 0.0
      %5360 = vmatprep.subr.mxu0 0.0
      %5361 = vmatpush1.xpose.msra.mxu0 0.0
      %5362 = vmatprep.subr.mxu0 0.0
      %5363 = vmatpush1.xpose.msra.mxu0 0.0
      %5364 = vmatprep.subr.mxu0 0.0
      %5365 = vmatpush1.xpose.msra.mxu0 0.0
      %5366 = vmatprep.subr.mxu0 0.0
      %5367 = vmatpush1.xpose.msra.mxu0 0.0
      %5368 = vmatprep.subr.mxu0 0.0
      %5369 = vmatpush1.xpose.msra.mxu0 0.0
      %5370 = vmatprep.subr.mxu0 0.0
      %5371 = vmatpush1.xpose.msra.mxu0 0.0
      %5372 = vmatprep.subr.mxu0 0.0
      %5373 = vmatpush1.xpose.msra.mxu0 0.0
      %5374 = vmatprep.subr.mxu0 0.0
      %5375 = vmatpush1.xpose.msra.mxu0 0.0
      %5376 = vmatprep.subr.mxu0 0.0
      %5377 = vmatpush1.xpose.msra.mxu0 0.0
      %5378 = vmatprep.subr.mxu0 0.0
      %5379 = vmatpush1.xpose.msra.mxu0 0.0
      %5380 = vmatprep.subr.mxu0 0.0
      %5381 = vmatpush1.xpose.msra.mxu0 0.0
      %5382 = vmatprep.subr.mxu0 0.0
      %5383 = vmatpush1.xpose.msra.mxu0 0.0
      %5384 = vmatprep.subr.mxu0 0.0
      %5385 = vmatpush1.xpose.msra.mxu0 0.0
      %5386 = vmatprep.subr.mxu0 0.0
      %5387 = vmatpush1.xpose.msra.mxu0 0.0
      %5388 = vmatprep.subr.mxu0 0.0
      %5389 = vmatpush1.xpose.msra.mxu0 0.0
      %5390 = vmatprep.subr.mxu0 0.0
      %5391 = vmatpush1.xpose.msra.mxu0 0.0
      %5392 = vmatprep.mubr.f32.mxu0 0.0
      %5393 = vmatmul.mubr.f32.gmra.mrb[0].mxu0 %v5320
      %v5394 = vpop.f32.mrb[0].mxu0
      %v5395 = vadd.f32 0.0, %v5394
      %v5396 = vpop.f32.mrb[0].mxu0
      %5397 = vdwg.mxu0
      %v5399 = vsel %vm384, %v5136, 0
      %v5402 = vsel %vm384, %v3371, 0
      %v5405 = vsel %vm384, %v3507, 0
      %5407 = vmatprep.subr.mxu0 0.0
      %5408 = vmatpush1.xpose.msra.mxu0 %v5402
      %5409 = vmatprep.subr.mxu0 0.0
      %5410 = vmatpush1.xpose.msra.mxu0 %v5405
      %5411 = vmatprep.subr.mxu0 0.0
      %5412 = vmatpush1.xpose.msra.mxu0 0.0
      %5413 = vmatprep.subr.mxu0 0.0
      %5414 = vmatpush1.xpose.msra.mxu0 0.0
      %5415 = vmatprep.subr.mxu0 0.0
      %5416 = vmatpush1.xpose.msra.mxu0 0.0
      %5417 = vmatprep.subr.mxu0 0.0
      %5418 = vmatpush1.xpose.msra.mxu0 0.0
      %5419 = vmatprep.subr.mxu0 0.0
      %5420 = vmatpush1.xpose.msra.mxu0 0.0
      %5421 = vmatprep.subr.mxu0 0.0
      %5422 = vmatpush1.xpose.msra.mxu0 0.0
      %5423 = vmatprep.subr.mxu0 0.0
      %5424 = vmatpush1.xpose.msra.mxu0 0.0
      %5425 = vmatprep.subr.mxu0 0.0
      %5426 = vmatpush1.xpose.msra.mxu0 0.0
      %5427 = vmatprep.subr.mxu0 0.0
      %5428 = vmatpush1.xpose.msra.mxu0 0.0
      %5429 = vmatprep.subr.mxu0 0.0
      %5430 = vmatpush1.xpose.msra.mxu0 0.0
      %5431 = vmatprep.subr.mxu0 0.0
      %5432 = vmatpush1.xpose.msra.mxu0 0.0
      %5433 = vmatprep.subr.mxu0 0.0
      %5434 = vmatpush1.xpose.msra.mxu0 0.0
      %5435 = vmatprep.subr.mxu0 0.0
      %5436 = vmatpush1.xpose.msra.mxu0 0.0
      %5437 = vmatprep.subr.mxu0 0.0
      %5438 = vmatpush1.xpose.msra.mxu0 0.0
      %5439 = vmatprep.subr.mxu0 0.0
      %5440 = vmatpush1.xpose.msra.mxu0 0.0
      %5441 = vmatprep.subr.mxu0 0.0
      %5442 = vmatpush1.xpose.msra.mxu0 0.0
      %5443 = vmatprep.subr.mxu0 0.0
      %5444 = vmatpush1.xpose.msra.mxu0 0.0
      %5445 = vmatprep.subr.mxu0 0.0
      %5446 = vmatpush1.xpose.msra.mxu0 0.0
      %5447 = vmatprep.subr.mxu0 0.0
      %5448 = vmatpush1.xpose.msra.mxu0 0.0
      %5449 = vmatprep.subr.mxu0 0.0
      %5450 = vmatpush1.xpose.msra.mxu0 0.0
      %5451 = vmatprep.subr.mxu0 0.0
      %5452 = vmatpush1.xpose.msra.mxu0 0.0
      %5453 = vmatprep.subr.mxu0 0.0
      %5454 = vmatpush1.xpose.msra.mxu0 0.0
      %5455 = vmatprep.subr.mxu0 0.0
      %5456 = vmatpush1.xpose.msra.mxu0 0.0
      %5457 = vmatprep.subr.mxu0 0.0
      %5458 = vmatpush1.xpose.msra.mxu0 0.0
      %5459 = vmatprep.subr.mxu0 0.0
      %5460 = vmatpush1.xpose.msra.mxu0 0.0
      %5461 = vmatprep.subr.mxu0 0.0
      %5462 = vmatpush1.xpose.msra.mxu0 0.0
      %5463 = vmatprep.subr.mxu0 0.0
      %5464 = vmatpush1.xpose.msra.mxu0 0.0
      %5465 = vmatprep.subr.mxu0 0.0
      %5466 = vmatpush1.xpose.msra.mxu0 0.0
      %5467 = vmatprep.subr.mxu0 0.0
      %5468 = vmatpush1.xpose.msra.mxu0 0.0
      %5469 = vmatprep.subr.mxu0 0.0
      %5470 = vmatpush1.xpose.msra.mxu0 0.0
      %5471 = vmatprep.mubr.f32.mxu0 0.0
      %5472 = vmatmul.mubr.f32.gmra.mrb[0].mxu0 %v5399
      %v5473 = vpop.f32.mrb[0].mxu0
      %v5474 = vadd.f32 0.0, %v5473
      %v5475 = vpop.f32.mrb[0].mxu0
      %5476 = vdwg.mxu0
      %v5478 = vsel %vm384, %v5138, 0
      %v5481 = vsel %vm384, %v3372, 0
      %v5484 = vsel %vm384, %v3508, 0
      %5486 = vmatprep.subr.mxu0 0.0
      %5487 = vmatpush1.xpose.msra.mxu0 %v5481
      %5488 = vmatprep.subr.mxu0 0.0
      %5489 = vmatpush1.xpose.msra.mxu0 %v5484
      %5490 = vmatprep.subr.mxu0 0.0
      %5491 = vmatpush1.xpose.msra.mxu0 0.0
      %5492 = vmatprep.subr.mxu0 0.0
      %5493 = vmatpush1.xpose.msra.mxu0 0.0
      %5494 = vmatprep.subr.mxu0 0.0
      %5495 = vmatpush1.xpose.msra.mxu0 0.0
      %5496 = vmatprep.subr.mxu0 0.0
      %5497 = vmatpush1.xpose.msra.mxu0 0.0
      %5498 = vmatprep.subr.mxu0 0.0
      %5499 = vmatpush1.xpose.msra.mxu0 0.0
      %5500 = vmatprep.subr.mxu0 0.0
      %5501 = vmatpush1.xpose.msra.mxu0 0.0
      %5502 = vmatprep.subr.mxu0 0.0
      %5503 = vmatpush1.xpose.msra.mxu0 0.0
      %5504 = vmatprep.subr.mxu0 0.0
      %5505 = vmatpush1.xpose.msra.mxu0 0.0
      %5506 = vmatprep.subr.mxu0 0.0
      %5507 = vmatpush1.xpose.msra.mxu0 0.0
      %5508 = vmatprep.subr.mxu0 0.0
      %5509 = vmatpush1.xpose.msra.mxu0 0.0
      %5510 = vmatprep.subr.mxu0 0.0
      %5511 = vmatpush1.xpose.msra.mxu0 0.0
      %5512 = vmatprep.subr.mxu0 0.0
      %5513 = vmatpush1.xpose.msra.mxu0 0.0
      %5514 = vmatprep.subr.mxu0 0.0
      %5515 = vmatpush1.xpose.msra.mxu0 0.0
      %5516 = vmatprep.subr.mxu0 0.0
      %5517 = vmatpush1.xpose.msra.mxu0 0.0
      %5518 = vmatprep.subr.mxu0 0.0
      %5519 = vmatpush1.xpose.msra.mxu0 0.0
      %5520 = vmatprep.subr.mxu0 0.0
      %5521 = vmatpush1.xpose.msra.mxu0 0.0
      %5522 = vmatprep.subr.mxu0 0.0
      %5523 = vmatpush1.xpose.msra.mxu0 0.0
      %5524 = vmatprep.subr.mxu0 0.0
      %5525 = vmatpush1.xpose.msra.mxu0 0.0
      %5526 = vmatprep.subr.mxu0 0.0
      %5527 = vmatpush1.xpose.msra.mxu0 0.0
      %5528 = vmatprep.subr.mxu0 0.0
      %5529 = vmatpush1.xpose.msra.mxu0 0.0
      %5530 = vmatprep.subr.mxu0 0.0
      %5531 = vmatpush1.xpose.msra.mxu0 0.0
      %5532 = vmatprep.subr.mxu0 0.0
      %5533 = vmatpush1.xpose.msra.mxu0 0.0
      %5534 = vmatprep.subr.mxu0 0.0
      %5535 = vmatpush1.xpose.msra.mxu0 0.0
      %5536 = vmatprep.subr.mxu0 0.0
      %5537 = vmatpush1.xpose.msra.mxu0 0.0
      %5538 = vmatprep.subr.mxu0 0.0
      %5539 = vmatpush1.xpose.msra.mxu0 0.0
      %5540 = vmatprep.subr.mxu0 0.0
      %5541 = vmatpush1.xpose.msra.mxu0 0.0
      %5542 = vmatprep.subr.mxu0 0.0
      %5543 = vmatpush1.xpose.msra.mxu0 0.0
      %5544 = vmatprep.subr.mxu0 0.0
      %5545 = vmatpush1.xpose.msra.mxu0 0.0
      %5546 = vmatprep.subr.mxu0 0.0
      %5547 = vmatpush1.xpose.msra.mxu0 0.0
      %5548 = vmatprep.subr.mxu0 0.0
      %5549 = vmatpush1.xpose.msra.mxu0 0.0
      %5550 = vmatprep.mubr.f32.mxu0 0.0
      %5551 = vmatmul.mubr.f32.gmra.mrb[0].mxu0 %v5478
      %v5552 = vpop.f32.mrb[0].mxu0
      %v5553 = vadd.f32 0.0, %v5552
      %v5554 = vpop.f32.mrb[0].mxu0
      %5555 = vdwg.mxu0
      %v5557 = vsel %vm384, %v5140, 0
      %v5560 = vsel %vm384, %v3373, 0
      %v5563 = vsel %vm384, %v3509, 0
      %5565 = vmatprep.subr.mxu0 0.0
      %5566 = vmatpush1.xpose.msra.mxu0 %v5560
      %5567 = vmatprep.subr.mxu0 0.0
      %5568 = vmatpush1.xpose.msra.mxu0 %v5563
      %5569 = vmatprep.subr.mxu0 0.0
      %5570 = vmatpush1.xpose.msra.mxu0 0.0
      %5571 = vmatprep.subr.mxu0 0.0
      %5572 = vmatpush1.xpose.msra.mxu0 0.0
      %5573 = vmatprep.subr.mxu0 0.0
      %5574 = vmatpush1.xpose.msra.mxu0 0.0
      %5575 = vmatprep.subr.mxu0 0.0
      %5576 = vmatpush1.xpose.msra.mxu0 0.0
      %5577 = vmatprep.subr.mxu0 0.0
      %5578 = vmatpush1.xpose.msra.mxu0 0.0
      %5579 = vmatprep.subr.mxu0 0.0
      %5580 = vmatpush1.xpose.msra.mxu0 0.0
      %5581 = vmatprep.subr.mxu0 0.0
      %5582 = vmatpush1.xpose.msra.mxu0 0.0
      %5583 = vmatprep.subr.mxu0 0.0
      %5584 = vmatpush1.xpose.msra.mxu0 0.0
      %5585 = vmatprep.subr.mxu0 0.0
      %5586 = vmatpush1.xpose.msra.mxu0 0.0
      %5587 = vmatprep.subr.mxu0 0.0
      %5588 = vmatpush1.xpose.msra.mxu0 0.0
      %5589 = vmatprep.subr.mxu0 0.0
      %5590 = vmatpush1.xpose.msra.mxu0 0.0
      %5591 = vmatprep.subr.mxu0 0.0
      %5592 = vmatpush1.xpose.msra.mxu0 0.0
      %5593 = vmatprep.subr.mxu0 0.0
      %5594 = vmatpush1.xpose.msra.mxu0 0.0
      %5595 = vmatprep.subr.mxu0 0.0
      %5596 = vmatpush1.xpose.msra.mxu0 0.0
      %5597 = vmatprep.subr.mxu0 0.0
      %5598 = vmatpush1.xpose.msra.mxu0 0.0
      %5599 = vmatprep.subr.mxu0 0.0
      %5600 = vmatpush1.xpose.msra.mxu0 0.0
      %5601 = vmatprep.subr.mxu0 0.0
      %5602 = vmatpush1.xpose.msra.mxu0 0.0
      %5603 = vmatprep.subr.mxu0 0.0
      %5604 = vmatpush1.xpose.msra.mxu0 0.0
      %5605 = vmatprep.subr.mxu0 0.0
      %5606 = vmatpush1.xpose.msra.mxu0 0.0
      %5607 = vmatprep.subr.mxu0 0.0
      %5608 = vmatpush1.xpose.msra.mxu0 0.0
      %5609 = vmatprep.subr.mxu0 0.0
      %5610 = vmatpush1.xpose.msra.mxu0 0.0
      %5611 = vmatprep.subr.mxu0 0.0
      %5612 = vmatpush1.xpose.msra.mxu0 0.0
      %5613 = vmatprep.subr.mxu0 0.0
      %5614 = vmatpush1.xpose.msra.mxu0 0.0
      %5615 = vmatprep.subr.mxu0 0.0
      %5616 = vmatpush1.xpose.msra.mxu0 0.0
      %5617 = vmatprep.subr.mxu0 0.0
      %5618 = vmatpush1.xpose.msra.mxu0 0.0
      %5619 = vmatprep.subr.mxu0 0.0
      %5620 = vmatpush1.xpose.msra.mxu0 0.0
      %5621 = vmatprep.subr.mxu0 0.0
      %5622 = vmatpush1.xpose.msra.mxu0 0.0
      %5623 = vmatprep.subr.mxu0 0.0
      %5624 = vmatpush1.xpose.msra.mxu0 0.0
      %5625 = vmatprep.subr.mxu0 0.0
      %5626 = vmatpush1.xpose.msra.mxu0 0.0
      %5627 = vmatprep.subr.mxu0 0.0
      %5628 = vmatpush1.xpose.msra.mxu0 0.0
      %5629 = vmatprep.mubr.f32.mxu0 0.0
      %5630 = vmatmul.mubr.f32.gmra.mrb[0].mxu0 %v5557
      %v5631 = vpop.f32.mrb[0].mxu0
      %v5632 = vadd.f32 0.0, %v5631
      %v5633 = vpop.f32.mrb[0].mxu0
      %5634 = vdwg.mxu0
      %v5636 = vsel %vm384, %v5142, 0
      %v5639 = vsel %vm384, %v3374, 0
      %v5642 = vsel %vm384, %v3510, 0
      %5644 = vmatprep.subr.mxu0 0.0
      %5645 = vmatpush1.xpose.msra.mxu0 %v5639
      %5646 = vmatprep.subr.mxu0 0.0
      %5647 = vmatpush1.xpose.msra.mxu0 %v5642
      %5648 = vmatprep.subr.mxu0 0.0
      %5649 = vmatpush1.xpose.msra.mxu0 0.0
      %5650 = vmatprep.subr.mxu0 0.0
      %5651 = vmatpush1.xpose.msra.mxu0 0.0
      %5652 = vmatprep.subr.mxu0 0.0
      %5653 = vmatpush1.xpose.msra.mxu0 0.0
      %5654 = vmatprep.subr.mxu0 0.0
      %5655 = vmatpush1.xpose.msra.mxu0 0.0
      %5656 = vmatprep.subr.mxu0 0.0
      %5657 = vmatpush1.xpose.msra.mxu0 0.0
      %5658 = vmatprep.subr.mxu0 0.0
      %5659 = vmatpush1.xpose.msra.mxu0 0.0
      %5660 = vmatprep.subr.mxu0 0.0
      %5661 = vmatpush1.xpose.msra.mxu0 0.0
      %5662 = vmatprep.subr.mxu0 0.0
      %5663 = vmatpush1.xpose.msra.mxu0 0.0
      %5664 = vmatprep.subr.mxu0 0.0
      %5665 = vmatpush1.xpose.msra.mxu0 0.0
      %5666 = vmatprep.subr.mxu0 0.0
      %5667 = vmatpush1.xpose.msra.mxu0 0.0
      %5668 = vmatprep.subr.mxu0 0.0
      %5669 = vmatpush1.xpose.msra.mxu0 0.0
      %5670 = vmatprep.subr.mxu0 0.0
      %5671 = vmatpush1.xpose.msra.mxu0 0.0
      %5672 = vmatprep.subr.mxu0 0.0
      %5673 = vmatpush1.xpose.msra.mxu0 0.0
      %5674 = vmatprep.subr.mxu0 0.0
      %5675 = vmatpush1.xpose.msra.mxu0 0.0
      %5676 = vmatprep.subr.mxu0 0.0
      %5677 = vmatpush1.xpose.msra.mxu0 0.0
      %5678 = vmatprep.subr.mxu0 0.0
      %5679 = vmatpush1.xpose.msra.mxu0 0.0
      %5680 = vmatprep.subr.mxu0 0.0
      %5681 = vmatpush1.xpose.msra.mxu0 0.0
      %5682 = vmatprep.subr.mxu0 0.0
      %5683 = vmatpush1.xpose.msra.mxu0 0.0
      %5684 = vmatprep.subr.mxu0 0.0
      %5685 = vmatpush1.xpose.msra.mxu0 0.0
      %5686 = vmatprep.subr.mxu0 0.0
      %5687 = vmatpush1.xpose.msra.mxu0 0.0
      %5688 = vmatprep.subr.mxu0 0.0
      %5689 = vmatpush1.xpose.msra.mxu0 0.0
      %5690 = vmatprep.subr.mxu0 0.0
      %5691 = vmatpush1.xpose.msra.mxu0 0.0
      %5692 = vmatprep.subr.mxu0 0.0
      %5693 = vmatpush1.xpose.msra.mxu0 0.0
      %5694 = vmatprep.subr.mxu0 0.0
      %5695 = vmatpush1.xpose.msra.mxu0 0.0
      %5696 = vmatprep.subr.mxu0 0.0
      %5697 = vmatpush1.xpose.msra.mxu0 0.0
      %5698 = vmatprep.subr.mxu0 0.0
      %5699 = vmatpush1.xpose.msra.mxu0 0.0
      %5700 = vmatprep.subr.mxu0 0.0
      %5701 = vmatpush1.xpose.msra.mxu0 0.0
      %5702 = vmatprep.subr.mxu0 0.0
      %5703 = vmatpush1.xpose.msra.mxu0 0.0
      %5704 = vmatprep.subr.mxu0 0.0
      %5705 = vmatpush1.xpose.msra.mxu0 0.0
      %5706 = vmatprep.subr.mxu0 0.0
      %5707 = vmatpush1.xpose.msra.mxu0 0.0
      %5708 = vmatprep.mubr.f32.mxu0 0.0
      %5709 = vmatmul.mubr.f32.gmra.mrb[0].mxu0 %v5636
      %v5710 = vpop.f32.mrb[0].mxu0
      %v5711 = vadd.f32 0.0, %v5710
      %v5712 = vpop.f32.mrb[0].mxu0
      %5713 = vdwg.mxu0
      %v5715 = vsel %vm384, %v5144, 0
      %v5718 = vsel %vm384, %v3375, 0
      %v5721 = vsel %vm384, %v3511, 0
      %5723 = vmatprep.subr.mxu0 0.0
      %5724 = vmatpush1.xpose.msra.mxu0 %v5718
      %5725 = vmatprep.subr.mxu0 0.0
      %5726 = vmatpush1.xpose.msra.mxu0 %v5721
      %5727 = vmatprep.subr.mxu0 0.0
      %5728 = vmatpush1.xpose.msra.mxu0 0.0
      %5729 = vmatprep.subr.mxu0 0.0
      %5730 = vmatpush1.xpose.msra.mxu0 0.0
      %5731 = vmatprep.subr.mxu0 0.0
      %5732 = vmatpush1.xpose.msra.mxu0 0.0
      %5733 = vmatprep.subr.mxu0 0.0
      %5734 = vmatpush1.xpose.msra.mxu0 0.0
      %5735 = vmatprep.subr.mxu0 0.0
      %5736 = vmatpush1.xpose.msra.mxu0 0.0
      %5737 = vmatprep.subr.mxu0 0.0
      %5738 = vmatpush1.xpose.msra.mxu0 0.0
      %5739 = vmatprep.subr.mxu0 0.0
      %5740 = vmatpush1.xpose.msra.mxu0 0.0
      %5741 = vmatprep.subr.mxu0 0.0
      %5742 = vmatpush1.xpose.msra.mxu0 0.0
      %5743 = vmatprep.subr.mxu0 0.0
      %5744 = vmatpush1.xpose.msra.mxu0 0.0
      %5745 = vmatprep.subr.mxu0 0.0
      %5746 = vmatpush1.xpose.msra.mxu0 0.0
      %5747 = vmatprep.subr.mxu0 0.0
      %5748 = vmatpush1.xpose.msra.mxu0 0.0
      %5749 = vmatprep.subr.mxu0 0.0
      %5750 = vmatpush1.xpose.msra.mxu0 0.0
      %5751 = vmatprep.subr.mxu0 0.0
      %5752 = vmatpush1.xpose.msra.mxu0 0.0
      %5753 = vmatprep.subr.mxu0 0.0
      %5754 = vmatpush1.xpose.msra.mxu0 0.0
      %5755 = vmatprep.subr.mxu0 0.0
      %5756 = vmatpush1.xpose.msra.mxu0 0.0
      %5757 = vmatprep.subr.mxu0 0.0
      %5758 = vmatpush1.xpose.msra.mxu0 0.0
      %5759 = vmatprep.subr.mxu0 0.0
      %5760 = vmatpush1.xpose.msra.mxu0 0.0
      %5761 = vmatprep.subr.mxu0 0.0
      %5762 = vmatpush1.xpose.msra.mxu0 0.0
      %5763 = vmatprep.subr.mxu0 0.0
      %5764 = vmatpush1.xpose.msra.mxu0 0.0
      %5765 = vmatprep.subr.mxu0 0.0
      %5766 = vmatpush1.xpose.msra.mxu0 0.0
      %5767 = vmatprep.subr.mxu0 0.0
      %5768 = vmatpush1.xpose.msra.mxu0 0.0
      %5769 = vmatprep.subr.mxu0 0.0
      %5770 = vmatpush1.xpose.msra.mxu0 0.0
      %5771 = vmatprep.subr.mxu0 0.0
      %5772 = vmatpush1.xpose.msra.mxu0 0.0
      %5773 = vmatprep.subr.mxu0 0.0
      %5774 = vmatpush1.xpose.msra.mxu0 0.0
      %5775 = vmatprep.subr.mxu0 0.0
      %5776 = vmatpush1.xpose.msra.mxu0 0.0
      %5777 = vmatprep.subr.mxu0 0.0
      %5778 = vmatpush1.xpose.msra.mxu0 0.0
      %5779 = vmatprep.subr.mxu0 0.0
      %5780 = vmatpush1.xpose.msra.mxu0 0.0
      %5781 = vmatprep.subr.mxu0 0.0
      %5782 = vmatpush1.xpose.msra.mxu0 0.0
      %5783 = vmatprep.subr.mxu0 0.0
      %5784 = vmatpush1.xpose.msra.mxu0 0.0
      %5785 = vmatprep.subr.mxu0 0.0
      %5786 = vmatpush1.xpose.msra.mxu0 0.0
      %5787 = vmatprep.mubr.f32.mxu0 0.0
      %5788 = vmatmul.mubr.f32.gmra.mrb[0].mxu0 %v5715
      %v5789 = vpop.f32.mrb[0].mxu0
      %v5790 = vadd.f32 0.0, %v5789
      %v5791 = vpop.f32.mrb[0].mxu0
      %5792 = vdwg.mxu0
      %v5794 = vsel %vm384, %v5146, 0
      %v5797 = vsel %vm384, %v3640, 0
      %v5800 = vsel %vm384, %v3776, 0
      %5802 = vmatprep.subr.mxu0 0.0
      %5803 = vmatpush1.xpose.msra.mxu0 %v5797
      %5804 = vmatprep.subr.mxu0 0.0
      %5805 = vmatpush1.xpose.msra.mxu0 %v5800
      %5806 = vmatprep.subr.mxu0 0.0
      %5807 = vmatpush1.xpose.msra.mxu0 0.0
      %5808 = vmatprep.subr.mxu0 0.0
      %5809 = vmatpush1.xpose.msra.mxu0 0.0
      %5810 = vmatprep.subr.mxu0 0.0
      %5811 = vmatpush1.xpose.msra.mxu0 0.0
      %5812 = vmatprep.subr.mxu0 0.0
      %5813 = vmatpush1.xpose.msra.mxu0 0.0
      %5814 = vmatprep.subr.mxu0 0.0
      %5815 = vmatpush1.xpose.msra.mxu0 0.0
      %5816 = vmatprep.subr.mxu0 0.0
      %5817 = vmatpush1.xpose.msra.mxu0 0.0
      %5818 = vmatprep.subr.mxu0 0.0
      %5819 = vmatpush1.xpose.msra.mxu0 0.0
      %5820 = vmatprep.subr.mxu0 0.0
      %5821 = vmatpush1.xpose.msra.mxu0 0.0
      %5822 = vmatprep.subr.mxu0 0.0
      %5823 = vmatpush1.xpose.msra.mxu0 0.0
      %5824 = vmatprep.subr.mxu0 0.0
      %5825 = vmatpush1.xpose.msra.mxu0 0.0
      %5826 = vmatprep.subr.mxu0 0.0
      %5827 = vmatpush1.xpose.msra.mxu0 0.0
      %5828 = vmatprep.subr.mxu0 0.0
      %5829 = vmatpush1.xpose.msra.mxu0 0.0
      %5830 = vmatprep.subr.mxu0 0.0
      %5831 = vmatpush1.xpose.msra.mxu0 0.0
      %5832 = vmatprep.subr.mxu0 0.0
      %5833 = vmatpush1.xpose.msra.mxu0 0.0
      %5834 = vmatprep.subr.mxu0 0.0
      %5835 = vmatpush1.xpose.msra.mxu0 0.0
      %5836 = vmatprep.subr.mxu0 0.0
      %5837 = vmatpush1.xpose.msra.mxu0 0.0
      %5838 = vmatprep.subr.mxu0 0.0
      %5839 = vmatpush1.xpose.msra.mxu0 0.0
      %5840 = vmatprep.subr.mxu0 0.0
      %5841 = vmatpush1.xpose.msra.mxu0 0.0
      %5842 = vmatprep.subr.mxu0 0.0
      %5843 = vmatpush1.xpose.msra.mxu0 0.0
      %5844 = vmatprep.subr.mxu0 0.0
      %5845 = vmatpush1.xpose.msra.mxu0 0.0
      %5846 = vmatprep.subr.mxu0 0.0
      %5847 = vmatpush1.xpose.msra.mxu0 0.0
      %5848 = vmatprep.subr.mxu0 0.0
      %5849 = vmatpush1.xpose.msra.mxu0 0.0
      %5850 = vmatprep.subr.mxu0 0.0
      %5851 = vmatpush1.xpose.msra.mxu0 0.0
      %5852 = vmatprep.subr.mxu0 0.0
      %5853 = vmatpush1.xpose.msra.mxu0 0.0
      %5854 = vmatprep.subr.mxu0 0.0
      %5855 = vmatpush1.xpose.msra.mxu0 0.0
      %5856 = vmatprep.subr.mxu0 0.0
      %5857 = vmatpush1.xpose.msra.mxu0 0.0
      %5858 = vmatprep.subr.mxu0 0.0
      %5859 = vmatpush1.xpose.msra.mxu0 0.0
      %5860 = vmatprep.subr.mxu0 0.0
      %5861 = vmatpush1.xpose.msra.mxu0 0.0
      %5862 = vmatprep.subr.mxu0 0.0
      %5863 = vmatpush1.xpose.msra.mxu0 0.0
      %5864 = vmatprep.subr.mxu0 0.0
      %5865 = vmatpush1.xpose.msra.mxu0 0.0
      %5866 = vmatprep.mubr.f32.mxu0 0.0
      %5867 = vmatmul.mubr.f32.gmra.mrb[0].mxu0 %v5794
      %v5868 = vpop.f32.mrb[0].mxu0
      %v5869 = vadd.f32 0.0, %v5868
      %v5870 = vpop.f32.mrb[0].mxu0
      %5871 = vdwg.mxu0
      %v5873 = vsel %vm384, %v5148, 0
      %v5876 = vsel %vm384, %v3641, 0
      %v5879 = vsel %vm384, %v3777, 0
      %5881 = vmatprep.subr.mxu0 0.0
      %5882 = vmatpush1.xpose.msra.mxu0 %v5876
      %5883 = vmatprep.subr.mxu0 0.0
      %5884 = vmatpush1.xpose.msra.mxu0 %v5879
      %5885 = vmatprep.subr.mxu0 0.0
      %5886 = vmatpush1.xpose.msra.mxu0 0.0
      %5887 = vmatprep.subr.mxu0 0.0
      %5888 = vmatpush1.xpose.msra.mxu0 0.0
      %5889 = vmatprep.subr.mxu0 0.0
      %5890 = vmatpush1.xpose.msra.mxu0 0.0
      %5891 = vmatprep.subr.mxu0 0.0
      %5892 = vmatpush1.xpose.msra.mxu0 0.0
      %5893 = vmatprep.subr.mxu0 0.0
      %5894 = vmatpush1.xpose.msra.mxu0 0.0
      %5895 = vmatprep.subr.mxu0 0.0
      %5896 = vmatpush1.xpose.msra.mxu0 0.0
      %5897 = vmatprep.subr.mxu0 0.0
      %5898 = vmatpush1.xpose.msra.mxu0 0.0
      %5899 = vmatprep.subr.mxu0 0.0
      %5900 = vmatpush1.xpose.msra.mxu0 0.0
      %5901 = vmatprep.subr.mxu0 0.0
      %5902 = vmatpush1.xpose.msra.mxu0 0.0
      %5903 = vmatprep.subr.mxu0 0.0
      %5904 = vmatpush1.xpose.msra.mxu0 0.0
      %5905 = vmatprep.subr.mxu0 0.0
      %5906 = vmatpush1.xpose.msra.mxu0 0.0
      %5907 = vmatprep.subr.mxu0 0.0
      %5908 = vmatpush1.xpose.msra.mxu0 0.0
      %5909 = vmatprep.subr.mxu0 0.0
      %5910 = vmatpush1.xpose.msra.mxu0 0.0
      %5911 = vmatprep.subr.mxu0 0.0
      %5912 = vmatpush1.xpose.msra.mxu0 0.0
      %5913 = vmatprep.subr.mxu0 0.0
      %5914 = vmatpush1.xpose.msra.mxu0 0.0
      %5915 = vmatprep.subr.mxu0 0.0
      %5916 = vmatpush1.xpose.msra.mxu0 0.0
      %5917 = vmatprep.subr.mxu0 0.0
      %5918 = vmatpush1.xpose.msra.mxu0 0.0
      %5919 = vmatprep.subr.mxu0 0.0
      %5920 = vmatpush1.xpose.msra.mxu0 0.0
      %5921 = vmatprep.subr.mxu0 0.0
      %5922 = vmatpush1.xpose.msra.mxu0 0.0
      %5923 = vmatprep.subr.mxu0 0.0
      %5924 = vmatpush1.xpose.msra.mxu0 0.0
      %5925 = vmatprep.subr.mxu0 0.0
      %5926 = vmatpush1.xpose.msra.mxu0 0.0
      %5927 = vmatprep.subr.mxu0 0.0
      %5928 = vmatpush1.xpose.msra.mxu0 0.0
      %5929 = vmatprep.subr.mxu0 0.0
      %5930 = vmatpush1.xpose.msra.mxu0 0.0
      %5931 = vmatprep.subr.mxu0 0.0
      %5932 = vmatpush1.xpose.msra.mxu0 0.0
      %5933 = vmatprep.subr.mxu0 0.0
      %5934 = vmatpush1.xpose.msra.mxu0 0.0
      %5935 = vmatprep.subr.mxu0 0.0
      %5936 = vmatpush1.xpose.msra.mxu0 0.0
      %5937 = vmatprep.subr.mxu0 0.0
      %5938 = vmatpush1.xpose.msra.mxu0 0.0
      %5939 = vmatprep.subr.mxu0 0.0
      %5940 = vmatpush1.xpose.msra.mxu0 0.0
      %5941 = vmatprep.subr.mxu0 0.0
      %5942 = vmatpush1.xpose.msra.mxu0 0.0
      %5943 = vmatprep.subr.mxu0 0.0
      %5944 = vmatpush1.xpose.msra.mxu0 0.0
      %5945 = vmatprep.mubr.f32.mxu0 0.0
      %5946 = vmatmul.mubr.f32.gmra.mrb[0].mxu0 %v5873
      %v5947 = vpop.f32.mrb[0].mxu0
      %v5948 = vadd.f32 0.0, %v5947
      %v5949 = vpop.f32.mrb[0].mxu0
      %5950 = vdwg.mxu0
      %v5952 = vsel %vm384, %v5150, 0
      %v5955 = vsel %vm384, %v3642, 0
      %v5958 = vsel %vm384, %v3778, 0
      %5960 = vmatprep.subr.mxu0 0.0
      %5961 = vmatpush1.xpose.msra.mxu0 %v5955
      %5962 = vmatprep.subr.mxu0 0.0
      %5963 = vmatpush1.xpose.msra.mxu0 %v5958
      %5964 = vmatprep.subr.mxu0 0.0
      %5965 = vmatpush1.xpose.msra.mxu0 0.0
      %5966 = vmatprep.subr.mxu0 0.0
      %5967 = vmatpush1.xpose.msra.mxu0 0.0
      %5968 = vmatprep.subr.mxu0 0.0
      %5969 = vmatpush1.xpose.msra.mxu0 0.0
      %5970 = vmatprep.subr.mxu0 0.0
      %5971 = vmatpush1.xpose.msra.mxu0 0.0
      %5972 = vmatprep.subr.mxu0 0.0
      %5973 = vmatpush1.xpose.msra.mxu0 0.0
      %5974 = vmatprep.subr.mxu0 0.0
      %5975 = vmatpush1.xpose.msra.mxu0 0.0
      %5976 = vmatprep.subr.mxu0 0.0
      %5977 = vmatpush1.xpose.msra.mxu0 0.0
      %5978 = vmatprep.subr.mxu0 0.0
      %5979 = vmatpush1.xpose.msra.mxu0 0.0
      %5980 = vmatprep.subr.mxu0 0.0
      %5981 = vmatpush1.xpose.msra.mxu0 0.0
      %5982 = vmatprep.subr.mxu0 0.0
      %5983 = vmatpush1.xpose.msra.mxu0 0.0
      %5984 = vmatprep.subr.mxu0 0.0
      %5985 = vmatpush1.xpose.msra.mxu0 0.0
      %5986 = vmatprep.subr.mxu0 0.0
      %5987 = vmatpush1.xpose.msra.mxu0 0.0
      %5988 = vmatprep.subr.mxu0 0.0
      %5989 = vmatpush1.xpose.msra.mxu0 0.0
      %5990 = vmatprep.subr.mxu0 0.0
      %5991 = vmatpush1.xpose.msra.mxu0 0.0
      %5992 = vmatprep.subr.mxu0 0.0
      %5993 = vmatpush1.xpose.msra.mxu0 0.0
      %5994 = vmatprep.subr.mxu0 0.0
      %5995 = vmatpush1.xpose.msra.mxu0 0.0
      %5996 = vmatprep.subr.mxu0 0.0
      %5997 = vmatpush1.xpose.msra.mxu0 0.0
      %5998 = vmatprep.subr.mxu0 0.0
      %5999 = vmatpush1.xpose.msra.mxu0 0.0
      %6000 = vmatprep.subr.mxu0 0.0
      %6001 = vmatpush1.xpose.msra.mxu0 0.0
      %6002 = vmatprep.subr.mxu0 0.0
      %6003 = vmatpush1.xpose.msra.mxu0 0.0
      %6004 = vmatprep.subr.mxu0 0.0
      %6005 = vmatpush1.xpose.msra.mxu0 0.0
      %6006 = vmatprep.subr.mxu0 0.0
      %6007 = vmatpush1.xpose.msra.mxu0 0.0
      %6008 = vmatprep.subr.mxu0 0.0
      %6009 = vmatpush1.xpose.msra.mxu0 0.0
      %6010 = vmatprep.subr.mxu0 0.0
      %6011 = vmatpush1.xpose.msra.mxu0 0.0
      %6012 = vmatprep.subr.mxu0 0.0
      %6013 = vmatpush1.xpose.msra.mxu0 0.0
      %6014 = vmatprep.subr.mxu0 0.0
      %6015 = vmatpush1.xpose.msra.mxu0 0.0
      %6016 = vmatprep.subr.mxu0 0.0
      %6017 = vmatpush1.xpose.msra.mxu0 0.0
      %6018 = vmatprep.subr.mxu0 0.0
      %6019 = vmatpush1.xpose.msra.mxu0 0.0
      %6020 = vmatprep.subr.mxu0 0.0
      %6021 = vmatpush1.xpose.msra.mxu0 0.0
      %6022 = vmatprep.subr.mxu0 0.0
      %6023 = vmatpush1.xpose.msra.mxu0 0.0
      %6024 = vmatprep.mubr.f32.mxu0 0.0
      %6025 = vmatmul.mubr.f32.gmra.mrb[0].mxu0 %v5952
      %v6026 = vpop.f32.mrb[0].mxu0
      %v6027 = vadd.f32 0.0, %v6026
      %v6028 = vpop.f32.mrb[0].mxu0
      %6029 = vdwg.mxu0
      %v6031 = vsel %vm384, %v5152, 0
      %v6034 = vsel %vm384, %v3643, 0
      %v6037 = vsel %vm384, %v3779, 0
      %6039 = vmatprep.subr.mxu0 0.0
      %6040 = vmatpush1.xpose.msra.mxu0 %v6034
      %6041 = vmatprep.subr.mxu0 0.0
      %6042 = vmatpush1.xpose.msra.mxu0 %v6037
      %6043 = vmatprep.subr.mxu0 0.0
      %6044 = vmatpush1.xpose.msra.mxu0 0.0
      %6045 = vmatprep.subr.mxu0 0.0
      %6046 = vmatpush1.xpose.msra.mxu0 0.0
      %6047 = vmatprep.subr.mxu0 0.0
      %6048 = vmatpush1.xpose.msra.mxu0 0.0
      %6049 = vmatprep.subr.mxu0 0.0
      %6050 = vmatpush1.xpose.msra.mxu0 0.0
      %6051 = vmatprep.subr.mxu0 0.0
      %6052 = vmatpush1.xpose.msra.mxu0 0.0
      %6053 = vmatprep.subr.mxu0 0.0
      %6054 = vmatpush1.xpose.msra.mxu0 0.0
      %6055 = vmatprep.subr.mxu0 0.0
      %6056 = vmatpush1.xpose.msra.mxu0 0.0
      %6057 = vmatprep.subr.mxu0 0.0
      %6058 = vmatpush1.xpose.msra.mxu0 0.0
      %6059 = vmatprep.subr.mxu0 0.0
      %6060 = vmatpush1.xpose.msra.mxu0 0.0
      %6061 = vmatprep.subr.mxu0 0.0
      %6062 = vmatpush1.xpose.msra.mxu0 0.0
      %6063 = vmatprep.subr.mxu0 0.0
      %6064 = vmatpush1.xpose.msra.mxu0 0.0
      %6065 = vmatprep.subr.mxu0 0.0
      %6066 = vmatpush1.xpose.msra.mxu0 0.0
      %6067 = vmatprep.subr.mxu0 0.0
      %6068 = vmatpush1.xpose.msra.mxu0 0.0
      %6069 = vmatprep.subr.mxu0 0.0
      %6070 = vmatpush1.xpose.msra.mxu0 0.0
      %6071 = vmatprep.subr.mxu0 0.0
      %6072 = vmatpush1.xpose.msra.mxu0 0.0
      %6073 = vmatprep.subr.mxu0 0.0
      %6074 = vmatpush1.xpose.msra.mxu0 0.0
      %6075 = vmatprep.subr.mxu0 0.0
      %6076 = vmatpush1.xpose.msra.mxu0 0.0
      %6077 = vmatprep.subr.mxu0 0.0
      %6078 = vmatpush1.xpose.msra.mxu0 0.0
      %6079 = vmatprep.subr.mxu0 0.0
      %6080 = vmatpush1.xpose.msra.mxu0 0.0
      %6081 = vmatprep.subr.mxu0 0.0
      %6082 = vmatpush1.xpose.msra.mxu0 0.0
      %6083 = vmatprep.subr.mxu0 0.0
      %6084 = vmatpush1.xpose.msra.mxu0 0.0
      %6085 = vmatprep.subr.mxu0 0.0
      %6086 = vmatpush1.xpose.msra.mxu0 0.0
      %6087 = vmatprep.subr.mxu0 0.0
      %6088 = vmatpush1.xpose.msra.mxu0 0.0
      %6089 = vmatprep.subr.mxu0 0.0
      %6090 = vmatpush1.xpose.msra.mxu0 0.0
      %6091 = vmatprep.subr.mxu0 0.0
      %6092 = vmatpush1.xpose.msra.mxu0 0.0
      %6093 = vmatprep.subr.mxu0 0.0
      %6094 = vmatpush1.xpose.msra.mxu0 0.0
      %6095 = vmatprep.subr.mxu0 0.0
      %6096 = vmatpush1.xpose.msra.mxu0 0.0
      %6097 = vmatprep.subr.mxu0 0.0
      %6098 = vmatpush1.xpose.msra.mxu0 0.0
      %6099 = vmatprep.subr.mxu0 0.0
      %6100 = vmatpush1.xpose.msra.mxu0 0.0
      %6101 = vmatprep.subr.mxu0 0.0
      %6102 = vmatpush1.xpose.msra.mxu0 0.0
      %6103 = vmatprep.mubr.f32.mxu0 0.0
      %6104 = vmatmul.mubr.f32.gmra.mrb[0].mxu0 %v6031
      %v6105 = vpop.f32.mrb[0].mxu0
      %v6106 = vadd.f32 0.0, %v6105
      %v6107 = vpop.f32.mrb[0].mxu0
      %6108 = vdwg.mxu0
      %v6110 = vsel %vm384, %v5154, 0
      %v6113 = vsel %vm384, %v3644, 0
      %v6116 = vsel %vm384, %v3780, 0
      %6118 = vmatprep.subr.mxu0 0.0
      %6119 = vmatpush1.xpose.msra.mxu0 %v6113
      %6120 = vmatprep.subr.mxu0 0.0
      %6121 = vmatpush1.xpose.msra.mxu0 %v6116
      %6122 = vmatprep.subr.mxu0 0.0
      %6123 = vmatpush1.xpose.msra.mxu0 0.0
      %6124 = vmatprep.subr.mxu0 0.0
      %6125 = vmatpush1.xpose.msra.mxu0 0.0
      %6126 = vmatprep.subr.mxu0 0.0
      %6127 = vmatpush1.xpose.msra.mxu0 0.0
      %6128 = vmatprep.subr.mxu0 0.0
      %6129 = vmatpush1.xpose.msra.mxu0 0.0
      %6130 = vmatprep.subr.mxu0 0.0
      %6131 = vmatpush1.xpose.msra.mxu0 0.0
      %6132 = vmatprep.subr.mxu0 0.0
      %6133 = vmatpush1.xpose.msra.mxu0 0.0
      %6134 = vmatprep.subr.mxu0 0.0
      %6135 = vmatpush1.xpose.msra.mxu0 0.0
      %6136 = vmatprep.subr.mxu0 0.0
      %6137 = vmatpush1.xpose.msra.mxu0 0.0
      %6138 = vmatprep.subr.mxu0 0.0
      %6139 = vmatpush1.xpose.msra.mxu0 0.0
      %6140 = vmatprep.subr.mxu0 0.0
      %6141 = vmatpush1.xpose.msra.mxu0 0.0
      %6142 = vmatprep.subr.mxu0 0.0
      %6143 = vmatpush1.xpose.msra.mxu0 0.0
      %6144 = vmatprep.subr.mxu0 0.0
      %6145 = vmatpush1.xpose.msra.mxu0 0.0
      %6146 = vmatprep.subr.mxu0 0.0
      %6147 = vmatpush1.xpose.msra.mxu0 0.0
      %6148 = vmatprep.subr.mxu0 0.0
      %6149 = vmatpush1.xpose.msra.mxu0 0.0
      %6150 = vmatprep.subr.mxu0 0.0
      %6151 = vmatpush1.xpose.msra.mxu0 0.0
      %6152 = vmatprep.subr.mxu0 0.0
      %6153 = vmatpush1.xpose.msra.mxu0 0.0
      %6154 = vmatprep.subr.mxu0 0.0
      %6155 = vmatpush1.xpose.msra.mxu0 0.0
      %6156 = vmatprep.subr.mxu0 0.0
      %6157 = vmatpush1.xpose.msra.mxu0 0.0
      %6158 = vmatprep.subr.mxu0 0.0
      %6159 = vmatpush1.xpose.msra.mxu0 0.0
      %6160 = vmatprep.subr.mxu0 0.0
      %6161 = vmatpush1.xpose.msra.mxu0 0.0
      %6162 = vmatprep.subr.mxu0 0.0
      %6163 = vmatpush1.xpose.msra.mxu0 0.0
      %6164 = vmatprep.subr.mxu0 0.0
      %6165 = vmatpush1.xpose.msra.mxu0 0.0
      %6166 = vmatprep.subr.mxu0 0.0
      %6167 = vmatpush1.xpose.msra.mxu0 0.0
      %6168 = vmatprep.subr.mxu0 0.0
      %6169 = vmatpush1.xpose.msra.mxu0 0.0
      %6170 = vmatprep.subr.mxu0 0.0
      %6171 = vmatpush1.xpose.msra.mxu0 0.0
      %6172 = vmatprep.subr.mxu0 0.0
      %6173 = vmatpush1.xpose.msra.mxu0 0.0
      %6174 = vmatprep.subr.mxu0 0.0
      %6175 = vmatpush1.xpose.msra.mxu0 0.0
      %6176 = vmatprep.subr.mxu0 0.0
      %6177 = vmatpush1.xpose.msra.mxu0 0.0
      %6178 = vmatprep.subr.mxu0 0.0
      %6179 = vmatpush1.xpose.msra.mxu0 0.0
      %6180 = vmatprep.subr.mxu0 0.0
      %6181 = vmatpush1.xpose.msra.mxu0 0.0
      %6182 = vmatprep.mubr.f32.mxu0 0.0
      %6183 = vmatmul.mubr.f32.gmra.mrb[0].mxu0 %v6110
      %v6184 = vpop.f32.mrb[0].mxu0
      %v6185 = vadd.f32 0.0, %v6184
      %v6186 = vpop.f32.mrb[0].mxu0
      %6187 = vdwg.mxu0
      %v6189 = vsel %vm384, %v5156, 0
      %v6192 = vsel %vm384, %v3645, 0
      %v6195 = vsel %vm384, %v3781, 0
      %6197 = vmatprep.subr.mxu0 0.0
      %6198 = vmatpush1.xpose.msra.mxu0 %v6192
      %6199 = vmatprep.subr.mxu0 0.0
      %6200 = vmatpush1.xpose.msra.mxu0 %v6195
      %6201 = vmatprep.subr.mxu0 0.0
      %6202 = vmatpush1.xpose.msra.mxu0 0.0
      %6203 = vmatprep.subr.mxu0 0.0
      %6204 = vmatpush1.xpose.msra.mxu0 0.0
      %6205 = vmatprep.subr.mxu0 0.0
      %6206 = vmatpush1.xpose.msra.mxu0 0.0
      %6207 = vmatprep.subr.mxu0 0.0
      %6208 = vmatpush1.xpose.msra.mxu0 0.0
      %6209 = vmatprep.subr.mxu0 0.0
      %6210 = vmatpush1.xpose.msra.mxu0 0.0
      %6211 = vmatprep.subr.mxu0 0.0
      %6212 = vmatpush1.xpose.msra.mxu0 0.0
      %6213 = vmatprep.subr.mxu0 0.0
      %6214 = vmatpush1.xpose.msra.mxu0 0.0
      %6215 = vmatprep.subr.mxu0 0.0
      %6216 = vmatpush1.xpose.msra.mxu0 0.0
      %6217 = vmatprep.subr.mxu0 0.0
      %6218 = vmatpush1.xpose.msra.mxu0 0.0
      %6219 = vmatprep.subr.mxu0 0.0
      %6220 = vmatpush1.xpose.msra.mxu0 0.0
      %6221 = vmatprep.subr.mxu0 0.0
      %6222 = vmatpush1.xpose.msra.mxu0 0.0
      %6223 = vmatprep.subr.mxu0 0.0
      %6224 = vmatpush1.xpose.msra.mxu0 0.0
      %6225 = vmatprep.subr.mxu0 0.0
      %6226 = vmatpush1.xpose.msra.mxu0 0.0
      %6227 = vmatprep.subr.mxu0 0.0
      %6228 = vmatpush1.xpose.msra.mxu0 0.0
      %6229 = vmatprep.subr.mxu0 0.0
      %6230 = vmatpush1.xpose.msra.mxu0 0.0
      %6231 = vmatprep.subr.mxu0 0.0
      %6232 = vmatpush1.xpose.msra.mxu0 0.0
      %6233 = vmatprep.subr.mxu0 0.0
      %6234 = vmatpush1.xpose.msra.mxu0 0.0
      %6235 = vmatprep.subr.mxu0 0.0
      %6236 = vmatpush1.xpose.msra.mxu0 0.0
      %6237 = vmatprep.subr.mxu0 0.0
      %6238 = vmatpush1.xpose.msra.mxu0 0.0
      %6239 = vmatprep.subr.mxu0 0.0
      %6240 = vmatpush1.xpose.msra.mxu0 0.0
      %6241 = vmatprep.subr.mxu0 0.0
      %6242 = vmatpush1.xpose.msra.mxu0 0.0
      %6243 = vmatprep.subr.mxu0 0.0
      %6244 = vmatpush1.xpose.msra.mxu0 0.0
      %6245 = vmatprep.subr.mxu0 0.0
      %6246 = vmatpush1.xpose.msra.mxu0 0.0
      %6247 = vmatprep.subr.mxu0 0.0
      %6248 = vmatpush1.xpose.msra.mxu0 0.0
      %6249 = vmatprep.subr.mxu0 0.0
      %6250 = vmatpush1.xpose.msra.mxu0 0.0
      %6251 = vmatprep.subr.mxu0 0.0
      %6252 = vmatpush1.xpose.msra.mxu0 0.0
      %6253 = vmatprep.subr.mxu0 0.0
      %6254 = vmatpush1.xpose.msra.mxu0 0.0
      %6255 = vmatprep.subr.mxu0 0.0
      %6256 = vmatpush1.xpose.msra.mxu0 0.0
      %6257 = vmatprep.subr.mxu0 0.0
      %6258 = vmatpush1.xpose.msra.mxu0 0.0
      %6259 = vmatprep.subr.mxu0 0.0
      %6260 = vmatpush1.xpose.msra.mxu0 0.0
      %6261 = vmatprep.mubr.f32.mxu0 0.0
      %6262 = vmatmul.mubr.f32.gmra.mrb[0].mxu0 %v6189
      %v6263 = vpop.f32.mrb[0].mxu0
      %v6264 = vadd.f32 0.0, %v6263
      %v6265 = vpop.f32.mrb[0].mxu0
      %6266 = vdwg.mxu0
      %v6268 = vsel %vm384, %v5158, 0
      %v6271 = vsel %vm384, %v3646, 0
      %v6274 = vsel %vm384, %v3782, 0
      %6276 = vmatprep.subr.mxu0 0.0
      %6277 = vmatpush1.xpose.msra.mxu0 %v6271
      %6278 = vmatprep.subr.mxu0 0.0
      %6279 = vmatpush1.xpose.msra.mxu0 %v6274
      %6280 = vmatprep.subr.mxu0 0.0
      %6281 = vmatpush1.xpose.msra.mxu0 0.0
      %6282 = vmatprep.subr.mxu0 0.0
      %6283 = vmatpush1.xpose.msra.mxu0 0.0
      %6284 = vmatprep.subr.mxu0 0.0
      %6285 = vmatpush1.xpose.msra.mxu0 0.0
      %6286 = vmatprep.subr.mxu0 0.0
      %6287 = vmatpush1.xpose.msra.mxu0 0.0
      %6288 = vmatprep.subr.mxu0 0.0
      %6289 = vmatpush1.xpose.msra.mxu0 0.0
      %6290 = vmatprep.subr.mxu0 0.0
      %6291 = vmatpush1.xpose.msra.mxu0 0.0
      %6292 = vmatprep.subr.mxu0 0.0
      %6293 = vmatpush1.xpose.msra.mxu0 0.0
      %6294 = vmatprep.subr.mxu0 0.0
      %6295 = vmatpush1.xpose.msra.mxu0 0.0
      %6296 = vmatprep.subr.mxu0 0.0
      %6297 = vmatpush1.xpose.msra.mxu0 0.0
      %6298 = vmatprep.subr.mxu0 0.0
      %6299 = vmatpush1.xpose.msra.mxu0 0.0
      %6300 = vmatprep.subr.mxu0 0.0
      %6301 = vmatpush1.xpose.msra.mxu0 0.0
      %6302 = vmatprep.subr.mxu0 0.0
      %6303 = vmatpush1.xpose.msra.mxu0 0.0
      %6304 = vmatprep.subr.mxu0 0.0
      %6305 = vmatpush1.xpose.msra.mxu0 0.0
      %6306 = vmatprep.subr.mxu0 0.0
      %6307 = vmatpush1.xpose.msra.mxu0 0.0
      %6308 = vmatprep.subr.mxu0 0.0
      %6309 = vmatpush1.xpose.msra.mxu0 0.0
      %6310 = vmatprep.subr.mxu0 0.0
      %6311 = vmatpush1.xpose.msra.mxu0 0.0
      %6312 = vmatprep.subr.mxu0 0.0
      %6313 = vmatpush1.xpose.msra.mxu0 0.0
      %6314 = vmatprep.subr.mxu0 0.0
      %6315 = vmatpush1.xpose.msra.mxu0 0.0
      %6316 = vmatprep.subr.mxu0 0.0
      %6317 = vmatpush1.xpose.msra.mxu0 0.0
      %6318 = vmatprep.subr.mxu0 0.0
      %6319 = vmatpush1.xpose.msra.mxu0 0.0
      %6320 = vmatprep.subr.mxu0 0.0
      %6321 = vmatpush1.xpose.msra.mxu0 0.0
      %6322 = vmatprep.subr.mxu0 0.0
      %6323 = vmatpush1.xpose.msra.mxu0 0.0
      %6324 = vmatprep.subr.mxu0 0.0
      %6325 = vmatpush1.xpose.msra.mxu0 0.0
      %6326 = vmatprep.subr.mxu0 0.0
      %6327 = vmatpush1.xpose.msra.mxu0 0.0
      %6328 = vmatprep.subr.mxu0 0.0
      %6329 = vmatpush1.xpose.msra.mxu0 0.0
      %6330 = vmatprep.subr.mxu0 0.0
      %6331 = vmatpush1.xpose.msra.mxu0 0.0
      %6332 = vmatprep.subr.mxu0 0.0
      %6333 = vmatpush1.xpose.msra.mxu0 0.0
      %6334 = vmatprep.subr.mxu0 0.0
      %6335 = vmatpush1.xpose.msra.mxu0 0.0
      %6336 = vmatprep.subr.mxu0 0.0
      %6337 = vmatpush1.xpose.msra.mxu0 0.0
      %6338 = vmatprep.subr.mxu0 0.0
      %6339 = vmatpush1.xpose.msra.mxu0 0.0
      %6340 = vmatprep.mubr.f32.mxu0 0.0
      %6341 = vmatmul.mubr.f32.gmra.mrb[0].mxu0 %v6268
      %v6342 = vpop.f32.mrb[0].mxu0
      %v6343 = vadd.f32 0.0, %v6342
      %v6344 = vpop.f32.mrb[0].mxu0
      %6345 = vdwg.mxu0
      %v6347 = vsel %vm384, %v5160, 0
      %v6350 = vsel %vm384, %v3647, 0
      %v6353 = vsel %vm384, %v3783, 0
      %6355 = vmatprep.subr.mxu0 0.0
      %6356 = vmatpush1.xpose.msra.mxu0 %v6350
      %6357 = vmatprep.subr.mxu0 0.0
      %6358 = vmatpush1.xpose.msra.mxu0 %v6353
      %6359 = vmatprep.subr.mxu0 0.0
      %6360 = vmatpush1.xpose.msra.mxu0 0.0
      %6361 = vmatprep.subr.mxu0 0.0
      %6362 = vmatpush1.xpose.msra.mxu0 0.0
      %6363 = vmatprep.subr.mxu0 0.0
      %6364 = vmatpush1.xpose.msra.mxu0 0.0
      %6365 = vmatprep.subr.mxu0 0.0
      %6366 = vmatpush1.xpose.msra.mxu0 0.0
      %6367 = vmatprep.subr.mxu0 0.0
      %6368 = vmatpush1.xpose.msra.mxu0 0.0
      %6369 = vmatprep.subr.mxu0 0.0
      %6370 = vmatpush1.xpose.msra.mxu0 0.0
      %6371 = vmatprep.subr.mxu0 0.0
      %6372 = vmatpush1.xpose.msra.mxu0 0.0
      %6373 = vmatprep.subr.mxu0 0.0
      %6374 = vmatpush1.xpose.msra.mxu0 0.0
      %6375 = vmatprep.subr.mxu0 0.0
      %6376 = vmatpush1.xpose.msra.mxu0 0.0
      %6377 = vmatprep.subr.mxu0 0.0
      %6378 = vmatpush1.xpose.msra.mxu0 0.0
      %6379 = vmatprep.subr.mxu0 0.0
      %6380 = vmatpush1.xpose.msra.mxu0 0.0
      %6381 = vmatprep.subr.mxu0 0.0
      %6382 = vmatpush1.xpose.msra.mxu0 0.0
      %6383 = vmatprep.subr.mxu0 0.0
      %6384 = vmatpush1.xpose.msra.mxu0 0.0
      %6385 = vmatprep.subr.mxu0 0.0
      %6386 = vmatpush1.xpose.msra.mxu0 0.0
      %6387 = vmatprep.subr.mxu0 0.0
      %6388 = vmatpush1.xpose.msra.mxu0 0.0
      %6389 = vmatprep.subr.mxu0 0.0
      %6390 = vmatpush1.xpose.msra.mxu0 0.0
      %6391 = vmatprep.subr.mxu0 0.0
      %6392 = vmatpush1.xpose.msra.mxu0 0.0
      %6393 = vmatprep.subr.mxu0 0.0
      %6394 = vmatpush1.xpose.msra.mxu0 0.0
      %6395 = vmatprep.subr.mxu0 0.0
      %6396 = vmatpush1.xpose.msra.mxu0 0.0
      %6397 = vmatprep.subr.mxu0 0.0
      %6398 = vmatpush1.xpose.msra.mxu0 0.0
      %6399 = vmatprep.subr.mxu0 0.0
      %6400 = vmatpush1.xpose.msra.mxu0 0.0
      %6401 = vmatprep.subr.mxu0 0.0
      %6402 = vmatpush1.xpose.msra.mxu0 0.0
      %6403 = vmatprep.subr.mxu0 0.0
      %6404 = vmatpush1.xpose.msra.mxu0 0.0
      %6405 = vmatprep.subr.mxu0 0.0
      %6406 = vmatpush1.xpose.msra.mxu0 0.0
      %6407 = vmatprep.subr.mxu0 0.0
      %6408 = vmatpush1.xpose.msra.mxu0 0.0
      %6409 = vmatprep.subr.mxu0 0.0
      %6410 = vmatpush1.xpose.msra.mxu0 0.0
      %6411 = vmatprep.subr.mxu0 0.0
      %6412 = vmatpush1.xpose.msra.mxu0 0.0
      %6413 = vmatprep.subr.mxu0 0.0
      %6414 = vmatpush1.xpose.msra.mxu0 0.0
      %6415 = vmatprep.subr.mxu0 0.0
      %6416 = vmatpush1.xpose.msra.mxu0 0.0
      %6417 = vmatprep.subr.mxu0 0.0
      %6418 = vmatpush1.xpose.msra.mxu0 0.0
      %6419 = vmatprep.mubr.f32.mxu0 0.0
      %6420 = vmatmul.mubr.f32.gmra.mrb[0].mxu0 %v6347
      %v6421 = vpop.f32.mrb[0].mxu0
      %v6422 = vadd.f32 0.0, %v6421
      %v6423 = vpop.f32.mrb[0].mxu0
      %6424 = vdwg.mxu0
      %v6425 = vcombine.low %v5237, %v5395
      %v6427 = vunpack.c.l.s4 1983009808
      %v6428 = vunpack.c.0.s8 %v6427
      %v6429 = vlaneseq
      %v6430 = vshrl.u32 %v6429, 7
      %v6431 = vsub.s32 %v6428, %v6430
      %v6432 = vrot.slane %v6425, %v6431
      %v6433 = vcombine.low %v5316, %v5474
      %v6435 = vunpack.c.l.s4 1983009808
      %v6436 = vunpack.c.0.s8 %v6435
      %v6437 = vlaneseq
      %v6438 = vshrl.u32 %v6437, 7
      %v6439 = vsub.s32 %v6436, %v6438
      %v6440 = vrot.slane %v6433, %v6439
      %v6441 = vcombine.low %v5553, %v5711
      %v6443 = vunpack.c.l.s4 1983009808
      %v6444 = vunpack.c.0.s8 %v6443
      %v6445 = vlaneseq
      %v6446 = vshrl.u32 %v6445, 7
      %v6447 = vsub.s32 %v6444, %v6446
      %v6448 = vrot.slane %v6441, %v6447
      %v6449 = vcombine.low %v5632, %v5790
      %v6451 = vunpack.c.l.s4 1983009808
      %v6452 = vunpack.c.0.s8 %v6451
      %v6453 = vlaneseq
      %v6454 = vshrl.u32 %v6453, 7
      %v6455 = vsub.s32 %v6452, %v6454
      %v6456 = vrot.slane %v6449, %v6455
      %v6457 = vcombine.low %v6432, %v6440
      %v6458 = vcombine.high %v6432, %v6440
      %v6460 = vunpack.c.l.s4 1934713408
      %v6461 = vunpack.c.0.s8 %v6460
      %v6462 = vlaneseq
      %v6463 = vshrl.u32 %v6462, 7
      %v6464 = vsub.s32 %v6461, %v6463
      %v6465 = vrot.slane %v6457, %v6464
      %v6467 = vunpack.c.l.s4 1934713408
      %v6468 = vunpack.c.0.s8 %v6467
      %v6469 = vlaneseq
      %v6470 = vshrl.u32 %v6469, 7
      %v6471 = vsub.s32 %v6468, %v6470
      %v6472 = vrot.slane %v6458, %v6471
      %v6473 = vcombine.low %v6448, %v6456
      %v6474 = vcombine.high %v6448, %v6456
      %v6476 = vunpack.c.l.s4 1934713408
      %v6477 = vunpack.c.0.s8 %v6476
      %v6478 = vlaneseq
      %v6479 = vshrl.u32 %v6478, 7
      %v6480 = vsub.s32 %v6477, %v6479
      %v6481 = vrot.slane %v6473, %v6480
      %v6483 = vunpack.c.l.s4 1934713408
      %v6484 = vunpack.c.0.s8 %v6483
      %v6485 = vlaneseq
      %v6486 = vshrl.u32 %v6485, 7
      %v6487 = vsub.s32 %v6484, %v6486
      %v6488 = vrot.slane %v6474, %v6487
      %v6489 = vcombine.low %v6465, %v6481
      %v6490 = vcombine.high %v6465, %v6481
      %v6491 = vcombine.low %v6472, %v6488
      %v6492 = vcombine.high %v6472, %v6488
      %v6493 = vcombine.low %v5869, %v6027
      %v6495 = vunpack.c.l.s4 1983009808
      %v6496 = vunpack.c.0.s8 %v6495
      %v6497 = vlaneseq
      %v6498 = vshrl.u32 %v6497, 7
      %v6499 = vsub.s32 %v6496, %v6498
      %v6500 = vrot.slane %v6493, %v6499
      %v6501 = vcombine.low %v5948, %v6106
      %v6503 = vunpack.c.l.s4 1983009808
      %v6504 = vunpack.c.0.s8 %v6503
      %v6505 = vlaneseq
      %v6506 = vshrl.u32 %v6505, 7
      %v6507 = vsub.s32 %v6504, %v6506
      %v6508 = vrot.slane %v6501, %v6507
      %v6509 = vcombine.low %v6185, %v6343
      %v6511 = vunpack.c.l.s4 1983009808
      %v6512 = vunpack.c.0.s8 %v6511
      %v6513 = vlaneseq
      %v6514 = vshrl.u32 %v6513, 7
      %v6515 = vsub.s32 %v6512, %v6514
      %v6516 = vrot.slane %v6509, %v6515
      %v6517 = vcombine.low %v6264, %v6422
      %v6519 = vunpack.c.l.s4 1983009808
      %v6520 = vunpack.c.0.s8 %v6519
      %v6521 = vlaneseq
      %v6522 = vshrl.u32 %v6521, 7
      %v6523 = vsub.s32 %v6520, %v6522
      %v6524 = vrot.slane %v6517, %v6523
      %v6525 = vcombine.low %v6500, %v6508
      %v6526 = vcombine.high %v6500, %v6508
      %v6528 = vunpack.c.l.s4 1934713408
      %v6529 = vunpack.c.0.s8 %v6528
      %v6530 = vlaneseq
      %v6531 = vshrl.u32 %v6530, 7
      %v6532 = vsub.s32 %v6529, %v6531
      %v6533 = vrot.slane %v6525, %v6532
      %v6535 = vunpack.c.l.s4 1934713408
      %v6536 = vunpack.c.0.s8 %v6535
      %v6537 = vlaneseq
      %v6538 = vshrl.u32 %v6537, 7
      %v6539 = vsub.s32 %v6536, %v6538
      %v6540 = vrot.slane %v6526, %v6539
      %v6541 = vcombine.low %v6516, %v6524
      %v6542 = vcombine.high %v6516, %v6524
      %v6544 = vunpack.c.l.s4 1934713408
      %v6545 = vunpack.c.0.s8 %v6544
      %v6546 = vlaneseq
      %v6547 = vshrl.u32 %v6546, 7
      %v6548 = vsub.s32 %v6545, %v6547
      %v6549 = vrot.slane %v6541, %v6548
      %v6551 = vunpack.c.l.s4 1934713408
      %v6552 = vunpack.c.0.s8 %v6551
      %v6553 = vlaneseq
      %v6554 = vshrl.u32 %v6553, 7
      %v6555 = vsub.s32 %v6552, %v6554
      %v6556 = vrot.slane %v6542, %v6555
      %v6557 = vcombine.low %v6533, %v6549
      %v6558 = vcombine.high %v6533, %v6549
      %v6559 = vcombine.low %v6540, %v6556
      %v6560 = vcombine.high %v6540, %v6556
      %6563 = vrot.lane.b32.xlu0 %v6490, 16
      %v6564 = vpop.permute.xlu0 %6563
      %6565 = vrot.lane.b32.xlu0 %v6558, 16
      %v6566 = vpop.permute.xlu0 %6565
      %6571 = vrot.lane.b32.xlu0 %v6491, 32
      %v6572 = vpop.permute.xlu0 %6571
      %6573 = vrot.lane.b32.xlu0 %v6559, 32
      %v6574 = vpop.permute.xlu0 %6573
      %6579 = vrot.lane.b32.xlu0 %v6492, 48
      %v6580 = vpop.permute.xlu0 %6579
      %6581 = vrot.lane.b32.xlu0 %v6560, 48
      %v6582 = vpop.permute.xlu0 %6581
      %v6585 = vsel %vm486, %v6489, %v6564
      %v6586 = vsel %vm486, %v6557, %v6566
      %v6587 = vsel %vm1450, %v6585, %v6572
      %v6588 = vsel %vm1450, %v6586, %v6574
      %v6589 = vsel %vm1462, %v6587, %v6580
      %v6590 = vsel %vm1462, %v6588, %v6582
      %6591 = vrot.lane.b32.xlu0 %v1523, 16
      %v6592 = vpop.permute.xlu0 %6591
      %6594 = vrot.lane.b32.xlu0 %v1524, 32
      %v6595 = vpop.permute.xlu0 %6594
      %6597 = vrot.lane.b32.xlu0 %v1525, 48
      %v6598 = vpop.permute.xlu0 %6597
      %v6600 = vsel %vm486, %v1522, %v6592
      %v6601 = vsel %vm1450, %v6600, %v6595
      %v6602 = vsel %vm1462, %v6601, %v6598
      %v6604 = vsel %vm486, %v732, 0
      %v6607 = vsel %vm486, %v734, 0
      %6609 = vmatprep.subr.mxu0 0.0
      %6610 = vmatpush1.msra.mxu0 %v6589
      %6611 = vmatprep.subr.mxu0 0.0
      %6612 = vmatpush1.msra.mxu0 %v6590
      %6613 = vmatprep.subr.mxu0 0.0
      %6614 = vmatpush1.msra.mxu0 0.0
      %6615 = vmatprep.subr.mxu0 0.0
      %6616 = vmatpush1.msra.mxu0 0.0
      %6617 = vmatprep.subr.mxu0 0.0
      %6618 = vmatpush1.msra.mxu0 0.0
      %6619 = vmatprep.subr.mxu0 0.0
      %6620 = vmatpush1.msra.mxu0 0.0
      %6621 = vmatprep.subr.mxu0 0.0
      %6622 = vmatpush1.msra.mxu0 0.0
      %6623 = vmatprep.subr.mxu0 0.0
      %6624 = vmatpush1.msra.mxu0 0.0
      %6625 = vmatprep.subr.mxu0 0.0
      %6626 = vmatpush1.msra.mxu0 0.0
      %6627 = vmatprep.subr.mxu0 0.0
      %6628 = vmatpush1.msra.mxu0 0.0
      %6629 = vmatprep.subr.mxu0 0.0
      %6630 = vmatpush1.msra.mxu0 0.0
      %6631 = vmatprep.subr.mxu0 0.0
      %6632 = vmatpush1.msra.mxu0 0.0
      %6633 = vmatprep.subr.mxu0 0.0
      %6634 = vmatpush1.msra.mxu0 0.0
      %6635 = vmatprep.subr.mxu0 0.0
      %6636 = vmatpush1.msra.mxu0 0.0
      %6637 = vmatprep.subr.mxu0 0.0
      %6638 = vmatpush1.msra.mxu0 0.0
      %6639 = vmatprep.subr.mxu0 0.0
      %6640 = vmatpush1.msra.mxu0 0.0
      %6641 = vmatprep.subr.mxu0 0.0
      %6642 = vmatpush1.msra.mxu0 0.0
      %6643 = vmatprep.subr.mxu0 0.0
      %6644 = vmatpush1.msra.mxu0 0.0
      %6645 = vmatprep.subr.mxu0 0.0
      %6646 = vmatpush1.msra.mxu0 0.0
      %6647 = vmatprep.subr.mxu0 0.0
      %6648 = vmatpush1.msra.mxu0 0.0
      %6649 = vmatprep.subr.mxu0 0.0
      %6650 = vmatpush1.msra.mxu0 0.0
      %6651 = vmatprep.subr.mxu0 0.0
      %6652 = vmatpush1.msra.mxu0 0.0
      %6653 = vmatprep.subr.mxu0 0.0
      %6654 = vmatpush1.msra.mxu0 0.0
      %6655 = vmatprep.subr.mxu0 0.0
      %6656 = vmatpush1.msra.mxu0 0.0
      %6657 = vmatprep.subr.mxu0 0.0
      %6658 = vmatpush1.msra.mxu0 0.0
      %6659 = vmatprep.subr.mxu0 0.0
      %6660 = vmatpush1.msra.mxu0 0.0
      %6661 = vmatprep.subr.mxu0 0.0
      %6662 = vmatpush1.msra.mxu0 0.0
      %6663 = vmatprep.subr.mxu0 0.0
      %6664 = vmatpush1.msra.mxu0 0.0
      %6665 = vmatprep.subr.mxu0 0.0
      %6666 = vmatpush1.msra.mxu0 0.0
      %6667 = vmatprep.subr.mxu0 0.0
      %6668 = vmatpush1.msra.mxu0 0.0
      %6669 = vmatprep.subr.mxu0 0.0
      %6670 = vmatpush1.msra.mxu0 0.0
      %6671 = vmatprep.subr.mxu0 0.0
      %6672 = vmatpush1.msra.mxu0 0.0
      %6673 = vmatprep.mubr.f32.mxu0 0.0
      %6674 = vmatmul.mubr.f32.gmra.mrb[0].mxu0 %v6604
      %v6675 = vpop.f32.mrb[0].mxu0
      %v6676 = vadd.f32 %v6602, %v6675
      %v6677 = vpop.f32.mrb[0].mxu0
      %6678 = vmatprep.mubr.f32.mxu0 0.0
      %6679 = vmatmul.mubr.f32.gmra.mrb[0].mxu0 %v6607
      %v6680 = vpop.f32.mrb[0].mxu0
      %v6681 = vadd.f32 %v6602, %v6680
      %v6682 = vpop.f32.mrb[0].mxu0
      %6683 = vdwg.mxu0
      %6686 = vrot.lane.b32.xlu0 %v6676, 112
      %v6687 = vpop.permute.xlu0 %6686
      %6688 = vrot.lane.b32.xlu0 %v6681, 112
      %v6689 = vpop.permute.xlu0 %6688
      %6692 = vrot.lane.b32.xlu0 %v6676, 96
      %v6693 = vpop.permute.xlu0 %6692
      %6694 = vrot.lane.b32.xlu0 %v6681, 96
      %v6695 = vpop.permute.xlu0 %6694
      %6698 = vrot.lane.b32.xlu0 %v6676, 80
      %v6699 = vpop.permute.xlu0 %6698
      %6700 = vrot.lane.b32.xlu0 %v6681, 80
      %v6701 = vpop.permute.xlu0 %6700
      %v6704 = vcombine.low %v6676, %v6693
      %v6705 = vcombine.high %v6676, %v6693
      %v6707 = vunpack.c.l.s4 1983009808
      %v6708 = vunpack.c.0.s8 %v6707
      %v6709 = vlaneseq
      %v6710 = vshrl.u32 %v6709, 7
      %v6711 = vsub.s32 %v6708, %v6710
      %v6712 = vrot.slane %v6704, %v6711
      %v6714 = vunpack.c.l.s4 1983009808
      %v6715 = vunpack.c.0.s8 %v6714
      %v6716 = vlaneseq
      %v6717 = vshrl.u32 %v6716, 7
      %v6718 = vsub.s32 %v6715, %v6717
      %v6719 = vrot.slane %v6705, %v6718
      %v6720 = vcombine.low %v6687, %v6699
      %v6721 = vcombine.high %v6687, %v6699
      %v6723 = vunpack.c.l.s4 1983009808
      %v6724 = vunpack.c.0.s8 %v6723
      %v6725 = vlaneseq
      %v6726 = vshrl.u32 %v6725, 7
      %v6727 = vsub.s32 %v6724, %v6726
      %v6728 = vrot.slane %v6720, %v6727
      %v6730 = vunpack.c.l.s4 1983009808
      %v6731 = vunpack.c.0.s8 %v6730
      %v6732 = vlaneseq
      %v6733 = vshrl.u32 %v6732, 7
      %v6734 = vsub.s32 %v6731, %v6733
      %v6735 = vrot.slane %v6721, %v6734
      %v6736 = vcombine.low %v6712, %v6728
      %v6737 = vcombine.high %v6712, %v6728
      %v6739 = vunpack.c.l.s4 1934713408
      %v6740 = vunpack.c.0.s8 %v6739
      %v6741 = vlaneseq
      %v6742 = vshrl.u32 %v6741, 7
      %v6743 = vsub.s32 %v6740, %v6742
      %v6744 = vrot.slane %v6736, %v6743
      %v6746 = vunpack.c.l.s4 1934713408
      %v6747 = vunpack.c.0.s8 %v6746
      %v6748 = vlaneseq
      %v6749 = vshrl.u32 %v6748, 7
      %v6750 = vsub.s32 %v6747, %v6749
      %v6751 = vrot.slane %v6737, %v6750
      %v6752 = vcombine.low %v6719, %v6735
      %v6753 = vcombine.high %v6719, %v6735
      %v6755 = vunpack.c.l.s4 1934713408
      %v6756 = vunpack.c.0.s8 %v6755
      %v6757 = vlaneseq
      %v6758 = vshrl.u32 %v6757, 7
      %v6759 = vsub.s32 %v6756, %v6758
      %v6760 = vrot.slane %v6752, %v6759
      %v6762 = vunpack.c.l.s4 1934713408
      %v6763 = vunpack.c.0.s8 %v6762
      %v6764 = vlaneseq
      %v6765 = vshrl.u32 %v6764, 7
      %v6766 = vsub.s32 %v6763, %v6765
      %v6767 = vrot.slane %v6753, %v6766
      %v6768 = vcombine.high %v6744, 0.0
      %v6769 = vcombine.high %v6751, 0.0
      %v6770 = vcombine.high %v6760, 0.0
      %v6771 = vcombine.high %v6767, 0.0
      %v6772 = vcombine.low %v6681, %v6695
      %v6773 = vcombine.high %v6681, %v6695
      %v6775 = vunpack.c.l.s4 1983009808
      %v6776 = vunpack.c.0.s8 %v6775
      %v6777 = vlaneseq
      %v6778 = vshrl.u32 %v6777, 7
      %v6779 = vsub.s32 %v6776, %v6778
      %v6780 = vrot.slane %v6772, %v6779
      %v6782 = vunpack.c.l.s4 1983009808
      %v6783 = vunpack.c.0.s8 %v6782
      %v6784 = vlaneseq
      %v6785 = vshrl.u32 %v6784, 7
      %v6786 = vsub.s32 %v6783, %v6785
      %v6787 = vrot.slane %v6773, %v6786
      %v6788 = vcombine.low %v6689, %v6701
      %v6789 = vcombine.high %v6689, %v6701
      %v6791 = vunpack.c.l.s4 1983009808
      %v6792 = vunpack.c.0.s8 %v6791
      %v6793 = vlaneseq
      %v6794 = vshrl.u32 %v6793, 7
      %v6795 = vsub.s32 %v6792, %v6794
      %v6796 = vrot.slane %v6788, %v6795
      %v6798 = vunpack.c.l.s4 1983009808
      %v6799 = vunpack.c.0.s8 %v6798
      %v6800 = vlaneseq
      %v6801 = vshrl.u32 %v6800, 7
      %v6802 = vsub.s32 %v6799, %v6801
      %v6803 = vrot.slane %v6789, %v6802
      %v6804 = vcombine.low %v6780, %v6796
      %v6805 = vcombine.high %v6780, %v6796
      %v6807 = vunpack.c.l.s4 1934713408
      %v6808 = vunpack.c.0.s8 %v6807
      %v6809 = vlaneseq
      %v6810 = vshrl.u32 %v6809, 7
      %v6811 = vsub.s32 %v6808, %v6810
      %v6812 = vrot.slane %v6804, %v6811
      %v6814 = vunpack.c.l.s4 1934713408
      %v6815 = vunpack.c.0.s8 %v6814
      %v6816 = vlaneseq
      %v6817 = vshrl.u32 %v6816, 7
      %v6818 = vsub.s32 %v6815, %v6817
      %v6819 = vrot.slane %v6805, %v6818
      %v6820 = vcombine.low %v6787, %v6803
      %v6821 = vcombine.high %v6787, %v6803
      %v6823 = vunpack.c.l.s4 1934713408
      %v6824 = vunpack.c.0.s8 %v6823
      %v6825 = vlaneseq
      %v6826 = vshrl.u32 %v6825, 7
      %v6827 = vsub.s32 %v6824, %v6826
      %v6828 = vrot.slane %v6820, %v6827
      %v6830 = vunpack.c.l.s4 1934713408
      %v6831 = vunpack.c.0.s8 %v6830
      %v6832 = vlaneseq
      %v6833 = vshrl.u32 %v6832, 7
      %v6834 = vsub.s32 %v6831, %v6833
      %v6835 = vrot.slane %v6821, %v6834
      %v6836 = vcombine.high %v6812, 0.0
      %v6837 = vcombine.high %v6819, 0.0
      %v6838 = vcombine.high %v6828, 0.0
      %v6839 = vcombine.high %v6835, 0.0
      %vm6840 = vcmask 125952
      %6841 = vst.msk [vmem:[%s348] sm:$0xf] %vm6840, %v6744
      %6842 = vst.msk [vmem:[%s348 + $0x4] sm:$0xf] %vm6840, %v6768
      %6843 = vst.msk [vmem:[%s348 + $0x8] sm:$0xf] %vm6840, %v6751
      %6844 = vst.msk [vmem:[%s348 + $0xc] sm:$0xf] %vm6840, %v6769
      %6845 = vst.msk [vmem:[%s348 + $0x10] sm:$0xf] %vm6840, %v6760
      %6846 = vst.msk [vmem:[%s348 + $0x14] sm:$0xf] %vm6840, %v6770
      %6847 = vst.msk [vmem:[%s348 + $0x18] sm:$0xf] %vm6840, %v6767
      %6848 = vst.msk [vmem:[%s348 + $0x1c] sm:$0xf] %vm6840, %v6771
      %6849 = vst.msk [vmem:[%s348 + $0x20] sm:$0xf] %vm6840, %v6812
      %6850 = vst.msk [vmem:[%s348 + $0x24] sm:$0xf] %vm6840, %v6836
      %6851 = vst.msk [vmem:[%s348 + $0x28] sm:$0xf] %vm6840, %v6819
      %6852 = vst.msk [vmem:[%s348 + $0x2c] sm:$0xf] %vm6840, %v6837
      %6853 = vst.msk [vmem:[%s348 + $0x30] sm:$0xf] %vm6840, %v6828
      %6854 = vst.msk [vmem:[%s348 + $0x34] sm:$0xf] %vm6840, %v6838
      %6855 = vst.msk [vmem:[%s348 + $0x38] sm:$0xf] %vm6840, %v6835
      %6856 = vst.msk [vmem:[%s348 + $0x3c] sm:$0xf] %vm6840, %v6839
      %p6857 = scmp.lt.s32.totalorder %s17, 1
      %s6858 = scalar_select %p6857, %s17, 1
      %s6859 = smul.addr %s6858, 16
      %s6860 = smul.addr %s6859, 4
      %s6861 = scalar_lea.vmem %s6, %s6860
      // Predicated region
      $region45: #{sparse_cut_attention.1} parent=43 // pred_check
        %p6862 = pneg %p191
      $region46: #{sparse_cut_attention.1} parent=43 // pred_check_branch
        %6864 = sbr.rel (%p6862) target = $region48
      $region47: #{sparse_cut_attention.1} parent=43 // pred_region
        _
      $region48: #{sparse_cut_attention.1} parent=43 // pred_fallthru
        _
    $region44: #{sparse_cut_attention.1} parent=5 // pred_fallthru
      _
    %p6865 = scmp.le.s32.totalorder 2, %s12
    // Predicated region
    $region49: #{sparse_cut_attention.1} parent=5 // pred_check
      %p6866 = pneg %p6865
    $region50: #{sparse_cut_attention.1} parent=5 // pred_check_branch
      %6868 = sbr.rel (%p6866) target = $region52
    $region51: #{sparse_cut_attention.1} parent=5 // pred_region
      %s6869 = ssub.s32 %s12, 2
      // Predicated region
      $region53: #{sparse_cut_attention.1} parent=51 // pred_check
        %p6870 = pneg %p197
      $region54: #{sparse_cut_attention.1} parent=51 // pred_check_branch
        %6872 = sbr.rel (%p6870) target = $region56
      $region55: #{sparse_cut_attention.1} parent=51 // pred_region
        %p6873 = scmp.lt.s32.totalorder %s18, 1
        %s6874 = scalar_select %p6873, %s18, 1
        %s6875 = smul.addr %s6874, 16
        %s6876 = smul.addr %s6875, 4
        %s6877 = scalar_lea.vmem %s6, %s6876
      $region56: #{sparse_cut_attention.1} parent=51 // pred_fallthru
        _
    $region52: #{sparse_cut_attention.1} parent=5 // pred_fallthru
      _
  $region6: #{sparse_cut_attention.1} parent=0 // loop_footer
    %s16 = sadd.s32 1, %s12
  $region7: #{sparse_cut_attention.1} parent=0 // loop_footer_branch
    %11 = sbr.rel target = $region3
  $region8: #{sparse_cut_attention.1} parent=0 // loop_exit
    _

</llo_original>
